<compile_context>
chip_gen: v6e
topology: v6e:2x2x1
jax: 0.10.0
libtpu: 0.0.40
codegen_flags: <defaults>
</compile_context>

<pallas_src>
import math
from collections import OrderedDict
from functools import partial

import jax
import jax.numpy as jnp
from jax.experimental import pallas as pl
from jax.experimental.pallas import tpu as pltpu


def _round_up(x, m):
    return (x + m - 1) // m * m


# ----------------------------------------------------------------------------- #
# Generic tiled matmul with fused bias + activation epilogue.
#   bf16 MXU inputs, f32 accumulation directly into the revisit-resident output
#   block, K-blocked "arbitrary" grid axis, no padding for small K/N/M.
# ----------------------------------------------------------------------------- #
def _matmul_kernel(a_ref, b_ref, bias_ref, o_ref, *, activation):
    k = pl.program_id(2)

    @pl.when(k == 0)
    def _():
        o_ref[...] = jnp.zeros_like(o_ref)

    o_ref[...] += jnp.dot(a_ref[...], b_ref[...],
                          preferred_element_type=jnp.float32)

    @pl.when(k == pl.num_programs(2) - 1)
    def _():
        out = o_ref[...] + bias_ref[...]
        if activation == "relu":
            out = jnp.maximum(out, 0.0)
        elif activation == "gelu":
            out = jax.nn.gelu(out, approximate=True)
        o_ref[...] = out


def pallas_matmul_fused(a, b, bias=None, activation=None):
    """activation(a @ b + bias): (M, K) @ (K, N) -> (M, N) on the MXU."""
    M, K = a.shape
    K2, N = b.shape
    assert K == K2
    if bias is None:
        bias = jnp.zeros((N,), jnp.float32)

    a_b = a.astype(jnp.bfloat16)
    b_b = b.astype(jnp.bfloat16)
    bias_row = bias.astype(jnp.float32).reshape(1, N)

    def tile(dim, cap):
        # Small dims -> single full-dim block (no pad, exempt from (8,128) rule).
        if dim <= cap:
            return dim, dim, False
        for t in (512, 256, 128):
            if t <= cap and dim % t == 0:
                return t, dim, False
        return 128, _round_up(dim, 128), True

    TM, Mp, pad_m = tile(M, 512)
    TN, Np, pad_n = tile(N, 256)
    TK, Kp, pad_k = tile(K, 512)
    if pad_m:
        a_b = jnp.pad(a_b, ((0, Mp - M), (0, 0)))
    if pad_k:
        a_b = jnp.pad(a_b, ((0, 0), (0, Kp - K)))
        b_b = jnp.pad(b_b, ((0, Kp - K), (0, 0)))
    if pad_n:
        b_b = jnp.pad(b_b, ((0, 0), (0, Np - N)))
        bias_row = jnp.pad(bias_row, ((0, 0), (0, Np - N)))

    # Rough per-program VMEM need (double-buffered inputs + resident f32 out).
    vmem_need = 2 * 2 * (TM * TK + TK * TN) + 2 * 4 * TM * TN + 4 * TN
    out = pl.pallas_call(
        partial(_matmul_kernel, activation=activation),
        out_shape=jax.ShapeDtypeStruct((Mp, Np), jnp.float32),
        grid=(Mp // TM, Np // TN, Kp // TK),
        in_specs=[
            pl.BlockSpec((TM, TK), lambda i, j, k: (i, k)),
            pl.BlockSpec((TK, TN), lambda i, j, k: (k, j)),
            pl.BlockSpec((1, TN), lambda i, j, k: (0, j)),
        ],
        out_specs=pl.BlockSpec((TM, TN), lambda i, j, k: (i, j)),
        compiler_params=pltpu.CompilerParams(
            dimension_semantics=("parallel", "parallel", "arbitrary"),
            vmem_limit_bytes=int(min(max(2 * vmem_need, 32 * 2**20), 64 * 2**20)),
        ),
    )(a_b, b_b, bias_row)
    if pad_m or pad_n:
        out = out[:M, :N]
    return out


# ----------------------------------------------------------------------------- #
# 3x3 stride-2 "same" conv (bias + ReLU fused) without an im2col buffer.
#   A single space-to-depth reorganization (bf16, ~= input size) removes the
#   stride; the Pallas kernel extracts the remaining 2x2 stride-1 taps from the
#   VMEM-resident block and accumulates four MXU dots.
# ----------------------------------------------------------------------------- #
def _s2d_weights(w):
    """(3,3,Cin,Cout) -> (4, 4*Cin, Cout) matching the s2d channel layout."""
    kh, kw, Cin, Cout = w.shape
    w_p = jnp.pad(w, ((0, 4 - kh), (0, 4 - kw), (0, 0), (0, 0)))      # (4,4,Cin,Cout)
    w2 = w_p.reshape(2, 2, 2, 2, Cin, Cout).transpose(0, 2, 1, 3, 4, 5)
    return w2.reshape(4, 4 * Cin, Cout)


def _conv_s2d_kernel(z_ref, w_ref, b_ref, o_ref, *, Ho, Wo):
    # z_ref: (1, Hs, Ws, 4*Cin) bf16 ; w_ref: (4, 4*Cin, Cout) bf16
    C4 = z_ref.shape[-1]
    z = z_ref[0].astype(jnp.float32)              # widen once; 32-bit slicing
    acc = None
    for t, (a, b) in enumerate(((0, 0), (0, 1), (1, 0), (1, 1))):
        tap = z[a:a + Ho, b:b + Wo, :].reshape(Ho * Wo, C4).astype(jnp.bfloat16)
        d = jnp.dot(tap, w_ref[t], preferred_element_type=jnp.float32)
        acc = d if acc is None else acc + d
    o_ref[0] = jnp.maximum(acc + b_ref[...], 0.0)


def conv2d_s2d(x, w, b):
    """x: (N, H, W, Cin), w: (3, 3, Cin, Cout); stride 2, 'same' padding, ReLU."""
    N, H, W, Cin = x.shape
    kh, kw, _, Cout = w.shape
    assert kh == 3 and kw == 3 and H % 2 == 0 and W % 2 == 0
    Ho, Wo = H // 2, W // 2
    Hs, Ws = Ho + 1, Wo + 1
    # One bf16 pad + space-to-depth pass (fused in XLA) instead of a 2.25x im2col buffer.
    xp = jnp.pad(x.astype(jnp.bfloat16), ((0, 0), (1, 1), (1, 1), (0, 0)))
    z = xp.reshape(N, Hs, 2, Ws, 2, Cin).transpose(0, 1, 3, 2, 4, 5)
    z = z.reshape(N, Hs, Ws, 4 * Cin)
    w2 = _s2d_weights(w).astype(jnp.bfloat16)
    bias = b.astype(jnp.float32).reshape(1, Cout)
    C4 = 4 * Cin

    out = pl.pallas_call(
        partial(_conv_s2d_kernel, Ho=Ho, Wo=Wo),
        out_shape=jax.ShapeDtypeStruct((N, Ho * Wo, Cout), jnp.float32),
        grid=(N,),
        in_specs=[
            pl.BlockSpec((1, Hs, Ws, C4), lambda n: (n, 0, 0, 0)),
            pl.BlockSpec((4, C4, Cout), lambda n: (0, 0, 0)),
            pl.BlockSpec((1, Cout), lambda n: (0, 0)),
        ],
        out_specs=pl.BlockSpec((1, Ho * Wo, Cout), lambda n: (n, 0, 0)),
        compiler_params=pltpu.CompilerParams(dimension_semantics=("parallel",)),
    )(z, w2, bias)
    return out.reshape(N, Ho, Wo, Cout)


def backbone(im_nchw, layers, p):
    """im_nchw: (B, 3, H, W) -> OrderedDict of NHWC feature maps."""
    x = jnp.transpose(im_nchw, (0, 2, 3, 1)).astype(jnp.float32)   # -> NHWC
    l2 = conv2d_s2d(x, p["conv1_w"], p["conv1_b"])                 # (B, H/2, W/2, 16)
    l3 = conv2d_s2d(l2, p["conv2_w"], p["conv2_b"])                # (B, H/4, W/4, 32)
    feats = OrderedDict([("layer2", l2), ("layer3", l3)])
    return OrderedDict({l: feats[l] for l in layers})


# ----------------------------------------------------------------------------- #
# FasterViT block: fused attention + MLP kernel, gridded over batch (parallel).
# ----------------------------------------------------------------------------- #
def _fastervit_kernel(tok_ref, wq_ref, bq_ref, wk_ref, bk_ref, wv_ref, bv_ref,
                      wp_ref, bp_ref, w1_ref, b1_ref, w2_ref, b2_ref, o_ref):
    x = tok_ref[0]                                  # (T, C) f32
    C = x.shape[-1]
    xb = x.astype(jnp.bfloat16)
    scale = 1.0 / math.sqrt(C)

    def mm(a_bf, w_r, b_r):
        return jnp.dot(a_bf, w_r[...], preferred_element_type=jnp.float32) + b_r[...]

    q = mm(xb, wq_ref, bq_ref)
    k = mm(xb, wk_ref, bk_ref)
    v = mm(xb, wv_ref, bv_ref)

    # TODO(synk): for large T (real FasterViT resolution) convert to a streamed
    # flash-style KV loop instead of materializing the full (T, T) score matrix.
    s = jax.lax.dot_general(q.astype(jnp.bfloat16), k.astype(jnp.bfloat16),
                            (((1,), (1,)), ((), ())),
                            preferred_element_type=jnp.float32) * scale
    s = s - jnp.max(s, axis=-1, keepdims=True)
    e = jnp.exp(s)
    probs = e * pl.reciprocal(jnp.sum(e, axis=-1, keepdims=True), approx=True)
    attn = jnp.dot(probs.astype(jnp.bfloat16), v.astype(jnp.bfloat16),
                   preferred_element_type=jnp.float32)

    x1 = x + mm(attn.astype(jnp.bfloat16), wp_ref, bp_ref)
    # TODO(synk): PyTorch's default GELU is the exact erf form; tanh approx used here.
    h = jax.nn.gelu(mm(x1.astype(jnp.bfloat16), w1_ref, b1_ref), approximate=True)
    o_ref[0] = x1 + mm(h.astype(jnp.bfloat16), w2_ref, b2_ref)


def fastervit_block(x, p):
    """Simplified FasterViT: global self-attention + MLP with residuals.
    TODO(synk): real FasterViT(dim=1024, ct_size=1, window_size=2, resolution=22)
    uses hierarchical carrier-token window attention; a scaled-down global
    attention transformer block is used here."""
    B, Hc, Wc, C = x.shape
    T = Hc * Wc
    tok = x.reshape(B, T, C).astype(jnp.float32)
    wq, wk, wv = p["w_qkv"][:, :C], p["w_qkv"][:, C:2 * C], p["w_qkv"][:, 2 * C:]
    bq, bk, bv = p["b_qkv"][:C], p["b_qkv"][C:2 * C], p["b_qkv"][2 * C:]

    bf = lambda w: w.astype(jnp.bfloat16)
    row = lambda v: v.astype(jnp.float32).reshape(1, -1)
    weights = [bf(wq), row(bq), bf(wk), row(bk), bf(wv), row(bv),
               bf(p["w_proj"]), row(p["b_proj"]),
               bf(p["w_mlp1"]), row(p["b_mlp1"]),
               bf(p["w_mlp2"]), row(p["b_mlp2"])]

    out = pl.pallas_call(
        _fastervit_kernel,
        out_shape=jax.ShapeDtypeStruct((B, T, C), jnp.float32),
        grid=(B,),
        in_specs=[pl.BlockSpec((1, T, C), lambda b: (b, 0, 0))]
                 + [pl.BlockSpec(w.shape, lambda b: (0, 0)) for w in weights],
        out_specs=pl.BlockSpec((1, T, C), lambda b: (b, 0, 0)),
        compiler_params=pltpu.CompilerParams(dimension_semantics=("parallel",)),
    )(tok, *weights)
    return out.reshape(B, Hc, Wc, C)


# ----------------------------------------------------------------------------- #
# DiMP classifier: fused clf-conv + per-image correlation, gridded over batch.
# ----------------------------------------------------------------------------- #
def _clf_corr_kernel(te_ref, w_ref, b_ref, filt_ref, o_ref):
    # te_ref: (1, HW, C) bf16 ; filt_ref: (1, 1, C) f32 ; out: (1, HW, 1) f32
    y = jnp.dot(te_ref[0], w_ref[...], preferred_element_type=jnp.float32) + b_ref[...]
    y = jnp.maximum(y, 0.0)                                            # (HW, C)
    scores = jnp.sum(y * filt_ref[0], axis=-1, keepdims=True)          # (HW, 1)
    o_ref[...] = scores.reshape(1, -1, 1)


def classifier(train_feat_clf, test_feat_clf, train_bb, p):
    """Simplified DiMP classifier: 1x1 clf-feature conv, per-sequence filter built
    from pooled train features + bb modulation, correlation over the test features.
    TODO(synk): the real DiMP classifier runs an iterative steepest-descent filter
    optimizer; replaced by a closed-form pooled filter here."""
    n_train, seq = train_bb.shape[:2]
    B_test, Hc, Wc, Cf = test_feat_clf.shape
    n_test = B_test // seq
    HW = Hc * Wc

    # train-side 1x1 clf conv (fused bias + relu), pooled into per-sequence filter
    tr = pallas_matmul_fused(train_feat_clf.reshape(-1, Cf), p["w_clf"],
                             p["b_clf"], activation="relu")
    filt = tr.reshape(n_train, seq, Hc, Wc, Cf).mean(axis=(0, 2, 3))       # (seq, Cf)
    bb_mod = jnp.dot(train_bb.mean(axis=0), p["w_bb"])      # tiny GEMM stays in XLA
    filt = filt + bb_mod
    f_img = filt[jnp.arange(B_test) % seq].reshape(B_test, 1, Cf)          # (B, 1, Cf)

    te = test_feat_clf.reshape(B_test, HW, Cf).astype(jnp.bfloat16)
    # TODO(synk): at real resolutions emit the scores with HW (>=128) on the lane
    # axis for unmasked vst; at HW=64 the masked-store cost is negligible.
    scores = pl.pallas_call(
        _clf_corr_kernel,
        out_shape=jax.ShapeDtypeStruct((B_test, HW, 1), jnp.float32),
        grid=(B_test,),
        in_specs=[
            pl.BlockSpec((1, HW, Cf), lambda b: (b, 0, 0)),
            pl.BlockSpec((Cf, Cf), lambda b: (0, 0)),
            pl.BlockSpec((1, Cf), lambda b: (0, 0)),
            pl.BlockSpec((1, 1, Cf), lambda b: (b, 0, 0)),
        ],
        out_specs=pl.BlockSpec((1, HW, 1), lambda b: (b, 0, 0)),
        compiler_params=pltpu.CompilerParams(dimension_semantics=("parallel",)),
    )(te, p["w_clf"].astype(jnp.bfloat16),
      p["b_clf"].astype(jnp.float32).reshape(1, -1),
      f_img.astype(jnp.float32))
    return scores.reshape(n_test, seq, Hc, Wc)


# ----------------------------------------------------------------------------- #
# IoU regressor head: fused modulation + ReLU + IoU reduction, gridded over batch.
# ----------------------------------------------------------------------------- #
def _bbreg_head_kernel(mod_ref, te_ref, pe_ref, wi_ref, bi_ref, o_ref):
    # mod/te: (1, 1, D); pe: (1, P, D); wi: (1, D); bi: (1, 1); out: (1, P, 1)
    feat = jnp.maximum(mod_ref[0] * (te_ref[0] + pe_ref[0]), 0.0)       # (P, D)
    iou = jnp.sum(feat * wi_ref[...], axis=-1, keepdims=True) + bi_ref[0, 0]
    o_ref[...] = iou.reshape(1, -1, 1)


def bb_regressor(train_feats, test_feats, train_bb, proposals, p):
    """Simplified AtomIoUNet: pooled multi-layer features, train-side modulation,
    per-proposal encoding, IoU head.  Tiny GEMMs (w_mod, w_test, K=4 proposal
    encoding) stay in XLA; the per-proposal path is fused in a Pallas kernel."""
    n_train, seq = train_bb.shape[:2]
    n_test, _, P, _ = proposals.shape
    B = n_test * seq

    tr_vec = jnp.concatenate([f.mean(axis=(1, 2)) for f in train_feats], -1)
    tr_vec = tr_vec.reshape(n_train, seq, -1).mean(axis=0)                  # (seq, 48)
    bb_mean = train_bb.mean(axis=0)                                         # (seq, 4)
    mod_in = jnp.concatenate([tr_vec, bb_mean], axis=-1)                    # (seq, 52)
    mod = jax.nn.relu(jnp.dot(mod_in, p["w_mod"]) + p["b_mod"])             # (seq, 64)
    mod_img = mod[jnp.arange(B) % seq]                                      # (B, 64)
    D = mod_img.shape[-1]

    te_vec = jnp.concatenate([f.mean(axis=(1, 2)) for f in test_feats], -1)  # (B, 48)
    te_proj = jnp.dot(te_vec, p["w_test"]) + p["b_test"]                     # (B, 64)

    # K=4 proposal encoding: kept off the MXU (tiny GEMM in XLA).
    prop_flat = proposals.reshape(B * P, 4)
    prop_enc = (jnp.dot(prop_flat, p["w_prop"]) + p["b_prop"]).reshape(B, P, D)

    iou = pl.pallas_call(
        _bbreg_head_kernel,
        out_shape=jax.ShapeDtypeStruct((B, P, 1), jnp.float32),
        grid=(B,),
        in_specs=[
            pl.BlockSpec((1, 1, D), lambda b: (b, 0, 0)),
            pl.BlockSpec((1, 1, D), lambda b: (b, 0, 0)),
            pl.BlockSpec((1, P, D), lambda b: (b, 0, 0)),
            pl.BlockSpec((1, D), lambda b: (0, 0)),
            pl.BlockSpec((1, 1), lambda b: (0, 0)),
        ],
        out_specs=pl.BlockSpec((1, P, 1), lambda b: (b, 0, 0)),
        compiler_params=pltpu.CompilerParams(dimension_semantics=("parallel",)),
    )(mod_img.reshape(B, 1, D).astype(jnp.float32),
      te_proj.reshape(B, 1, D).astype(jnp.float32),
      prop_enc.astype(jnp.float32),
      p["w_iou"].reshape(1, -1).astype(jnp.float32),
      p["b_iou"].reshape(1, 1).astype(jnp.float32))
    return iou.reshape(n_test, seq, P)


# ----------------------------------------------------------------------------- #
# DiMPnet glue (faithful to the PyTorch forward)
# ----------------------------------------------------------------------------- #
class DiMPnetPallas:
    def __init__(self, params, classification_layer="layer3",
                 bb_regressor_layer=("layer2", "layer3")):
        self.params = params
        self.classification_layer = (
            [classification_layer] if isinstance(classification_layer, str)
            else list(classification_layer)
        )
        self.bb_regressor_layer = list(bb_regressor_layer)
        self.output_layers = sorted(
            list(set(self.classification_layer + self.bb_regressor_layer))
        )

    def extract_backbone_features(self, im, layers=None):
        if layers is None:
            layers = self.output_layers
        return backbone(im, layers, self.params["backbone"])

    def get_backbone_clf_feat(self, backbone_feat):
        feat = OrderedDict({l: backbone_feat[l] for l in self.classification_layer})
        if len(self.classification_layer) == 1:
            return feat[self.classification_layer[0]]
        return feat

    def get_backbone_bbreg_feat(self, backbone_feat):
        return [backbone_feat[l] for l in self.bb_regressor_layer]

    def forward(self, train_imgs, test_imgs, train_bb, test_proposals):
        assert train_imgs.ndim == 5 and test_imgs.ndim == 5, "Expect 5 dimensional inputs"
        train_feat = self.extract_backbone_features(
            train_imgs.reshape(-1, *train_imgs.shape[-3:]))
        test_feat = self.extract_backbone_features(
            test_imgs.reshape(-1, *test_imgs.shape[-3:]))

        train_feat_clf = self.get_backbone_clf_feat(train_feat)
        test_feat_clf = self.get_backbone_clf_feat(test_feat)
        test_feat_clf = fastervit_block(test_feat_clf, self.params["fastervit"])

        target_scores = classifier(
            train_feat_clf, test_feat_clf, train_bb, self.params["classifier"])

        train_feat_iou = self.get_backbone_bbreg_feat(train_feat)
        test_feat_iou = self.get_backbone_bbreg_feat(test_feat)
        iou_pred = bb_regressor(
            train_feat_iou, test_feat_iou, train_bb, test_proposals,
            self.params["bb_regressor"])
        return target_scores, iou_pred


# ----------------------------------------------------------------------------- #
# Deterministic parameter initialization
# ----------------------------------------------------------------------------- #
def init_params(key):
    keys = jax.random.split(key, 20)
    s = 0.05

    def nrm(k, shape):
        return (s * jax.random.normal(k, shape)).astype(jnp.float32)

    C2, C3, D = 16, 32, 32
    params = {
        "backbone": {
            "conv1_w": nrm(keys[0], (3, 3, 3, C2)),
            "conv1_b": jnp.zeros((C2,), jnp.float32),
            "conv2_w": nrm(keys[1], (3, 3, C2, C3)),
            "conv2_b": jnp.zeros((C3,), jnp.float32),
        },
        "fastervit": {
            "w_qkv": nrm(keys[2], (D, 3 * D)),
            "b_qkv": jnp.zeros((3 * D,), jnp.float32),
            "w_proj": nrm(keys[3], (D, D)),
            "b_proj": jnp.zeros((D,), jnp.float32),
            "w_mlp1": nrm(keys[4], (D, 2 * D)),
            "b_mlp1": jnp.zeros((2 * D,), jnp.float32),
            "w_mlp2": nrm(keys[5], (2 * D, D)),
            "b_mlp2": jnp.zeros((D,), jnp.float32),
        },
        "classifier": {
            "w_clf": nrm(keys[6], (C3, C3)),
            "b_clf": jnp.zeros((C3,), jnp.float32),
            "w_bb": nrm(keys[7], (4, C3)),
        },
        "bb_regressor": {
            "w_mod": nrm(keys[8], (C2 + C3 + 4, 64)),
            "b_mod": jnp.zeros((64,), jnp.float32),
            "w_test": nrm(keys[9], (C2 + C3, 64)),
            "b_test": jnp.zeros((64,), jnp.float32),
            "w_prop": nrm(keys[10], (4, 64)),
            "b_prop": jnp.zeros((64,), jnp.float32),
            "w_iou": nrm(keys[11], (64, 1)),
            "b_iou": jnp.zeros((1,), jnp.float32),
        },
    }
    return params


# ----------------------------------------------------------------------------- #
if __name__ == "__main__":
    key = jax.random.PRNGKey(0)
    k1, k2, k3, k4 = jax.random.split(key, 4)

    n_train, n_test, seq, H, W, P = 2, 2, 2, 32, 32, 8
    train_imgs = jax.random.normal(k1, (n_train, seq, 3, H, W), jnp.float32)
    test_imgs = jax.random.normal(k2, (n_test, seq, 3, H, W), jnp.float32)
    train_bb = jax.random.uniform(k3, (n_train, seq, 4), jnp.float32) * 10.0
    test_proposals = jax.random.uniform(k4, (n_test, seq, P, 4), jnp.float32) * 10.0

    params = init_params(jax.random.PRNGKey(42))
    net = DiMPnetPallas(params)

    @jax.jit
    def run(tr_i, te_i, tr_bb, te_pr):
        return net.forward(tr_i, te_i, tr_bb, te_pr)

    target_scores, iou_pred = run(train_imgs, test_imgs, train_bb, test_proposals)
    (target_scores, iou_pred) = jax.block_until_ready((target_scores, iou_pred))

    assert target_scores.shape == (n_test, seq, H // 4, W // 4), target_scores.shape
    assert iou_pred.shape == (n_test, seq, P), iou_pred.shape
    assert bool(jnp.all(jnp.isfinite(target_scores))) and bool(jnp.all(jnp.isfinite(iou_pred)))
    print("KERNEL_OK")
</pallas_src>

<mosaic_0001>
module attributes {stable_mosaic.version = 11 : i64} {
  func.func @_conv_s2d_kernel(%arg0: i32, %arg1: memref<1x17x17x12xbf16, #tpu.memory_space<vmem>>, %arg2: memref<4x12x16xbf16, #tpu.memory_space<vmem>>, %arg3: memref<1x16xf32, #tpu.memory_space<vmem>>, %arg4: memref<1x256x16xf32, #tpu.memory_space<vmem>>) attributes {dimension_semantics = [#tpu.dimension_semantics<parallel>], iteration_bounds = array<i64: 4>, scalar_prefetch = 0 : i64, scratch_operands = 0 : i64, tpu.core_type = #tpu.core_type<tc>, window_params = [{transform_indices = @transform_0, window_bounds = array<i64: 1, 17, 17, 12>}, {pipeline_mode = #tpu.pipeline_mode<synchronous>, transform_indices = @transform_1, window_bounds = array<i64: 4, 12, 16>}, {pipeline_mode = #tpu.pipeline_mode<synchronous>, transform_indices = @transform_2, window_bounds = array<i64: 1, 16>}, {transform_indices = @transform_3, window_bounds = array<i64: 1, 256, 16>}]} {
    %c0 = arith.constant 0 : index
    %c0_0 = arith.constant 0 : index
    %c0_1 = arith.constant 0 : index
    %c0_2 = arith.constant 0 : index
    %0 = vector.load %arg1[%c0, %c0_0, %c0_1, %c0_2] : memref<1x17x17x12xbf16, #tpu.memory_space<vmem>>, vector<1x17x17x12xbf16>
    %1 = vector.shape_cast %0 : vector<1x17x17x12xbf16> to vector<17x17x12xbf16>
    %2 = arith.extf %1 : vector<17x17x12xbf16> to vector<17x17x12xf32>
    %3 = vector.extract_strided_slice %2 {offsets = [0, 0, 0], sizes = [16, 16, 12], strides = [1, 1, 1]} : vector<17x17x12xf32> to vector<16x16x12xf32>
    %4 = vector.shape_cast %3 : vector<16x16x12xf32> to vector<256x12xf32>
    %5 = arith.truncf %4 : vector<256x12xf32> to vector<256x12xbf16>
    %c0_3 = arith.constant 0 : index
    %c0_4 = arith.constant 0 : index
    %c0_5 = arith.constant 0 : index
    %6 = vector.load %arg2[%c0_3, %c0_4, %c0_5] : memref<4x12x16xbf16, #tpu.memory_space<vmem>>, vector<1x12x16xbf16>
    %7 = vector.shape_cast %6 : vector<1x12x16xbf16> to vector<12x16xbf16>
    %cst = arith.constant dense<0.000000e+00> : vector<256x16xf32>
    %8 = tpu.matmul %5, %7, %cst {dimension_numbers = #tpu.dot_dimension_numbers<[1], [0], [0], [1], [0, 0, 1, 1], [], []>} : vector<256x12xbf16>, vector<12x16xbf16>, vector<256x16xf32> -> vector<256x16xf32>
    %9 = vector.extract_strided_slice %2 {offsets = [0, 1, 0], sizes = [16, 16, 12], strides = [1, 1, 1]} : vector<17x17x12xf32> to vector<16x16x12xf32>
    %10 = vector.shape_cast %9 : vector<16x16x12xf32> to vector<256x12xf32>
    %11 = arith.truncf %10 : vector<256x12xf32> to vector<256x12xbf16>
    %c1 = arith.constant 1 : index
    %c0_6 = arith.constant 0 : index
    %c0_7 = arith.constant 0 : index
    %12 = vector.load %arg2[%c1, %c0_6, %c0_7] : memref<4x12x16xbf16, #tpu.memory_space<vmem>>, vector<1x12x16xbf16>
    %13 = vector.shape_cast %12 : vector<1x12x16xbf16> to vector<12x16xbf16>
    %cst_8 = arith.constant dense<0.000000e+00> : vector<256x16xf32>
    %14 = tpu.matmul %11, %13, %cst_8 {dimension_numbers = #tpu.dot_dimension_numbers<[1], [0], [0], [1], [0, 0, 1, 1], [], []>} : vector<256x12xbf16>, vector<12x16xbf16>, vector<256x16xf32> -> vector<256x16xf32>
    %15 = arith.addf %8, %14 : vector<256x16xf32>
    %16 = vector.extract_strided_slice %2 {offsets = [1, 0, 0], sizes = [16, 16, 12], strides = [1, 1, 1]} : vector<17x17x12xf32> to vector<16x16x12xf32>
    %17 = vector.shape_cast %16 : vector<16x16x12xf32> to vector<256x12xf32>
    %18 = arith.truncf %17 : vector<256x12xf32> to vector<256x12xbf16>
    %c2 = arith.constant 2 : index
    %c0_9 = arith.constant 0 : index
    %c0_10 = arith.constant 0 : index
    %19 = vector.load %arg2[%c2, %c0_9, %c0_10] : memref<4x12x16xbf16, #tpu.memory_space<vmem>>, vector<1x12x16xbf16>
    %20 = vector.shape_cast %19 : vector<1x12x16xbf16> to vector<12x16xbf16>
    %cst_11 = arith.constant dense<0.000000e+00> : vector<256x16xf32>
    %21 = tpu.matmul %18, %20, %cst_11 {dimension_numbers = #tpu.dot_dimension_numbers<[1], [0], [0], [1], [0, 0, 1, 1], [], []>} : vector<256x12xbf16>, vector<12x16xbf16>, vector<256x16xf32> -> vector<256x16xf32>
    %22 = arith.addf %15, %21 : vector<256x16xf32>
    %23 = vector.extract_strided_slice %2 {offsets = [1, 1, 0], sizes = [16, 16, 12], strides = [1, 1, 1]} : vector<17x17x12xf32> to vector<16x16x12xf32>
    %24 = vector.shape_cast %23 : vector<16x16x12xf32> to vector<256x12xf32>
    %25 = arith.truncf %24 : vector<256x12xf32> to vector<256x12xbf16>
    %c3 = arith.constant 3 : index
    %c0_12 = arith.constant 0 : index
    %c0_13 = arith.constant 0 : index
    %26 = vector.load %arg2[%c3, %c0_12, %c0_13] : memref<4x12x16xbf16, #tpu.memory_space<vmem>>, vector<1x12x16xbf16>
    %27 = vector.shape_cast %26 : vector<1x12x16xbf16> to vector<12x16xbf16>
    %cst_14 = arith.constant dense<0.000000e+00> : vector<256x16xf32>
    %28 = tpu.matmul %25, %27, %cst_14 {dimension_numbers = #tpu.dot_dimension_numbers<[1], [0], [0], [1], [0, 0, 1, 1], [], []>} : vector<256x12xbf16>, vector<12x16xbf16>, vector<256x16xf32> -> vector<256x16xf32>
    %29 = arith.addf %22, %28 : vector<256x16xf32>
    %c0_15 = arith.constant 0 : index
    %c0_16 = arith.constant 0 : index
    %30 = vector.load %arg3[%c0_15, %c0_16] : memref<1x16xf32, #tpu.memory_space<vmem>>, vector<1x16xf32>
    %31 = vector.broadcast %30 : vector<1x16xf32> to vector<256x16xf32>
    %32 = arith.addf %29, %31 : vector<256x16xf32>
    %cst_17 = arith.constant 0.000000e+00 : f32
    %33 = vector.broadcast %cst_17 : f32 to vector<256x16xf32>
    %34 = arith.maximumf %32, %33 : vector<256x16xf32>
    %c0_18 = arith.constant 0 : index
    %c0_19 = arith.constant 0 : index
    %c0_20 = arith.constant 0 : index
    %35 = vector.load %arg4[%c0_18, %c0_19, %c0_20] : memref<1x256x16xf32, #tpu.memory_space<vmem>>, vector<1x256x16xf32>
    %36 = vector.shape_cast %35 : vector<1x256x16xf32> to vector<256x16xf32>
    %37 = vector.shape_cast %34 : vector<256x16xf32> to vector<1x256x16xf32>
    tpu.vector_store %arg4[%c0_18, %c0_19, %c0_20], %37 {strides = array<i32>} : memref<1x256x16xf32, #tpu.memory_space<vmem>>, vector<1x256x16xf32>,
    return
  }
  func.func @transform_0(%arg0: i32) -> (i32, i32, i32, i32) {
    %c0_i32 = arith.constant 0 : i32
    %c0_i32_0 = arith.constant 0 : i32
    %c0_i32_1 = arith.constant 0 : i32
    %c0_i32_2 = arith.constant 0 : i32
    return %arg0, %c0_i32, %c0_i32_0, %c0_i32_1 : i32, i32, i32, i32
  }
  func.func @transform_1(%arg0: i32) -> (i32, i32, i32) {
    %c0_i32 = arith.constant 0 : i32
    %c0_i32_0 = arith.constant 0 : i32
    %c0_i32_1 = arith.constant 0 : i32
    %c0_i32_2 = arith.constant 0 : i32
    return %c0_i32, %c0_i32_0, %c0_i32_1 : i32, i32, i32
  }
  func.func @transform_2(%arg0: i32) -> (i32, i32) {
    %c0_i32 = arith.constant 0 : i32
    %c0_i32_0 = arith.constant 0 : i32
    %c0_i32_1 = arith.constant 0 : i32
    return %c0_i32, %c0_i32_0 : i32, i32
  }
  func.func @transform_3(%arg0: i32) -> (i32, i32, i32) {
    %c0_i32 = arith.constant 0 : i32
    %c0_i32_0 = arith.constant 0 : i32
    %c0_i32_1 = arith.constant 0 : i32
    return %arg0, %c0_i32, %c0_i32_0 : i32, i32, i32
  }
}

module attributes {stable_mosaic.version = 11 : i64} {
  func.func @_conv_s2d_kernel(%arg0: i32, %arg1: memref<1x9x9x64xbf16, #tpu.memory_space<vmem>>, %arg2: memref<4x64x32xbf16, #tpu.memory_space<vmem>>, %arg3: memref<1x32xf32, #tpu.memory_space<vmem>>, %arg4: memref<1x64x32xf32, #tpu.memory_space<vmem>>) attributes {dimension_semantics = [#tpu.dimension_semantics<parallel>], iteration_bounds = array<i64: 4>, scalar_prefetch = 0 : i64, scratch_operands = 0 : i64, tpu.core_type = #tpu.core_type<tc>, window_params = [{transform_indices = @transform_0, window_bounds = array<i64: 1, 9, 9, 64>}, {pipeline_mode = #tpu.pipeline_mode<synchronous>, transform_indices = @transform_1, window_bounds = array<i64: 4, 64, 32>}, {pipeline_mode = #tpu.pipeline_mode<synchronous>, transform_indices = @transform_2, window_bounds = array<i64: 1, 32>}, {transform_indices = @transform_3, window_bounds = array<i64: 1, 64, 32>}]} {
    %c0 = arith.constant 0 : index
    %c0_0 = arith.constant 0 : index
    %c0_1 = arith.constant 0 : index
    %c0_2 = arith.constant 0 : index
    %0 = vector.load %arg1[%c0, %c0_0, %c0_1, %c0_2] : memref<1x9x9x64xbf16, #tpu.memory_space<vmem>>, vector<1x9x9x64xbf16>
    %1 = vector.shape_cast %0 : vector<1x9x9x64xbf16> to vector<9x9x64xbf16>
    %2 = arith.extf %1 : vector<9x9x64xbf16> to vector<9x9x64xf32>
    %3 = vector.extract_strided_slice %2 {offsets = [0, 0, 0], sizes = [8, 8, 64], strides = [1, 1, 1]} : vector<9x9x64xf32> to vector<8x8x64xf32>
    %4 = vector.shape_cast %3 : vector<8x8x64xf32> to vector<64x64xf32>
    %5 = arith.truncf %4 : vector<64x64xf32> to vector<64x64xbf16>
    %c0_3 = arith.constant 0 : index
    %c0_4 = arith.constant 0 : index
    %c0_5 = arith.constant 0 : index
    %6 = vector.load %arg2[%c0_3, %c0_4, %c0_5] : memref<4x64x32xbf16, #tpu.memory_space<vmem>>, vector<1x64x32xbf16>
    %7 = vector.shape_cast %6 : vector<1x64x32xbf16> to vector<64x32xbf16>
    %cst = arith.constant dense<0.000000e+00> : vector<64x32xf32>
    %8 = tpu.matmul %5, %7, %cst {dimension_numbers = #tpu.dot_dimension_numbers<[1], [0], [0], [1], [0, 0, 1, 1], [], []>} : vector<64x64xbf16>, vector<64x32xbf16>, vector<64x32xf32> -> vector<64x32xf32>
    %9 = vector.extract_strided_slice %2 {offsets = [0, 1, 0], sizes = [8, 8, 64], strides = [1, 1, 1]} : vector<9x9x64xf32> to vector<8x8x64xf32>
    %10 = vector.shape_cast %9 : vector<8x8x64xf32> to vector<64x64xf32>
    %11 = arith.truncf %10 : vector<64x64xf32> to vector<64x64xbf16>
    %c1 = arith.constant 1 : index
    %c0_6 = arith.constant 0 : index
    %c0_7 = arith.constant 0 : index
    %12 = vector.load %arg2[%c1, %c0_6, %c0_7] : memref<4x64x32xbf16, #tpu.memory_space<vmem>>, vector<1x64x32xbf16>
    %13 = vector.shape_cast %12 : vector<1x64x32xbf16> to vector<64x32xbf16>
    %cst_8 = arith.constant dense<0.000000e+00> : vector<64x32xf32>
    %14 = tpu.matmul %11, %13, %cst_8 {dimension_numbers = #tpu.dot_dimension_numbers<[1], [0], [0], [1], [0, 0, 1, 1], [], []>} : vector<64x64xbf16>, vector<64x32xbf16>, vector<64x32xf32> -> vector<64x32xf32>
    %15 = arith.addf %8, %14 : vector<64x32xf32>
    %16 = vector.extract_strided_slice %2 {offsets = [1, 0, 0], sizes = [8, 8, 64], strides = [1, 1, 1]} : vector<9x9x64xf32> to vector<8x8x64xf32>
    %17 = vector.shape_cast %16 : vector<8x8x64xf32> to vector<64x64xf32>
    %18 = arith.truncf %17 : vector<64x64xf32> to vector<64x64xbf16>
    %c2 = arith.constant 2 : index
    %c0_9 = arith.constant 0 : index
    %c0_10 = arith.constant 0 : index
    %19 = vector.load %arg2[%c2, %c0_9, %c0_10] : memref<4x64x32xbf16, #tpu.memory_space<vmem>>, vector<1x64x32xbf16>
    %20 = vector.shape_cast %19 : vector<1x64x32xbf16> to vector<64x32xbf16>
    %cst_11 = arith.constant dense<0.000000e+00> : vector<64x32xf32>
    %21 = tpu.matmul %18, %20, %cst_11 {dimension_numbers = #tpu.dot_dimension_numbers<[1], [0], [0], [1], [0, 0, 1, 1], [], []>} : vector<64x64xbf16>, vector<64x32xbf16>, vector<64x32xf32> -> vector<64x32xf32>
    %22 = arith.addf %15, %21 : vector<64x32xf32>
    %23 = vector.extract_strided_slice %2 {offsets = [1, 1, 0], sizes = [8, 8, 64], strides = [1, 1, 1]} : vector<9x9x64xf32> to vector<8x8x64xf32>
    %24 = vector.shape_cast %23 : vector<8x8x64xf32> to vector<64x64xf32>
    %25 = arith.truncf %24 : vector<64x64xf32> to vector<64x64xbf16>
    %c3 = arith.constant 3 : index
    %c0_12 = arith.constant 0 : index
    %c0_13 = arith.constant 0 : index
    %26 = vector.load %arg2[%c3, %c0_12, %c0_13] : memref<4x64x32xbf16, #tpu.memory_space<vmem>>, vector<1x64x32xbf16>
    %27 = vector.shape_cast %26 : vector<1x64x32xbf16> to vector<64x32xbf16>
    %cst_14 = arith.constant dense<0.000000e+00> : vector<64x32xf32>
    %28 = tpu.matmul %25, %27, %cst_14 {dimension_numbers = #tpu.dot_dimension_numbers<[1], [0], [0], [1], [0, 0, 1, 1], [], []>} : vector<64x64xbf16>, vector<64x32xbf16>, vector<64x32xf32> -> vector<64x32xf32>
    %29 = arith.addf %22, %28 : vector<64x32xf32>
    %c0_15 = arith.constant 0 : index
    %c0_16 = arith.constant 0 : index
    %30 = vector.load %arg3[%c0_15, %c0_16] : memref<1x32xf32, #tpu.memory_space<vmem>>, vector<1x32xf32>
    %31 = vector.broadcast %30 : vector<1x32xf32> to vector<64x32xf32>
    %32 = arith.addf %29, %31 : vector<64x32xf32>
    %cst_17 = arith.constant 0.000000e+00 : f32
    %33 = vector.broadcast %cst_17 : f32 to vector<64x32xf32>
    %34 = arith.maximumf %32, %33 : vector<64x32xf32>
    %c0_18 = arith.constant 0 : index
    %c0_19 = arith.constant 0 : index
    %c0_20 = arith.constant 0 : index
    %35 = vector.load %arg4[%c0_18, %c0_19, %c0_20] : memref<1x64x32xf32, #tpu.memory_space<vmem>>, vector<1x64x32xf32>
    %36 = vector.shape_cast %35 : vector<1x64x32xf32> to vector<64x32xf32>
    %37 = vector.shape_cast %34 : vector<64x32xf32> to vector<1x64x32xf32>
    tpu.vector_store %arg4[%c0_18, %c0_19, %c0_20], %37 {strides = array<i32>} : memref<1x64x32xf32, #tpu.memory_space<vmem>>, vector<1x64x32xf32>,
    return
  }
  func.func @transform_0(%arg0: i32) -> (i32, i32, i32, i32) {
    %c0_i32 = arith.constant 0 : i32
    %c0_i32_0 = arith.constant 0 : i32
    %c0_i32_1 = arith.constant 0 : i32
    %c0_i32_2 = arith.constant 0 : i32
    return %arg0, %c0_i32, %c0_i32_0, %c0_i32_1 : i32, i32, i32, i32
  }
  func.func @transform_1(%arg0: i32) -> (i32, i32, i32) {
    %c0_i32 = arith.constant 0 : i32
    %c0_i32_0 = arith.constant 0 : i32
    %c0_i32_1 = arith.constant 0 : i32
    %c0_i32_2 = arith.constant 0 : i32
    return %c0_i32, %c0_i32_0, %c0_i32_1 : i32, i32, i32
  }
  func.func @transform_2(%arg0: i32) -> (i32, i32) {
    %c0_i32 = arith.constant 0 : i32
    %c0_i32_0 = arith.constant 0 : i32
    %c0_i32_1 = arith.constant 0 : i32
    return %c0_i32, %c0_i32_0 : i32, i32
  }
  func.func @transform_3(%arg0: i32) -> (i32, i32, i32) {
    %c0_i32 = arith.constant 0 : i32
    %c0_i32_0 = arith.constant 0 : i32
    %c0_i32_1 = arith.constant 0 : i32
    return %arg0, %c0_i32, %c0_i32_0 : i32, i32, i32
  }
}

module attributes {stable_mosaic.version = 11 : i64} {
  func.func @_matmul_kernel(%arg0: i32, %arg1: i32, %arg2: i32, %arg3: memref<256x32xbf16, #tpu.memory_space<vmem>>, %arg4: memref<32x32xbf16, #tpu.memory_space<vmem>>, %arg5: memref<1x32xf32, #tpu.memory_space<vmem>>, %arg6: memref<256x32xf32, #tpu.memory_space<vmem>>) attributes {dimension_semantics = [#tpu.dimension_semantics<parallel>, #tpu.dimension_semantics<parallel>, #tpu.dimension_semantics<arbitrary>], iteration_bounds = array<i64: 1, 1, 1>, scalar_prefetch = 0 : i64, scratch_operands = 0 : i64, tpu.core_type = #tpu.core_type<tc>, window_params = [{transform_indices = @transform_0, window_bounds = array<i64: 256, 32>}, {transform_indices = @transform_1, window_bounds = array<i64: 32, 32>}, {transform_indices = @transform_2, window_bounds = array<i64: 1, 32>}, {transform_indices = @transform_3, window_bounds = array<i64: 256, 32>}]} {
    %c0_i32 = arith.constant 0 : i32
    %0 = arith.cmpi eq, %arg2, %c0_i32 : i32
    %1 = arith.extui %0 : i1 to i32
    %c0_i32_0 = arith.constant 0 : i32
    %2 = arith.cmpi ne, %1, %c0_i32_0 : i32
    scf.if %2 {
      %cst_10 = arith.constant 0.000000e+00 : f32
      %12 = vector.broadcast %cst_10 : f32 to vector<256x32xf32>
      %c0_11 = arith.constant 0 : index
      %c0_12 = arith.constant 0 : index
      %13 = vector.load %arg6[%c0_11, %c0_12] : memref<256x32xf32, #tpu.memory_space<vmem>>, vector<256x32xf32>
      tpu.vector_store %arg6[%c0_11, %c0_12], %12 {strides = array<i32>} : memref<256x32xf32, #tpu.memory_space<vmem>>, vector<256x32xf32>,
    } else {
    }
    %c0 = arith.constant 0 : index
    %c0_1 = arith.constant 0 : index
    %3 = vector.load %arg6[%c0, %c0_1] : memref<256x32xf32, #tpu.memory_space<vmem>>, vector<256x32xf32>
    %c0_2 = arith.constant 0 : index
    %c0_3 = arith.constant 0 : index
    %4 = vector.load %arg3[%c0_2, %c0_3] : memref<256x32xbf16, #tpu.memory_space<vmem>>, vector<256x32xbf16>
    %c0_4 = arith.constant 0 : index
    %c0_5 = arith.constant 0 : index
    %5 = vector.load %arg4[%c0_4, %c0_5] : memref<32x32xbf16, #tpu.memory_space<vmem>>, vector<32x32xbf16>
    %cst = arith.constant dense<0.000000e+00> : vector<256x32xf32>
    %6 = tpu.matmul %4, %5, %cst {dimension_numbers = #tpu.dot_dimension_numbers<[1], [0], [0], [1], [0, 0, 1, 1], [], []>} : vector<256x32xbf16>, vector<32x32xbf16>, vector<256x32xf32> -> vector<256x32xf32>
    %7 = arith.addf %3, %6 : vector<256x32xf32>
    %c0_6 = arith.constant 0 : index
    %c0_7 = arith.constant 0 : index
    %8 = vector.load %arg6[%c0_6, %c0_7] : memref<256x32xf32, #tpu.memory_space<vmem>>, vector<256x32xf32>
    tpu.vector_store %arg6[%c0_6, %c0_7], %7 {strides = array<i32>} : memref<256x32xf32, #tpu.memory_space<vmem>>, vector<256x32xf32>,
    %c0_i32_8 = arith.constant 0 : i32
    %9 = arith.cmpi eq, %arg2, %c0_i32_8 : i32
    %10 = arith.extui %9 : i1 to i32
    %c0_i32_9 = arith.constant 0 : i32
    %11 = arith.cmpi ne, %10, %c0_i32_9 : i32
    scf.if %11 {
      %c0_10 = arith.constant 0 : index
      %c0_11 = arith.constant 0 : index
      %12 = vector.load %arg6[%c0_10, %c0_11] : memref<256x32xf32, #tpu.memory_space<vmem>>, vector<256x32xf32>
      %c0_12 = arith.constant 0 : index
      %c0_13 = arith.constant 0 : index
      %13 = vector.load %arg5[%c0_12, %c0_13] : memref<1x32xf32, #tpu.memory_space<vmem>>, vector<1x32xf32>
      %14 = vector.broadcast %13 : vector<1x32xf32> to vector<256x32xf32>
      %15 = arith.addf %12, %14 : vector<256x32xf32>
      %cst_14 = arith.constant 0.000000e+00 : f32
      %16 = vector.broadcast %cst_14 : f32 to vector<256x32xf32>
      %17 = arith.maximumf %15, %16 : vector<256x32xf32>
      %c0_15 = arith.constant 0 : index
      %c0_16 = arith.constant 0 : index
      %18 = vector.load %arg6[%c0_15, %c0_16] : memref<256x32xf32, #tpu.memory_space<vmem>>, vector<256x32xf32>
      tpu.vector_store %arg6[%c0_15, %c0_16], %17 {strides = array<i32>} : memref<256x32xf32, #tpu.memory_space<vmem>>, vector<256x32xf32>,
    } else {
    }
    return
  }
  func.func @transform_0(%arg0: i32, %arg1: i32, %arg2: i32) -> (i32, i32) {
    %c0_i32 = arith.constant 0 : i32
    return %arg0, %arg2 : i32, i32
  }
  func.func @transform_1(%arg0: i32, %arg1: i32, %arg2: i32) -> (i32, i32) {
    %c0_i32 = arith.constant 0 : i32
    return %arg2, %arg1 : i32, i32
  }
  func.func @transform_2(%arg0: i32, %arg1: i32, %arg2: i32) -> (i32, i32) {
    %c0_i32 = arith.constant 0 : i32
    %c0_i32_0 = arith.constant 0 : i32
    return %c0_i32, %arg1 : i32, i32
  }
  func.func @transform_3(%arg0: i32, %arg1: i32, %arg2: i32) -> (i32, i32) {
    %c0_i32 = arith.constant 0 : i32
    return %arg0, %arg1 : i32, i32
  }
}

module attributes {stable_mosaic.version = 11 : i64} {
  func.func @_fastervit_kernel(%arg0: i32, %arg1: memref<1x64x32xf32, #tpu.memory_space<vmem>>, %arg2: memref<32x32xbf16, #tpu.memory_space<vmem>>, %arg3: memref<1x32xf32, #tpu.memory_space<vmem>>, %arg4: memref<32x32xbf16, #tpu.memory_space<vmem>>, %arg5: memref<1x32xf32, #tpu.memory_space<vmem>>, %arg6: memref<32x32xbf16, #tpu.memory_space<vmem>>, %arg7: memref<1x32xf32, #tpu.memory_space<vmem>>, %arg8: memref<32x32xbf16, #tpu.memory_space<vmem>>, %arg9: memref<1x32xf32, #tpu.memory_space<vmem>>, %arg10: memref<32x64xbf16, #tpu.memory_space<vmem>>, %arg11: memref<1x64xf32, #tpu.memory_space<vmem>>, %arg12: memref<64x32xbf16, #tpu.memory_space<vmem>>, %arg13: memref<1x32xf32, #tpu.memory_space<vmem>>, %arg14: memref<1x64x32xf32, #tpu.memory_space<vmem>>) attributes {dimension_semantics = [#tpu.dimension_semantics<parallel>], iteration_bounds = array<i64: 4>, scalar_prefetch = 0 : i64, scratch_operands = 0 : i64, tpu.core_type = #tpu.core_type<tc>, window_params = [{transform_indices = @transform_0, window_bounds = array<i64: 1, 64, 32>}, {pipeline_mode = #tpu.pipeline_mode<synchronous>, transform_indices = @transform_1, window_bounds = array<i64: 32, 32>}, {pipeline_mode = #tpu.pipeline_mode<synchronous>, transform_indices = @transform_2, window_bounds = array<i64: 1, 32>}, {pipeline_mode = #tpu.pipeline_mode<synchronous>, transform_indices = @transform_3, window_bounds = array<i64: 32, 32>}, {pipeline_mode = #tpu.pipeline_mode<synchronous>, transform_indices = @transform_4, window_bounds = array<i64: 1, 32>}, {pipeline_mode = #tpu.pipeline_mode<synchronous>, transform_indices = @transform_5, window_bounds = array<i64: 32, 32>}, {pipeline_mode = #tpu.pipeline_mode<synchronous>, transform_indices = @transform_6, window_bounds = array<i64: 1, 32>}, {pipeline_mode = #tpu.pipeline_mode<synchronous>, transform_indices = @transform_7, window_bounds = array<i64: 32, 32>}, {pipeline_mode = #tpu.pipeline_mode<synchronous>, transform_indices = @transform_8, window_bounds = array<i64: 1, 32>}, {pipeline_mode = #tpu.pipeline_mode<synchronous>, transform_indices = @transform_9, window_bounds = array<i64: 32, 64>}, {pipeline_mode = #tpu.pipeline_mode<synchronous>, transform_indices = @transform_10, window_bounds = array<i64: 1, 64>}, {pipeline_mode = #tpu.pipeline_mode<synchronous>, transform_indices = @transform_11, window_bounds = array<i64: 64, 32>}, {pipeline_mode = #tpu.pipeline_mode<synchronous>, transform_indices = @transform_12, window_bounds = array<i64: 1, 32>}, {transform_indices = @transform_13, window_bounds = array<i64: 1, 64, 32>}]} {
    %c0 = arith.constant 0 : index
    %c0_0 = arith.constant 0 : index
    %c0_1 = arith.constant 0 : index
    %0 = vector.load %arg1[%c0, %c0_0, %c0_1] : memref<1x64x32xf32, #tpu.memory_space<vmem>>, vector<1x64x32xf32>
    %1 = vector.shape_cast %0 : vector<1x64x32xf32> to vector<64x32xf32>
    %2 = arith.truncf %1 : vector<64x32xf32> to vector<64x32xbf16>
    %c0_2 = arith.constant 0 : index
    %c0_3 = arith.constant 0 : index
    %3 = vector.load %arg2[%c0_2, %c0_3] : memref<32x32xbf16, #tpu.memory_space<vmem>>, vector<32x32xbf16>
    %cst = arith.constant dense<0.000000e+00> : vector<64x32xf32>
    %4 = tpu.matmul %2, %3, %cst {dimension_numbers = #tpu.dot_dimension_numbers<[1], [0], [0], [1], [0, 0, 1, 1], [], []>} : vector<64x32xbf16>, vector<32x32xbf16>, vector<64x32xf32> -> vector<64x32xf32>
    %c0_4 = arith.constant 0 : index
    %c0_5 = arith.constant 0 : index
    %5 = vector.load %arg3[%c0_4, %c0_5] : memref<1x32xf32, #tpu.memory_space<vmem>>, vector<1x32xf32>
    %6 = vector.broadcast %5 : vector<1x32xf32> to vector<64x32xf32>
    %7 = arith.addf %4, %6 : vector<64x32xf32>
    %c0_6 = arith.constant 0 : index
    %c0_7 = arith.constant 0 : index
    %8 = vector.load %arg4[%c0_6, %c0_7] : memref<32x32xbf16, #tpu.memory_space<vmem>>, vector<32x32xbf16>
    %cst_8 = arith.constant dense<0.000000e+00> : vector<64x32xf32>
    %9 = tpu.matmul %2, %8, %cst_8 {dimension_numbers = #tpu.dot_dimension_numbers<[1], [0], [0], [1], [0, 0, 1, 1], [], []>} : vector<64x32xbf16>, vector<32x32xbf16>, vector<64x32xf32> -> vector<64x32xf32>
    %c0_9 = arith.constant 0 : index
    %c0_10 = arith.constant 0 : index
    %10 = vector.load %arg5[%c0_9, %c0_10] : memref<1x32xf32, #tpu.memory_space<vmem>>, vector<1x32xf32>
    %11 = vector.broadcast %10 : vector<1x32xf32> to vector<64x32xf32>
    %12 = arith.addf %9, %11 : vector<64x32xf32>
    %c0_11 = arith.constant 0 : index
    %c0_12 = arith.constant 0 : index
    %13 = vector.load %arg6[%c0_11, %c0_12] : memref<32x32xbf16, #tpu.memory_space<vmem>>, vector<32x32xbf16>
    %cst_13 = arith.constant dense<0.000000e+00> : vector<64x32xf32>
    %14 = tpu.matmul %2, %13, %cst_13 {dimension_numbers = #tpu.dot_dimension_numbers<[1], [0], [0], [1], [0, 0, 1, 1], [], []>} : vector<64x32xbf16>, vector<32x32xbf16>, vector<64x32xf32> -> vector<64x32xf32>
    %c0_14 = arith.constant 0 : index
    %c0_15 = arith.constant 0 : index
    %15 = vector.load %arg7[%c0_14, %c0_15] : memref<1x32xf32, #tpu.memory_space<vmem>>, vector<1x32xf32>
    %16 = vector.broadcast %15 : vector<1x32xf32> to vector<64x32xf32>
    %17 = arith.addf %14, %16 : vector<64x32xf32>
    %18 = arith.truncf %7 : vector<64x32xf32> to vector<64x32xbf16>
    %19 = arith.truncf %12 : vector<64x32xf32> to vector<64x32xbf16>
    %cst_16 = arith.constant dense<0.000000e+00> : vector<64x64xf32>
    %20 = tpu.matmul %18, %19, %cst_16 {dimension_numbers = #tpu.dot_dimension_numbers<[1], [1], [0], [0], [0, 0, 1, 0], [], []>} : vector<64x32xbf16>, vector<64x32xbf16>, vector<64x64xf32> -> vector<64x64xf32>
    %cst_17 = arith.constant 0.176776692 : f32
    %21 = vector.broadcast %cst_17 : f32 to vector<64x64xf32>
    %22 = arith.mulf %20, %21 : vector<64x64xf32>
    %cst_18 = arith.constant dense<0xFF800000> : vector<64xf32>
    %23 = vector.multi_reduction <maximumf>, %22, %cst_18 [1] : vector<64x64xf32> to vector<64xf32>
    %24 = vector.shape_cast %23 : vector<64xf32> to vector<64x1xf32>
    %25 = vector.broadcast %24 : vector<64x1xf32> to vector<64x64xf32>
    %26 = arith.subf %22, %25 : vector<64x64xf32>
    %27 = math.exp %26 : vector<64x64xf32>
    %cst_19 = arith.constant dense<0.000000e+00> : vector<64xf32>
    %28 = vector.multi_reduction <add>, %27, %cst_19 [1] : vector<64x64xf32> to vector<64xf32>
    %29 = vector.shape_cast %28 : vector<64xf32> to vector<64x1xf32>
    %30 = tpu.reciprocal %29 {approx = true} : vector<64x1xf32> -> vector<64x1xf32>
    %31 = vector.broadcast %30 : vector<64x1xf32> to vector<64x64xf32>
    %32 = arith.mulf %27, %31 : vector<64x64xf32>
    %33 = arith.truncf %32 : vector<64x64xf32> to vector<64x64xbf16>
    %34 = arith.truncf %17 : vector<64x32xf32> to vector<64x32xbf16>
    %cst_20 = arith.constant dense<0.000000e+00> : vector<64x32xf32>
    %35 = tpu.matmul %33, %34, %cst_20 {dimension_numbers = #tpu.dot_dimension_numbers<[1], [0], [0], [1], [0, 0, 1, 1], [], []>} : vector<64x64xbf16>, vector<64x32xbf16>, vector<64x32xf32> -> vector<64x32xf32>
    %36 = arith.truncf %35 : vector<64x32xf32> to vector<64x32xbf16>
    %c0_21 = arith.constant 0 : index
    %c0_22 = arith.constant 0 : index
    %37 = vector.load %arg8[%c0_21, %c0_22] : memref<32x32xbf16, #tpu.memory_space<vmem>>, vector<32x32xbf16>
    %cst_23 = arith.constant dense<0.000000e+00> : vector<64x32xf32>
    %38 = tpu.matmul %36, %37, %cst_23 {dimension_numbers = #tpu.dot_dimension_numbers<[1], [0], [0], [1], [0, 0, 1, 1], [], []>} : vector<64x32xbf16>, vector<32x32xbf16>, vector<64x32xf32> -> vector<64x32xf32>
    %c0_24 = arith.constant 0 : index
    %c0_25 = arith.constant 0 : index
    %39 = vector.load %arg9[%c0_24, %c0_25] : memref<1x32xf32, #tpu.memory_space<vmem>>, vector<1x32xf32>
    %40 = vector.broadcast %39 : vector<1x32xf32> to vector<64x32xf32>
    %41 = arith.addf %38, %40 : vector<64x32xf32>
    %42 = arith.addf %1, %41 : vector<64x32xf32>
    %43 = arith.truncf %42 : vector<64x32xf32> to vector<64x32xbf16>
    %c0_26 = arith.constant 0 : index
    %c0_27 = arith.constant 0 : index
    %44 = vector.load %arg10[%c0_26, %c0_27] : memref<32x64xbf16, #tpu.memory_space<vmem>>, vector<32x64xbf16>
    %cst_28 = arith.constant dense<0.000000e+00> : vector<64x64xf32>
    %45 = tpu.matmul %43, %44, %cst_28 {dimension_numbers = #tpu.dot_dimension_numbers<[1], [0], [0], [1], [0, 0, 1, 1], [], []>} : vector<64x32xbf16>, vector<32x64xbf16>, vector<64x64xf32> -> vector<64x64xf32>
    %c0_29 = arith.constant 0 : index
    %c0_30 = arith.constant 0 : index
    %46 = vector.load %arg11[%c0_29, %c0_30] : memref<1x64xf32, #tpu.memory_space<vmem>>, vector<1x64xf32>
    %47 = vector.broadcast %46 : vector<1x64xf32> to vector<64x64xf32>
    %48 = arith.addf %45, %47 : vector<64x64xf32>
    %49 = arith.mulf %48, %48 : vector<64x64xf32>
    %50 = arith.mulf %48, %49 : vector<64x64xf32>
    %cst_31 = arith.constant 4.471500e-02 : f32
    %51 = vector.broadcast %cst_31 : f32 to vector<64x64xf32>
    %52 = arith.mulf %51, %50 : vector<64x64xf32>
    %53 = arith.addf %48, %52 : vector<64x64xf32>
    %cst_32 = arith.constant 0.797884583 : f32
    %54 = vector.broadcast %cst_32 : f32 to vector<64x64xf32>
    %55 = arith.mulf %54, %53 : vector<64x64xf32>
    %56 = math.tanh %55 : vector<64x64xf32>
    %cst_33 = arith.constant 1.000000e+00 : f32
    %57 = vector.broadcast %cst_33 : f32 to vector<64x64xf32>
    %58 = arith.addf %57, %56 : vector<64x64xf32>
    %cst_34 = arith.constant 5.000000e-01 : f32
    %59 = vector.broadcast %cst_34 : f32 to vector<64x64xf32>
    %60 = arith.mulf %59, %58 : vector<64x64xf32>
    %61 = arith.mulf %48, %60 : vector<64x64xf32>
    %62 = arith.truncf %61 : vector<64x64xf32> to vector<64x64xbf16>
    %c0_35 = arith.constant 0 : index
    %c0_36 = arith.constant 0 : index
    %63 = vector.load %arg12[%c0_35, %c0_36] : memref<64x32xbf16, #tpu.memory_space<vmem>>, vector<64x32xbf16>
    %cst_37 = arith.constant dense<0.000000e+00> : vector<64x32xf32>
    %64 = tpu.matmul %62, %63, %cst_37 {dimension_numbers = #tpu.dot_dimension_numbers<[1], [0], [0], [1], [0, 0, 1, 1], [], []>} : vector<64x64xbf16>, vector<64x32xbf16>, vector<64x32xf32> -> vector<64x32xf32>
    %c0_38 = arith.constant 0 : index
    %c0_39 = arith.constant 0 : index
    %65 = vector.load %arg13[%c0_38, %c0_39] : memref<1x32xf32, #tpu.memory_space<vmem>>, vector<1x32xf32>
    %66 = vector.broadcast %65 : vector<1x32xf32> to vector<64x32xf32>
    %67 = arith.addf %64, %66 : vector<64x32xf32>
    %68 = arith.addf %42, %67 : vector<64x32xf32>
    %c0_40 = arith.constant 0 : index
    %c0_41 = arith.constant 0 : index
    %c0_42 = arith.constant 0 : index
    %69 = vector.load %arg14[%c0_40, %c0_41, %c0_42] : memref<1x64x32xf32, #tpu.memory_space<vmem>>, vector<1x64x32xf32>
    %70 = vector.shape_cast %69 : vector<1x64x32xf32> to vector<64x32xf32>
    %71 = vector.shape_cast %68 : vector<64x32xf32> to vector<1x64x32xf32>
    tpu.vector_store %arg14[%c0_40, %c0_41, %c0_42], %71 {strides = array<i32>} : memref<1x64x32xf32, #tpu.memory_space<vmem>>, vector<1x64x32xf32>,
    return
  }
  func.func @transform_0(%arg0: i32) -> (i32, i32, i32) {
    %c0_i32 = arith.constant 0 : i32
    %c0_i32_0 = arith.constant 0 : i32
    %c0_i32_1 = arith.constant 0 : i32
    return %arg0, %c0_i32, %c0_i32_0 : i32, i32, i32
  }
  func.func @transform_1(%arg0: i32) -> (i32, i32) {
    %c0_i32 = arith.constant 0 : i32
    %c0_i32_0 = arith.constant 0 : i32
    %c0_i32_1 = arith.constant 0 : i32
    return %c0_i32, %c0_i32_0 : i32, i32
  }
  func.func @transform_2(%arg0: i32) -> (i32, i32) {
    %c0_i32 = arith.constant 0 : i32
    %c0_i32_0 = arith.constant 0 : i32
    %c0_i32_1 = arith.constant 0 : i32
    return %c0_i32, %c0_i32_0 : i32, i32
  }
  func.func @transform_3(%arg0: i32) -> (i32, i32) {
    %c0_i32 = arith.constant 0 : i32
    %c0_i32_0 = arith.constant 0 : i32
    %c0_i32_1 = arith.constant 0 : i32
    return %c0_i32, %c0_i32_0 : i32, i32
  }
  func.func @transform_4(%arg0: i32) -> (i32, i32) {
    %c0_i32 = arith.constant 0 : i32
    %c0_i32_0 = arith.constant 0 : i32
    %c0_i32_1 = arith.constant 0 : i32
    return %c0_i32, %c0_i32_0 : i32, i32
  }
  func.func @transform_5(%arg0: i32) -> (i32, i32) {
    %c0_i32 = arith.constant 0 : i32
    %c0_i32_0 = arith.constant 0 : i32
    %c0_i32_1 = arith.constant 0 : i32
    return %c0_i32, %c0_i32_0 : i32, i32
  }
  func.func @transform_6(%arg0: i32) -> (i32, i32) {
    %c0_i32 = arith.constant 0 : i32
    %c0_i32_0 = arith.constant 0 : i32
    %c0_i32_1 = arith.constant 0 : i32
    return %c0_i32, %c0_i32_0 : i32, i32
  }
  func.func @transform_7(%arg0: i32) -> (i32, i32) {
    %c0_i32 = arith.constant 0 : i32
    %c0_i32_0 = arith.constant 0 : i32
    %c0_i32_1 = arith.constant 0 : i32
    return %c0_i32, %c0_i32_0 : i32, i32
  }
  func.func @transform_8(%arg0: i32) -> (i32, i32) {
    %c0_i32 = arith.constant 0 : i32
    %c0_i32_0 = arith.constant 0 : i32
    %c0_i32_1 = arith.constant 0 : i32
    return %c0_i32, %c0_i32_0 : i32, i32
  }
  func.func @transform_9(%arg0: i32) -> (i32, i32) {
    %c0_i32 = arith.constant 0 : i32
    %c0_i32_0 = arith.constant 0 : i32
    %c0_i32_1 = arith.constant 0 : i32
    return %c0_i32, %c0_i32_0 : i32, i32
  }
  func.func @transform_10(%arg0: i32) -> (i32, i32) {
    %c0_i32 = arith.constant 0 : i32
    %c0_i32_0 = arith.constant 0 : i32
    %c0_i32_1 = arith.constant 0 : i32
    return %c0_i32, %c0_i32_0 : i32, i32
  }
  func.func @transform_11(%arg0: i32) -> (i32, i32) {
    %c0_i32 = arith.constant 0 : i32
    %c0_i32_0 = arith.constant 0 : i32
    %c0_i32_1 = arith.constant 0 : i32
    return %c0_i32, %c0_i32_0 : i32, i32
  }
  func.func @transform_12(%arg0: i32) -> (i32, i32) {
    %c0_i32 = arith.constant 0 : i32
    %c0_i32_0 = arith.constant 0 : i32
    %c0_i32_1 = arith.constant 0 : i32
    return %c0_i32, %c0_i32_0 : i32, i32
  }
  func.func @transform_13(%arg0: i32) -> (i32, i32, i32) {
    %c0_i32 = arith.constant 0 : i32
    %c0_i32_0 = arith.constant 0 : i32
    %c0_i32_1 = arith.constant 0 : i32
    return %arg0, %c0_i32, %c0_i32_0 : i32, i32, i32
  }
}

module attributes {stable_mosaic.version = 11 : i64} {
  func.func @_clf_corr_kernel(%arg0: i32, %arg1: memref<1x64x32xbf16, #tpu.memory_space<vmem>>, %arg2: memref<32x32xbf16, #tpu.memory_space<vmem>>, %arg3: memref<1x32xf32, #tpu.memory_space<vmem>>, %arg4: memref<1x1x32xf32, #tpu.memory_space<vmem>>, %arg5: memref<1x64x1xf32, #tpu.memory_space<vmem>>) attributes {dimension_semantics = [#tpu.dimension_semantics<parallel>], iteration_bounds = array<i64: 4>, scalar_prefetch = 0 : i64, scratch_operands = 0 : i64, tpu.core_type = #tpu.core_type<tc>, window_params = [{transform_indices = @transform_0, window_bounds = array<i64: 1, 64, 32>}, {pipeline_mode = #tpu.pipeline_mode<synchronous>, transform_indices = @transform_1, window_bounds = array<i64: 32, 32>}, {pipeline_mode = #tpu.pipeline_mode<synchronous>, transform_indices = @transform_2, window_bounds = array<i64: 1, 32>}, {transform_indices = @transform_3, window_bounds = array<i64: 1, 1, 32>}, {transform_indices = @transform_4, window_bounds = array<i64: 1, 64, 1>}]} {
    %c0 = arith.constant 0 : index
    %c0_0 = arith.constant 0 : index
    %c0_1 = arith.constant 0 : index
    %0 = vector.load %arg1[%c0, %c0_0, %c0_1] : memref<1x64x32xbf16, #tpu.memory_space<vmem>>, vector<1x64x32xbf16>
    %1 = vector.shape_cast %0 : vector<1x64x32xbf16> to vector<64x32xbf16>
    %c0_2 = arith.constant 0 : index
    %c0_3 = arith.constant 0 : index
    %2 = vector.load %arg2[%c0_2, %c0_3] : memref<32x32xbf16, #tpu.memory_space<vmem>>, vector<32x32xbf16>
    %cst = arith.constant dense<0.000000e+00> : vector<64x32xf32>
    %3 = tpu.matmul %1, %2, %cst {dimension_numbers = #tpu.dot_dimension_numbers<[1], [0], [0], [1], [0, 0, 1, 1], [], []>} : vector<64x32xbf16>, vector<32x32xbf16>, vector<64x32xf32> -> vector<64x32xf32>
    %c0_4 = arith.constant 0 : index
    %c0_5 = arith.constant 0 : index
    %4 = vector.load %arg3[%c0_4, %c0_5] : memref<1x32xf32, #tpu.memory_space<vmem>>, vector<1x32xf32>
    %5 = vector.broadcast %4 : vector<1x32xf32> to vector<64x32xf32>
    %6 = arith.addf %3, %5 : vector<64x32xf32>
    %cst_6 = arith.constant 0.000000e+00 : f32
    %7 = vector.broadcast %cst_6 : f32 to vector<64x32xf32>
    %8 = arith.maximumf %6, %7 : vector<64x32xf32>
    %c0_7 = arith.constant 0 : index
    %c0_8 = arith.constant 0 : index
    %c0_9 = arith.constant 0 : index
    %9 = vector.load %arg4[%c0_7, %c0_8, %c0_9] : memref<1x1x32xf32, #tpu.memory_space<vmem>>, vector<1x1x32xf32>
    %10 = vector.shape_cast %9 : vector<1x1x32xf32> to vector<1x32xf32>
    %11 = vector.broadcast %10 : vector<1x32xf32> to vector<64x32xf32>
    %12 = arith.mulf %8, %11 : vector<64x32xf32>
    %cst_10 = arith.constant dense<0.000000e+00> : vector<64xf32>
    %13 = vector.multi_reduction <add>, %12, %cst_10 [1] : vector<64x32xf32> to vector<64xf32>
    %14 = vector.shape_cast %13 : vector<64xf32> to vector<64x1xf32>
    %15 = vector.shape_cast %14 : vector<64x1xf32> to vector<1x64x1xf32>
    %c0_11 = arith.constant 0 : index
    %c0_12 = arith.constant 0 : index
    %c0_13 = arith.constant 0 : index
    %16 = vector.load %arg5[%c0_11, %c0_12, %c0_13] : memref<1x64x1xf32, #tpu.memory_space<vmem>>, vector<1x64x1xf32>
    tpu.vector_store %arg5[%c0_11, %c0_12, %c0_13], %15 {strides = array<i32>} : memref<1x64x1xf32, #tpu.memory_space<vmem>>, vector<1x64x1xf32>,
    return
  }
  func.func @transform_0(%arg0: i32) -> (i32, i32, i32) {
    %c0_i32 = arith.constant 0 : i32
    %c0_i32_0 = arith.constant 0 : i32
    %c0_i32_1 = arith.constant 0 : i32
    return %arg0, %c0_i32, %c0_i32_0 : i32, i32, i32
  }
  func.func @transform_1(%arg0: i32) -> (i32, i32) {
    %c0_i32 = arith.constant 0 : i32
    %c0_i32_0 = arith.constant 0 : i32
    %c0_i32_1 = arith.constant 0 : i32
    return %c0_i32, %c0_i32_0 : i32, i32
  }
  func.func @transform_2(%arg0: i32) -> (i32, i32) {
    %c0_i32 = arith.constant 0 : i32
    %c0_i32_0 = arith.constant 0 : i32
    %c0_i32_1 = arith.constant 0 : i32
    return %c0_i32, %c0_i32_0 : i32, i32
  }
  func.func @transform_3(%arg0: i32) -> (i32, i32, i32) {
    %c0_i32 = arith.constant 0 : i32
    %c0_i32_0 = arith.constant 0 : i32
    %c0_i32_1 = arith.constant 0 : i32
    return %arg0, %c0_i32, %c0_i32_0 : i32, i32, i32
  }
  func.func @transform_4(%arg0: i32) -> (i32, i32, i32) {
    %c0_i32 = arith.constant 0 : i32
    %c0_i32_0 = arith.constant 0 : i32
    %c0_i32_1 = arith.constant 0 : i32
    return %arg0, %c0_i32, %c0_i32_0 : i32, i32, i32
  }
}

module attributes {stable_mosaic.version = 11 : i64} {
  func.func @_bbreg_head_kernel(%arg0: i32, %arg1: memref<1x1x64xf32, #tpu.memory_space<vmem>>, %arg2: memref<1x1x64xf32, #tpu.memory_space<vmem>>, %arg3: memref<1x8x64xf32, #tpu.memory_space<vmem>>, %arg4: memref<1x64xf32, #tpu.memory_space<vmem>>, %arg5: memref<1x1xf32, #tpu.memory_space<vmem>>, %arg6: memref<1x8x1xf32, #tpu.memory_space<vmem>>) attributes {dimension_semantics = [#tpu.dimension_semantics<parallel>], iteration_bounds = array<i64: 4>, scalar_prefetch = 0 : i64, scratch_operands = 0 : i64, tpu.core_type = #tpu.core_type<tc>, window_params = [{transform_indices = @transform_0, window_bounds = array<i64: 1, 1, 64>}, {transform_indices = @transform_1, window_bounds = array<i64: 1, 1, 64>}, {transform_indices = @transform_2, window_bounds = array<i64: 1, 8, 64>}, {pipeline_mode = #tpu.pipeline_mode<synchronous>, transform_indices = @transform_3, window_bounds = array<i64: 1, 64>}, {pipeline_mode = #tpu.pipeline_mode<synchronous>, transform_indices = @transform_4, window_bounds = array<i64: 1, 1>}, {transform_indices = @transform_5, window_bounds = array<i64: 1, 8, 1>}]} {
    %c0 = arith.constant 0 : index
    %c0_0 = arith.constant 0 : index
    %c0_1 = arith.constant 0 : index
    %0 = vector.load %arg1[%c0, %c0_0, %c0_1] : memref<1x1x64xf32, #tpu.memory_space<vmem>>, vector<1x1x64xf32>
    %1 = vector.shape_cast %0 : vector<1x1x64xf32> to vector<1x64xf32>
    %c0_2 = arith.constant 0 : index
    %c0_3 = arith.constant 0 : index
    %c0_4 = arith.constant 0 : index
    %2 = vector.load %arg2[%c0_2, %c0_3, %c0_4] : memref<1x1x64xf32, #tpu.memory_space<vmem>>, vector<1x1x64xf32>
    %3 = vector.shape_cast %2 : vector<1x1x64xf32> to vector<1x64xf32>
    %c0_5 = arith.constant 0 : index
    %c0_6 = arith.constant 0 : index
    %c0_7 = arith.constant 0 : index
    %4 = vector.load %arg3[%c0_5, %c0_6, %c0_7] : memref<1x8x64xf32, #tpu.memory_space<vmem>>, vector<1x8x64xf32>
    %5 = vector.shape_cast %4 : vector<1x8x64xf32> to vector<8x64xf32>
    %6 = vector.broadcast %3 : vector<1x64xf32> to vector<8x64xf32>
    %7 = arith.addf %6, %5 : vector<8x64xf32>
    %8 = vector.broadcast %1 : vector<1x64xf32> to vector<8x64xf32>
    %9 = arith.mulf %8, %7 : vector<8x64xf32>
    %cst = arith.constant 0.000000e+00 : f32
    %10 = vector.broadcast %cst : f32 to vector<8x64xf32>
    %11 = arith.maximumf %9, %10 : vector<8x64xf32>
    %c0_8 = arith.constant 0 : index
    %c0_9 = arith.constant 0 : index
    %12 = vector.load %arg4[%c0_8, %c0_9] : memref<1x64xf32, #tpu.memory_space<vmem>>, vector<1x64xf32>
    %13 = vector.broadcast %12 : vector<1x64xf32> to vector<8x64xf32>
    %14 = arith.mulf %11, %13 : vector<8x64xf32>
    %cst_10 = arith.constant dense<0.000000e+00> : vector<8xf32>
    %15 = vector.multi_reduction <add>, %14, %cst_10 [1] : vector<8x64xf32> to vector<8xf32>
    %16 = vector.shape_cast %15 : vector<8xf32> to vector<8x1xf32>
    %c0_11 = arith.constant 0 : index
    %c0_12 = arith.constant 0 : index
    %17 = vector.load %arg5[%c0_11, %c0_12] : memref<1x1xf32, #tpu.memory_space<vmem>>, vector<1x1xf32>
    %18 = vector.extract %17[0, 0] : f32 from vector<1x1xf32>
    %19 = vector.broadcast %18 : f32 to vector<8x1xf32>
    %20 = arith.addf %16, %19 : vector<8x1xf32>
    %21 = vector.shape_cast %20 : vector<8x1xf32> to vector<1x8x1xf32>
    %c0_13 = arith.constant 0 : index
    %c0_14 = arith.constant 0 : index
    %c0_15 = arith.constant 0 : index
    %22 = vector.load %arg6[%c0_13, %c0_14, %c0_15] : memref<1x8x1xf32, #tpu.memory_space<vmem>>, vector<1x8x1xf32>
    tpu.vector_store %arg6[%c0_13, %c0_14, %c0_15], %21 {strides = array<i32>} : memref<1x8x1xf32, #tpu.memory_space<vmem>>, vector<1x8x1xf32>,
    return
  }
  func.func @transform_0(%arg0: i32) -> (i32, i32, i32) {
    %c0_i32 = arith.constant 0 : i32
    %c0_i32_0 = arith.constant 0 : i32
    %c0_i32_1 = arith.constant 0 : i32
    return %arg0, %c0_i32, %c0_i32_0 : i32, i32, i32
  }
  func.func @transform_1(%arg0: i32) -> (i32, i32, i32) {
    %c0_i32 = arith.constant 0 : i32
    %c0_i32_0 = arith.constant 0 : i32
    %c0_i32_1 = arith.constant 0 : i32
    return %arg0, %c0_i32, %c0_i32_0 : i32, i32, i32
  }
  func.func @transform_2(%arg0: i32) -> (i32, i32, i32) {
    %c0_i32 = arith.constant 0 : i32
    %c0_i32_0 = arith.constant 0 : i32
    %c0_i32_1 = arith.constant 0 : i32
    return %arg0, %c0_i32, %c0_i32_0 : i32, i32, i32
  }
  func.func @transform_3(%arg0: i32) -> (i32, i32) {
    %c0_i32 = arith.constant 0 : i32
    %c0_i32_0 = arith.constant 0 : i32
    %c0_i32_1 = arith.constant 0 : i32
    return %c0_i32, %c0_i32_0 : i32, i32
  }
  func.func @transform_4(%arg0: i32) -> (i32, i32) {
    %c0_i32 = arith.constant 0 : i32
    %c0_i32_0 = arith.constant 0 : i32
    %c0_i32_1 = arith.constant 0 : i32
    return %c0_i32, %c0_i32_0 : i32, i32
  }
  func.func @transform_5(%arg0: i32) -> (i32, i32, i32) {
    %c0_i32 = arith.constant 0 : i32
    %c0_i32_0 = arith.constant 0 : i32
    %c0_i32_1 = arith.constant 0 : i32
    return %arg0, %c0_i32, %c0_i32_0 : i32, i32, i32
  }
}

</mosaic_0001>

<llo_original>
// kernel: run.8
$region0: #{run.8}
  #allocation0 [shape = 'u32[]', space=smem, size = 0x4, offset = 0x4, fixed_abs, tag = 'smem constant byte address 0x4 - core index']
  #allocation1 [shape = 'u32[144,128]{1,0:T(1,128)}', space=vmem, size = 0x12000, scoped, tag = 'internal scratch']
  %s0 = inlined_call_operand.vmem [shape: bf16[4,17,17,12], index: 0, kind: input, shape index: {}]
  %s1 = inlined_call_operand.vmem [shape: bf16[4,12,16], index: 1, kind: input, shape index: {}]
  %s2 = inlined_call_operand.vmem [shape: f32[1,16], index: 2, kind: input, shape index: {}]
  %s3 = inlined_call_operand.vmem [shape: f32[4,256,16], index: 3, kind: output, shape index: {}]
  %s4 = sld [smem:[#allocation0]]
  $region45: #{run.8} parent=0
    _
  %s6 = ssub.s32 1, %s4
  %s7 = scalar_select 0, %s6, %s4
  loop: start=0, step=1, limit=6
  $region2: #{run.8} parent=0 // loop_pre_header
    _
  $region3: #{run.8} parent=0 // loop_header
    %s9 = sphi 0, %s13
    %p10 = scmp.ge.s32.totalorder %s9, 6
    %s19 = sphi 0, %s21
    %s22 = sphi 0, %s19
    %s23 = sphi 0, %s22
    %s39 = sphi 0, %s23
    %s43 = sphi 0, %s43
    %s45 = sphi 0, %s43
    %s46 = sphi 0, %s45
    %s60 = sphi 0, %s46
    %s64 = sphi 0, %s64
    %s66 = sphi 0, %s64
    %s67 = sphi 0, %s66
    %s81 = sphi 0, %s67
    %s87 = sphi 0, %s89
    %s90 = sphi 0, %s87
    %s91 = sphi 0, %s90
    %s107 = sphi 0, %s91
  $region4: #{run.8} parent=0 // loop_header_branch
    %12 = sbr.rel (%p10) target = $region8
  $region5: #{run.8} parent=0 // loop_body
    %s14 = ssub.s32 %s9, 1
    %s15 = ssub.s32 %s9, 2
    %s16 = sadd.s32 %s9, 1
    %s17 = ssub.s32 %s9, %s16
    %p18 = scmp.eq.s32.totalorder %s17, 0
    %s20 = sadd.s32 %s19, 1
    %s21 = scalar_select %p18, %s19, %s20
    %p24 = pneg %p18
    %p25 = scmp.eq.s32.totalorder %s9, 3
    %p26 = por %p24, %p25
    %p27 = scmp.ne.s32.totalorder %s19, %s22
    %p28 = scmp.eq.s32.totalorder %s9, 0
    %p29 = por %p27, %p28
    %p30 = scmp.ne.s32.totalorder %s19, %s22
    %p31 = scmp.eq.s32.totalorder %s14, 3
    %p32 = por %p30, %p31
    %p33 = scmp.ne.s32.totalorder %s22, %s23
    %p34 = scmp.eq.s32.totalorder %s14, 0
    %p35 = por %p33, %p34
    %p36 = scmp.ne.s32.totalorder %s22, %s23
    %p37 = scmp.eq.s32.totalorder %s15, 3
    %p38 = por %p36, %p37
    %p40 = scmp.ne.s32.totalorder %s23, %s39
    %p41 = scmp.eq.s32.totalorder %s15, 0
    %p42 = por %p40, %p41
    %s44 = sadd.s32 %s43, 1
    %p47 = scmp.eq.s32.totalorder %s9, 3
    %p48 = scmp.ne.s32.totalorder %s43, %s45
    %p49 = scmp.eq.s32.totalorder %s9, 0
    %p50 = por %p48, %p49
    %p51 = scmp.ne.s32.totalorder %s43, %s45
    %p52 = scmp.eq.s32.totalorder %s14, 3
    %p53 = por %p51, %p52
    %p54 = scmp.ne.s32.totalorder %s45, %s46
    %p55 = scmp.eq.s32.totalorder %s14, 0
    %p56 = por %p54, %p55
    %p57 = scmp.ne.s32.totalorder %s45, %s46
    %p58 = scmp.eq.s32.totalorder %s15, 3
    %p59 = por %p57, %p58
    %p61 = scmp.ne.s32.totalorder %s46, %s60
    %p62 = scmp.eq.s32.totalorder %s15, 0
    %p63 = por %p61, %p62
    %s65 = sadd.s32 %s64, 1
    %p68 = scmp.eq.s32.totalorder %s9, 3
    %p69 = scmp.ne.s32.totalorder %s64, %s66
    %p70 = scmp.eq.s32.totalorder %s9, 0
    %p71 = por %p69, %p70
    %p72 = scmp.ne.s32.totalorder %s64, %s66
    %p73 = scmp.eq.s32.totalorder %s14, 3
    %p74 = por %p72, %p73
    %p75 = scmp.ne.s32.totalorder %s66, %s67
    %p76 = scmp.eq.s32.totalorder %s14, 0
    %p77 = por %p75, %p76
    %p78 = scmp.ne.s32.totalorder %s66, %s67
    %p79 = scmp.eq.s32.totalorder %s15, 3
    %p80 = por %p78, %p79
    %p82 = scmp.ne.s32.totalorder %s67, %s81
    %p83 = scmp.eq.s32.totalorder %s15, 0
    %p84 = por %p82, %p83
    %s85 = ssub.s32 %s9, %s16
    %p86 = scmp.eq.s32.totalorder %s85, 0
    %s88 = sadd.s32 %s87, 1
    %s89 = scalar_select %p86, %s87, %s88
    %p92 = pneg %p86
    %p93 = scmp.eq.s32.totalorder %s9, 3
    %p94 = por %p92, %p93
    %p95 = scmp.ne.s32.totalorder %s87, %s90
    %p96 = scmp.eq.s32.totalorder %s9, 0
    %p97 = por %p95, %p96
    %p98 = scmp.ne.s32.totalorder %s87, %s90
    %p99 = scmp.eq.s32.totalorder %s14, 3
    %p100 = por %p98, %p99
    %p101 = scmp.ne.s32.totalorder %s90, %s91
    %p102 = scmp.eq.s32.totalorder %s14, 0
    %p103 = por %p101, %p102
    %p104 = scmp.ne.s32.totalorder %s90, %s91
    %p105 = scmp.eq.s32.totalorder %s15, 3
    %p106 = por %p104, %p105
    %p108 = scmp.ne.s32.totalorder %s91, %s107
    %p109 = scmp.eq.s32.totalorder %s15, 0
    %p110 = por %p108, %p109
    %p111 = scmp.le.s32.totalorder 1, %s9
    %p112 = scmp.lt.s32.totalorder %s9, 5
    %p113 = pnand %p111, %p112
    %p114 = pneg %p113
    // Predicated region
    $region9: #{run.8} parent=5 // pred_check
      _
    $region10: #{run.8} parent=5 // pred_check_branch
      %116 = sbr.rel (%p113) target = $region12
    $region11: #{run.8} parent=5 // pred_region
      %s117 = ssub.s32 %s9, 1
      // Predicated region
      $region13: #{run.8} parent=11 // pred_check
        %p118 = pneg %p56
      $region14: #{run.8} parent=11 // pred_check_branch
        %120 = sbr.rel (%p118) target = $region16
      $region15: #{run.8} parent=11 // pred_region
        _
      $region16: #{run.8} parent=11 // pred_fallthru
        _
      // Predicated region
      $region17: #{run.8} parent=11 // pred_check
        %p121 = pneg %p77
      $region18: #{run.8} parent=11 // pred_check_branch
        %123 = sbr.rel (%p121) target = $region20
      $region19: #{run.8} parent=11 // pred_region
        _
      $region20: #{run.8} parent=11 // pred_fallthru
        _
    $region12: #{run.8} parent=5 // pred_fallthru
      _
    %p124 = scmp.lt.s32.totalorder %s9, 4
    // Predicated region
    $region21: #{run.8} parent=5 // pred_check
      %p125 = pneg %p124
    $region22: #{run.8} parent=5 // pred_check_branch
      %127 = sbr.rel (%p125) target = $region24
    $region23: #{run.8} parent=5 // pred_region
      // Predicated region
      $region25: #{run.8} parent=23 // pred_check
        %p128 = pneg %p29
      $region26: #{run.8} parent=23 // pred_check_branch
        %130 = sbr.rel (%p128) target = $region28
      $region27: #{run.8} parent=23 // pred_region
        %p131 = scmp.lt.s32.totalorder %s9, 3
        %s132 = scalar_select %p131, %s9, 3
        %s133 = smul.addr %s132, 51
        %s134 = smul.addr %s133, 4
        %s135 = scalar_lea.vmem %s0, %s134
      $region28: #{run.8} parent=23 // pred_fallthru
        _
    $region24: #{run.8} parent=5 // pred_fallthru
      _
    %p136 = scmp.le.s32.totalorder 1, %s9
    %p137 = scmp.lt.s32.totalorder %s9, 5
    %p138 = pnand %p136, %p137
    %p139 = pneg %p138
    // Predicated region
    $region29: #{run.8} parent=5 // pred_check
      _
    $region30: #{run.8} parent=5 // pred_check_branch
      %141 = sbr.rel (%p138) target = $region32
    $region31: #{run.8} parent=5 // pred_region
      %s142 = ssub.s32 %s9, 1
      %p143 = scmp.lt.s32.totalorder %s14, 3
      %s144 = scalar_select %p143, %s14, 3
      %s145 = smul.addr %s144, 51
      %s146 = smul.addr %s145, 4
      %s147 = scalar_lea.vmem %s0, %s146
      %p148 = pneg %p35
      %p149 = pneg %p32
      %p150 = pneg %p56
      %p151 = pneg %p53
      %p152 = pneg %p77
      %p153 = pneg %p74
      %p154 = pneg %p103
      %p155 = pneg %p100
      %p156 = scmp.lt.s32.totalorder %s14, 3
      %s157 = scalar_select %p156, %s14, 3
      %s158 = smul.addr %s157, 32
      %s159 = smul.addr %s158, 8
      %s160 = scalar_lea.vmem %s3, %s159
      %p161 = scmp.lt.s32.totalorder %s14, 3
      %s162 = scalar_select %p161, %s14, 3
      %s163 = smul.addr %s162, 51
      %s164 = smul.addr %s163, 4
      %s165 = scalar_lea.vmem %s0, %s164
      %p166 = scmp.lt.s32.totalorder %s14, 3
      %s167 = scalar_select %p166, %s14, 3
      %s168 = smul.addr %s167, 32
      %s169 = smul.addr %s168, 8
      %s170 = scalar_lea.vmem %s3, %s169
      %v172 = vld [vmem:[%s165] sm:$0xf]
      %v173 = vld [vmem:[%s165 + $0x4] sm:$0xf]
      %v174 = vld [vmem:[%s165 + $0x8] sm:$0x1]
      %v175 = vld [vmem:[%s165 + $0xc] sm:$0xf]
      %v176 = vld [vmem:[%s165 + $0x10] sm:$0xf]
      %v177 = vld [vmem:[%s165 + $0x14] sm:$0x1]
      %v178 = vld [vmem:[%s165 + $0x18] sm:$0xf]
      %v179 = vld [vmem:[%s165 + $0x1c] sm:$0xf]
      %v180 = vld [vmem:[%s165 + $0x20] sm:$0x1]
      %v181 = vld [vmem:[%s165 + $0x24] sm:$0xf]
      %v182 = vld [vmem:[%s165 + $0x28] sm:$0xf]
      %v183 = vld [vmem:[%s165 + $0x2c] sm:$0x1]
      %v184 = vld [vmem:[%s165 + $0x30] sm:$0xf]
      %v185 = vld [vmem:[%s165 + $0x34] sm:$0xf]
      %v186 = vld [vmem:[%s165 + $0x38] sm:$0x1]
      %v187 = vld [vmem:[%s165 + $0x3c] sm:$0xf]
      %v188 = vld [vmem:[%s165 + $0x40] sm:$0xf]
      %v189 = vld [vmem:[%s165 + $0x44] sm:$0x1]
      %v190 = vld [vmem:[%s165 + $0x48] sm:$0xf]
      %v191 = vld [vmem:[%s165 + $0x4c] sm:$0xf]
      %v192 = vld [vmem:[%s165 + $0x50] sm:$0x1]
      %v193 = vld [vmem:[%s165 + $0x54] sm:$0xf]
      %v194 = vld [vmem:[%s165 + $0x58] sm:$0xf]
      %v195 = vld [vmem:[%s165 + $0x5c] sm:$0x1]
      %v196 = vld [vmem:[%s165 + $0x60] sm:$0xf]
      %v197 = vld [vmem:[%s165 + $0x64] sm:$0xf]
      %v198 = vld [vmem:[%s165 + $0x68] sm:$0x1]
      %v199 = vld [vmem:[%s165 + $0x6c] sm:$0xf]
      %v200 = vld [vmem:[%s165 + $0x70] sm:$0xf]
      %v201 = vld [vmem:[%s165 + $0x74] sm:$0x1]
      %v202 = vld [vmem:[%s165 + $0x78] sm:$0xf]
      %v203 = vld [vmem:[%s165 + $0x7c] sm:$0xf]
      %v204 = vld [vmem:[%s165 + $0x80] sm:$0x1]
      %v205 = vld [vmem:[%s165 + $0x84] sm:$0xf]
      %v206 = vld [vmem:[%s165 + $0x88] sm:$0xf]
      %v207 = vld [vmem:[%s165 + $0x8c] sm:$0x1]
      %v208 = vld [vmem:[%s165 + $0x90] sm:$0xf]
      %v209 = vld [vmem:[%s165 + $0x94] sm:$0xf]
      %v210 = vld [vmem:[%s165 + $0x98] sm:$0x1]
      %v211 = vld [vmem:[%s165 + $0x9c] sm:$0xf]
      %v212 = vld [vmem:[%s165 + $0xa0] sm:$0xf]
      %v213 = vld [vmem:[%s165 + $0xa4] sm:$0x1]
      %v214 = vld [vmem:[%s165 + $0xa8] sm:$0xf]
      %v215 = vld [vmem:[%s165 + $0xac] sm:$0xf]
      %v216 = vld [vmem:[%s165 + $0xb0] sm:$0x1]
      %v217 = vld [vmem:[%s165 + $0xb4] sm:$0xf]
      %v218 = vld [vmem:[%s165 + $0xb8] sm:$0xf]
      %v219 = vld [vmem:[%s165 + $0xbc] sm:$0x1]
      %v220 = vld [vmem:[%s165 + $0xc0] sm:$0xf]
      %v221 = vld [vmem:[%s165 + $0xc4] sm:$0xf]
      %v222 = vld [vmem:[%s165 + $0xc8] sm:$0x1]
      %v223 = vunpack.c.l.bf16 %v172
      %v224 = vunpack.c.l.bf16 %v173
      %v225 = vunpack.c.l.bf16 %v174
      %v226 = vunpack.c.l.bf16 %v175
      %v227 = vunpack.c.l.bf16 %v176
      %v228 = vunpack.c.l.bf16 %v177
      %v229 = vunpack.c.l.bf16 %v178
      %v230 = vunpack.c.l.bf16 %v179
      %v231 = vunpack.c.l.bf16 %v180
      %v232 = vunpack.c.l.bf16 %v181
      %v233 = vunpack.c.l.bf16 %v182
      %v234 = vunpack.c.l.bf16 %v183
      %v235 = vunpack.c.l.bf16 %v184
      %v236 = vunpack.c.l.bf16 %v185
      %v237 = vunpack.c.l.bf16 %v186
      %v238 = vunpack.c.l.bf16 %v187
      %v239 = vunpack.c.l.bf16 %v188
      %v240 = vunpack.c.l.bf16 %v189
      %v241 = vunpack.c.l.bf16 %v190
      %v242 = vunpack.c.l.bf16 %v191
      %v243 = vunpack.c.l.bf16 %v192
      %v244 = vunpack.c.l.bf16 %v193
      %v245 = vunpack.c.l.bf16 %v194
      %v246 = vunpack.c.l.bf16 %v195
      %v247 = vunpack.c.l.bf16 %v196
      %v248 = vunpack.c.l.bf16 %v197
      %v249 = vunpack.c.l.bf16 %v198
      %v250 = vunpack.c.l.bf16 %v199
      %v251 = vunpack.c.l.bf16 %v200
      %v252 = vunpack.c.l.bf16 %v201
      %v253 = vunpack.c.l.bf16 %v202
      %v254 = vunpack.c.l.bf16 %v203
      %v255 = vunpack.c.l.bf16 %v204
      %v256 = vunpack.c.l.bf16 %v205
      %v257 = vunpack.c.l.bf16 %v206
      %v258 = vunpack.c.l.bf16 %v207
      %v259 = vunpack.c.l.bf16 %v208
      %v260 = vunpack.c.l.bf16 %v209
      %v261 = vunpack.c.l.bf16 %v210
      %v262 = vunpack.c.l.bf16 %v211
      %v263 = vunpack.c.l.bf16 %v212
      %v264 = vunpack.c.l.bf16 %v213
      %v265 = vunpack.c.l.bf16 %v214
      %v266 = vunpack.c.l.bf16 %v215
      %v267 = vunpack.c.l.bf16 %v216
      %v268 = vunpack.c.l.bf16 %v217
      %v269 = vunpack.c.l.bf16 %v218
      %v270 = vunpack.c.l.bf16 %v219
      %v271 = vunpack.c.l.bf16 %v220
      %v272 = vunpack.c.l.bf16 %v221
      %v273 = vunpack.c.l.bf16 %v222
      %v274 = vpack.c.bf16 %v224, %v223
      %v275 = vpack.c.bf16 %v227, %v226
      %v276 = vpack.c.bf16 %v230, %v229
      %v277 = vpack.c.bf16 %v233, %v232
      %v278 = vpack.c.bf16 %v236, %v235
      %v279 = vpack.c.bf16 %v239, %v238
      %v280 = vpack.c.bf16 %v242, %v241
      %v281 = vpack.c.bf16 %v245, %v244
      %v282 = vpack.c.bf16 %v248, %v247
      %v283 = vpack.c.bf16 %v251, %v250
      %v284 = vpack.c.bf16 %v254, %v253
      %v285 = vpack.c.bf16 %v257, %v256
      %v286 = vpack.c.bf16 %v260, %v259
      %v287 = vpack.c.bf16 %v263, %v262
      %v288 = vpack.c.bf16 %v266, %v265
      %v289 = vpack.c.bf16 %v269, %v268
      %v290 = vld [vmem:[%s1] sm:$0xf]
      %v291 = vld [vmem:[%s1 + $0x4] sm:$0x3]
      %vm340 = vcmask 1046528
      %v341 = vrot.slane %v223, 1
      %v342 = vrot.slane %v224, 1
      %v343 = vsel %vm340, %v341, %v342
      %v344 = vrot.slane %v225, 1
      %v345 = vsel %vm340, %v342, %v344
      %v346 = vrot.slane %v226, 1
      %v347 = vrot.slane %v227, 1
      %v348 = vsel %vm340, %v346, %v347
      %v349 = vrot.slane %v228, 1
      %v350 = vsel %vm340, %v347, %v349
      %v351 = vrot.slane %v229, 1
      %v352 = vrot.slane %v230, 1
      %v353 = vsel %vm340, %v351, %v352
      %v354 = vrot.slane %v231, 1
      %v355 = vsel %vm340, %v352, %v354
      %v356 = vrot.slane %v232, 1
      %v357 = vrot.slane %v233, 1
      %v358 = vsel %vm340, %v356, %v357
      %v359 = vrot.slane %v234, 1
      %v360 = vsel %vm340, %v357, %v359
      %v361 = vrot.slane %v235, 1
      %v362 = vrot.slane %v236, 1
      %v363 = vsel %vm340, %v361, %v362
      %v364 = vrot.slane %v237, 1
      %v365 = vsel %vm340, %v362, %v364
      %v366 = vrot.slane %v238, 1
      %v367 = vrot.slane %v239, 1
      %v368 = vsel %vm340, %v366, %v367
      %v369 = vrot.slane %v240, 1
      %v370 = vsel %vm340, %v367, %v369
      %v371 = vrot.slane %v241, 1
      %v372 = vrot.slane %v242, 1
      %v373 = vsel %vm340, %v371, %v372
      %v374 = vrot.slane %v243, 1
      %v375 = vsel %vm340, %v372, %v374
      %v376 = vrot.slane %v244, 1
      %v377 = vrot.slane %v245, 1
      %v378 = vsel %vm340, %v376, %v377
      %v379 = vrot.slane %v246, 1
      %v380 = vsel %vm340, %v377, %v379
      %v381 = vrot.slane %v247, 1
      %v382 = vrot.slane %v248, 1
      %v383 = vsel %vm340, %v381, %v382
      %v384 = vrot.slane %v249, 1
      %v385 = vsel %vm340, %v382, %v384
      %v386 = vrot.slane %v250, 1
      %v387 = vrot.slane %v251, 1
      %v388 = vsel %vm340, %v386, %v387
      %v389 = vrot.slane %v252, 1
      %v390 = vsel %vm340, %v387, %v389
      %v391 = vrot.slane %v253, 1
      %v392 = vrot.slane %v254, 1
      %v393 = vsel %vm340, %v391, %v392
      %v394 = vrot.slane %v255, 1
      %v395 = vsel %vm340, %v392, %v394
      %v396 = vrot.slane %v256, 1
      %v397 = vrot.slane %v257, 1
      %v398 = vsel %vm340, %v396, %v397
      %v399 = vrot.slane %v258, 1
      %v400 = vsel %vm340, %v397, %v399
      %v401 = vrot.slane %v259, 1
      %v402 = vrot.slane %v260, 1
      %v403 = vsel %vm340, %v401, %v402
      %v404 = vrot.slane %v261, 1
      %v405 = vsel %vm340, %v402, %v404
      %v406 = vrot.slane %v262, 1
      %v407 = vrot.slane %v263, 1
      %v408 = vsel %vm340, %v406, %v407
      %v409 = vrot.slane %v264, 1
      %v410 = vsel %vm340, %v407, %v409
      %v411 = vrot.slane %v265, 1
      %v412 = vrot.slane %v266, 1
      %v413 = vsel %vm340, %v411, %v412
      %v414 = vrot.slane %v267, 1
      %v415 = vsel %vm340, %v412, %v414
      %v416 = vrot.slane %v268, 1
      %v417 = vrot.slane %v269, 1
      %v418 = vsel %vm340, %v416, %v417
      %v419 = vrot.slane %v270, 1
      %v420 = vsel %vm340, %v417, %v419
      %v453 = vpack.c.bf16 %v345, %v343
      %v454 = vpack.c.bf16 %v350, %v348
      %v455 = vpack.c.bf16 %v355, %v353
      %v456 = vpack.c.bf16 %v360, %v358
      %v457 = vpack.c.bf16 %v365, %v363
      %v458 = vpack.c.bf16 %v370, %v368
      %v459 = vpack.c.bf16 %v375, %v373
      %v460 = vpack.c.bf16 %v380, %v378
      %v461 = vpack.c.bf16 %v385, %v383
      %v462 = vpack.c.bf16 %v390, %v388
      %v463 = vpack.c.bf16 %v395, %v393
      %v464 = vpack.c.bf16 %v400, %v398
      %v465 = vpack.c.bf16 %v405, %v403
      %v466 = vpack.c.bf16 %v410, %v408
      %v467 = vpack.c.bf16 %v415, %v413
      %v468 = vpack.c.bf16 %v420, %v418
      %s469 = scalar_lea.vmem %s1, 8
      %v470 = vld [vmem:[%s469] sm:$0xf]
      %v471 = vld [vmem:[%s469 + $0x4] sm:$0x3]
      %v474 = vunpack.c.l.b16 %v470
      %v475 = vunpack.c.l.b16 %v471
      %v476 = vpack.c.b16 %v475, %v474
      %vm477 = vcmask 97280
      %v479 = vsel %vm477, %v453, 0
      %v482 = vsel %vm477, %v454, 0
      %v485 = vsel %vm477, %v455, 0
      %v488 = vsel %vm477, %v456, 0
      %v491 = vsel %vm477, %v457, 0
      %v494 = vsel %vm477, %v458, 0
      %v497 = vsel %vm477, %v459, 0
      %v500 = vsel %vm477, %v460, 0
      %v503 = vsel %vm477, %v461, 0
      %v506 = vsel %vm477, %v462, 0
      %v509 = vsel %vm477, %v463, 0
      %v512 = vsel %vm477, %v464, 0
      %v515 = vsel %vm477, %v465, 0
      %v518 = vsel %vm477, %v466, 0
      %v521 = vsel %vm477, %v467, 0
      %v524 = vsel %vm477, %v468, 0
      %vm526 = vcmask 1045504
      %v528 = vsel %vm526, %v476, 0
      %530 = vmatprep.subr.bf16.mxu0 0
      %531 = vmatpush1.bf16.msra.mxu0 0
      %532 = vmatprep.subr.bf16.mxu0 0
      %533 = vmatpush1.bf16.msra.mxu0 0
      %534 = vmatprep.subr.bf16.mxu0 0
      %535 = vmatpush1.bf16.msra.mxu0 0
      %536 = vmatprep.subr.bf16.mxu0 0
      %537 = vmatpush1.bf16.msra.mxu0 0
      %538 = vmatprep.subr.bf16.mxu0 0
      %539 = vmatpush1.bf16.msra.mxu0 0
      %540 = vmatprep.subr.bf16.mxu0 0
      %541 = vmatpush1.bf16.msra.mxu0 0
      %542 = vmatprep.subr.bf16.mxu0 0
      %543 = vmatpush1.bf16.msra.mxu0 0
      %544 = vmatprep.subr.bf16.mxu0 0
      %545 = vmatpush1.bf16.msra.mxu0 %v528
      %546 = vmatprep.subr.bf16.mxu0 0
      %547 = vmatpush2.bf16.msra.mxu0 0
      %548 = vmatprep.subr.bf16.mxu0 0
      %549 = vmatpush2.bf16.msra.mxu0 0
      %550 = vmatprep.subr.bf16.mxu0 0
      %551 = vmatpush2.bf16.msra.mxu0 0
      %552 = vmatprep.subr.bf16.mxu0 0
      %553 = vmatpush2.bf16.msra.mxu0 0
      %554 = vmatprep.subr.bf16.mxu0 0
      %555 = vmatpush2.bf16.msra.mxu0 0
      %556 = vmatprep.subr.bf16.mxu0 0
      %557 = vmatpush2.bf16.msra.mxu0 0
      %558 = vmatprep.subr.bf16.mxu0 0
      %559 = vmatpush2.bf16.msra.mxu0 0
      %560 = vmatprep.subr.bf16.mxu0 0
      %561 = vmatpush2.bf16.msra.mxu0 0
      %562 = vmatprep.mubr.bf16.mxu0 0
      %563 = vmatmul.mubr.bf16.gmra.mxu0 %v479
      %v564 = vpop.f32.mrf.mxu0
      %v565 = vadd.f32 0.0, %v564
      %v566 = vpop.f32.mrf.mxu0
      %v567 = vpop.f32.mrf.mxu0
      %v568 = vadd.f32 0.0, %v567
      %v569 = vpop.f32.mrf.mxu0
      %570 = vmatprep.mubr.bf16.mxu0 0
      %571 = vmatmul.mubr.bf16.gmra.mxu0 %v482
      %v572 = vpop.f32.mrf.mxu0
      %v573 = vadd.f32 0.0, %v572
      %v574 = vpop.f32.mrf.mxu0
      %v575 = vpop.f32.mrf.mxu0
      %v576 = vadd.f32 0.0, %v575
      %v577 = vpop.f32.mrf.mxu0
      %578 = vmatprep.mubr.bf16.mxu0 0
      %579 = vmatmul.mubr.bf16.gmra.mxu0 %v485
      %v580 = vpop.f32.mrf.mxu0
      %v581 = vadd.f32 0.0, %v580
      %v582 = vpop.f32.mrf.mxu0
      %v583 = vpop.f32.mrf.mxu0
      %v584 = vadd.f32 0.0, %v583
      %v585 = vpop.f32.mrf.mxu0
      %586 = vmatprep.mubr.bf16.mxu0 0
      %587 = vmatmul.mubr.bf16.gmra.mxu0 %v488
      %v588 = vpop.f32.mrf.mxu0
      %v589 = vadd.f32 0.0, %v588
      %v590 = vpop.f32.mrf.mxu0
      %v591 = vpop.f32.mrf.mxu0
      %v592 = vadd.f32 0.0, %v591
      %v593 = vpop.f32.mrf.mxu0
      %594 = vmatprep.mubr.bf16.mxu0 0
      %595 = vmatmul.mubr.bf16.gmra.mxu0 %v491
      %v596 = vpop.f32.mrf.mxu0
      %v597 = vadd.f32 0.0, %v596
      %v598 = vpop.f32.mrf.mxu0
      %v599 = vpop.f32.mrf.mxu0
      %v600 = vadd.f32 0.0, %v599
      %v601 = vpop.f32.mrf.mxu0
      %602 = vmatprep.mubr.bf16.mxu0 0
      %603 = vmatmul.mubr.bf16.gmra.mxu0 %v494
      %v604 = vpop.f32.mrf.mxu0
      %v605 = vadd.f32 0.0, %v604
      %v606 = vpop.f32.mrf.mxu0
      %v607 = vpop.f32.mrf.mxu0
      %v608 = vadd.f32 0.0, %v607
      %v609 = vpop.f32.mrf.mxu0
      %610 = vmatprep.mubr.bf16.mxu0 0
      %611 = vmatmul.mubr.bf16.gmra.mxu0 %v497
      %v612 = vpop.f32.mrf.mxu0
      %v613 = vadd.f32 0.0, %v612
      %v614 = vpop.f32.mrf.mxu0
      %v615 = vpop.f32.mrf.mxu0
      %v616 = vadd.f32 0.0, %v615
      %v617 = vpop.f32.mrf.mxu0
      %618 = vmatprep.mubr.bf16.mxu0 0
      %619 = vmatmul.mubr.bf16.gmra.mxu0 %v500
      %v620 = vpop.f32.mrf.mxu0
      %v621 = vadd.f32 0.0, %v620
      %v622 = vpop.f32.mrf.mxu0
      %v623 = vpop.f32.mrf.mxu0
      %v624 = vadd.f32 0.0, %v623
      %v625 = vpop.f32.mrf.mxu0
      %626 = vmatprep.mubr.bf16.mxu0 0
      %627 = vmatmul.mubr.bf16.gmra.mxu0 %v503
      %v628 = vpop.f32.mrf.mxu0
      %v629 = vadd.f32 0.0, %v628
      %v630 = vpop.f32.mrf.mxu0
      %v631 = vpop.f32.mrf.mxu0
      %v632 = vadd.f32 0.0, %v631
      %v633 = vpop.f32.mrf.mxu0
      %634 = vmatprep.mubr.bf16.mxu0 0
      %635 = vmatmul.mubr.bf16.gmra.mxu0 %v506
      %v636 = vpop.f32.mrf.mxu0
      %v637 = vadd.f32 0.0, %v636
      %v638 = vpop.f32.mrf.mxu0
      %v639 = vpop.f32.mrf.mxu0
      %v640 = vadd.f32 0.0, %v639
      %v641 = vpop.f32.mrf.mxu0
      %642 = vmatprep.mubr.bf16.mxu0 0
      %643 = vmatmul.mubr.bf16.gmra.mxu0 %v509
      %v644 = vpop.f32.mrf.mxu0
      %v645 = vadd.f32 0.0, %v644
      %v646 = vpop.f32.mrf.mxu0
      %v647 = vpop.f32.mrf.mxu0
      %v648 = vadd.f32 0.0, %v647
      %v649 = vpop.f32.mrf.mxu0
      %650 = vmatprep.mubr.bf16.mxu0 0
      %651 = vmatmul.mubr.bf16.gmra.mxu0 %v512
      %v652 = vpop.f32.mrf.mxu0
      %v653 = vadd.f32 0.0, %v652
      %v654 = vpop.f32.mrf.mxu0
      %v655 = vpop.f32.mrf.mxu0
      %v656 = vadd.f32 0.0, %v655
      %v657 = vpop.f32.mrf.mxu0
      %658 = vmatprep.mubr.bf16.mxu0 0
      %659 = vmatmul.mubr.bf16.gmra.mxu0 %v515
      %v660 = vpop.f32.mrf.mxu0
      %v661 = vadd.f32 0.0, %v660
      %v662 = vpop.f32.mrf.mxu0
      %v663 = vpop.f32.mrf.mxu0
      %v664 = vadd.f32 0.0, %v663
      %v665 = vpop.f32.mrf.mxu0
      %666 = vmatprep.mubr.bf16.mxu0 0
      %667 = vmatmul.mubr.bf16.gmra.mxu0 %v518
      %v668 = vpop.f32.mrf.mxu0
      %v669 = vadd.f32 0.0, %v668
      %v670 = vpop.f32.mrf.mxu0
      %v671 = vpop.f32.mrf.mxu0
      %v672 = vadd.f32 0.0, %v671
      %v673 = vpop.f32.mrf.mxu0
      %674 = vmatprep.mubr.bf16.mxu0 0
      %675 = vmatmul.mubr.bf16.gmra.mxu0 %v521
      %v676 = vpop.f32.mrf.mxu0
      %v677 = vadd.f32 0.0, %v676
      %v678 = vpop.f32.mrf.mxu0
      %v679 = vpop.f32.mrf.mxu0
      %v680 = vadd.f32 0.0, %v679
      %v681 = vpop.f32.mrf.mxu0
      %682 = vmatprep.mubr.bf16.mxu0 0
      %683 = vmatmul.mubr.bf16.gmra.mxu0 %v524
      %v684 = vpop.f32.mrf.mxu0
      %v685 = vadd.f32 0.0, %v684
      %v686 = vpop.f32.mrf.mxu0
      %v687 = vpop.f32.mrf.mxu0
      %v688 = vadd.f32 0.0, %v687
      %v689 = vpop.f32.mrf.mxu0
      %690 = vdwg.mxu0
      %v693 = vunpack.c.l.b16 %v290
      %v694 = vunpack.c.l.b16 %v291
      %v695 = vpack.c.b16 %v694, %v693
      %v697 = vsel %vm477, %v274, 0
      %v700 = vsel %vm477, %v275, 0
      %v703 = vsel %vm477, %v276, 0
      %v706 = vsel %vm477, %v277, 0
      %v709 = vsel %vm477, %v278, 0
      %v712 = vsel %vm477, %v279, 0
      %v715 = vsel %vm477, %v280, 0
      %v718 = vsel %vm477, %v281, 0
      %v721 = vsel %vm477, %v282, 0
      %v724 = vsel %vm477, %v283, 0
      %v727 = vsel %vm477, %v284, 0
      %v730 = vsel %vm477, %v285, 0
      %v733 = vsel %vm477, %v286, 0
      %v736 = vsel %vm477, %v287, 0
      %v739 = vsel %vm477, %v288, 0
      %v742 = vsel %vm477, %v289, 0
      %v745 = vsel %vm526, %v695, 0
      %747 = vmatprep.subr.bf16.mxu0 0
      %748 = vmatpush1.bf16.msra.mxu0 0
      %749 = vmatprep.subr.bf16.mxu0 0
      %750 = vmatpush1.bf16.msra.mxu0 0
      %751 = vmatprep.subr.bf16.mxu0 0
      %752 = vmatpush1.bf16.msra.mxu0 0
      %753 = vmatprep.subr.bf16.mxu0 0
      %754 = vmatpush1.bf16.msra.mxu0 0
      %755 = vmatprep.subr.bf16.mxu0 0
      %756 = vmatpush1.bf16.msra.mxu0 0
      %757 = vmatprep.subr.bf16.mxu0 0
      %758 = vmatpush1.bf16.msra.mxu0 0
      %759 = vmatprep.subr.bf16.mxu0 0
      %760 = vmatpush1.bf16.msra.mxu0 0
      %761 = vmatprep.subr.bf16.mxu0 0
      %762 = vmatpush1.bf16.msra.mxu0 %v745
      %763 = vmatprep.subr.bf16.mxu0 0
      %764 = vmatpush2.bf16.msra.mxu0 0
      %765 = vmatprep.subr.bf16.mxu0 0
      %766 = vmatpush2.bf16.msra.mxu0 0
      %767 = vmatprep.subr.bf16.mxu0 0
      %768 = vmatpush2.bf16.msra.mxu0 0
      %769 = vmatprep.subr.bf16.mxu0 0
      %770 = vmatpush2.bf16.msra.mxu0 0
      %771 = vmatprep.subr.bf16.mxu0 0
      %772 = vmatpush2.bf16.msra.mxu0 0
      %773 = vmatprep.subr.bf16.mxu0 0
      %774 = vmatpush2.bf16.msra.mxu0 0
      %775 = vmatprep.subr.bf16.mxu0 0
      %776 = vmatpush2.bf16.msra.mxu0 0
      %777 = vmatprep.subr.bf16.mxu0 0
      %778 = vmatpush2.bf16.msra.mxu0 0
      %779 = vmatprep.mubr.bf16.mxu0 0
      %780 = vmatmul.mubr.bf16.gmra.mxu0 %v697
      %v781 = vpop.f32.mrf.mxu0
      %v782 = vadd.f32 %v565, %v781
      %v783 = vpop.f32.mrf.mxu0
      %v784 = vpop.f32.mrf.mxu0
      %v785 = vadd.f32 %v568, %v784
      %v786 = vpop.f32.mrf.mxu0
      %787 = vmatprep.mubr.bf16.mxu0 0
      %788 = vmatmul.mubr.bf16.gmra.mxu0 %v700
      %v789 = vpop.f32.mrf.mxu0
      %v790 = vadd.f32 %v573, %v789
      %v791 = vpop.f32.mrf.mxu0
      %v792 = vpop.f32.mrf.mxu0
      %v793 = vadd.f32 %v576, %v792
      %v794 = vpop.f32.mrf.mxu0
      %795 = vmatprep.mubr.bf16.mxu0 0
      %796 = vmatmul.mubr.bf16.gmra.mxu0 %v703
      %v797 = vpop.f32.mrf.mxu0
      %v798 = vadd.f32 %v581, %v797
      %v799 = vpop.f32.mrf.mxu0
      %v800 = vpop.f32.mrf.mxu0
      %v801 = vadd.f32 %v584, %v800
      %v802 = vpop.f32.mrf.mxu0
      %803 = vmatprep.mubr.bf16.mxu0 0
      %804 = vmatmul.mubr.bf16.gmra.mxu0 %v706
      %v805 = vpop.f32.mrf.mxu0
      %v806 = vadd.f32 %v589, %v805
      %v807 = vpop.f32.mrf.mxu0
      %v808 = vpop.f32.mrf.mxu0
      %v809 = vadd.f32 %v592, %v808
      %v810 = vpop.f32.mrf.mxu0
      %811 = vmatprep.mubr.bf16.mxu0 0
      %812 = vmatmul.mubr.bf16.gmra.mxu0 %v709
      %v813 = vpop.f32.mrf.mxu0
      %v814 = vadd.f32 %v597, %v813
      %v815 = vpop.f32.mrf.mxu0
      %v816 = vpop.f32.mrf.mxu0
      %v817 = vadd.f32 %v600, %v816
      %v818 = vpop.f32.mrf.mxu0
      %819 = vmatprep.mubr.bf16.mxu0 0
      %820 = vmatmul.mubr.bf16.gmra.mxu0 %v712
      %v821 = vpop.f32.mrf.mxu0
      %v822 = vadd.f32 %v605, %v821
      %v823 = vpop.f32.mrf.mxu0
      %v824 = vpop.f32.mrf.mxu0
      %v825 = vadd.f32 %v608, %v824
      %v826 = vpop.f32.mrf.mxu0
      %827 = vmatprep.mubr.bf16.mxu0 0
      %828 = vmatmul.mubr.bf16.gmra.mxu0 %v715
      %v829 = vpop.f32.mrf.mxu0
      %v830 = vadd.f32 %v613, %v829
      %v831 = vpop.f32.mrf.mxu0
      %v832 = vpop.f32.mrf.mxu0
      %v833 = vadd.f32 %v616, %v832
      %v834 = vpop.f32.mrf.mxu0
      %835 = vmatprep.mubr.bf16.mxu0 0
      %836 = vmatmul.mubr.bf16.gmra.mxu0 %v718
      %v837 = vpop.f32.mrf.mxu0
      %v838 = vadd.f32 %v621, %v837
      %v839 = vpop.f32.mrf.mxu0
      %v840 = vpop.f32.mrf.mxu0
      %v841 = vadd.f32 %v624, %v840
      %v842 = vpop.f32.mrf.mxu0
      %843 = vmatprep.mubr.bf16.mxu0 0
      %844 = vmatmul.mubr.bf16.gmra.mxu0 %v721
      %v845 = vpop.f32.mrf.mxu0
      %v846 = vadd.f32 %v629, %v845
      %v847 = vpop.f32.mrf.mxu0
      %v848 = vpop.f32.mrf.mxu0
      %v849 = vadd.f32 %v632, %v848
      %v850 = vpop.f32.mrf.mxu0
      %851 = vmatprep.mubr.bf16.mxu0 0
      %852 = vmatmul.mubr.bf16.gmra.mxu0 %v724
      %v853 = vpop.f32.mrf.mxu0
      %v854 = vadd.f32 %v637, %v853
      %v855 = vpop.f32.mrf.mxu0
      %v856 = vpop.f32.mrf.mxu0
      %v857 = vadd.f32 %v640, %v856
      %v858 = vpop.f32.mrf.mxu0
      %859 = vmatprep.mubr.bf16.mxu0 0
      %860 = vmatmul.mubr.bf16.gmra.mxu0 %v727
      %v861 = vpop.f32.mrf.mxu0
      %v862 = vadd.f32 %v645, %v861
      %v863 = vpop.f32.mrf.mxu0
      %v864 = vpop.f32.mrf.mxu0
      %v865 = vadd.f32 %v648, %v864
      %v866 = vpop.f32.mrf.mxu0
      %867 = vmatprep.mubr.bf16.mxu0 0
      %868 = vmatmul.mubr.bf16.gmra.mxu0 %v730
      %v869 = vpop.f32.mrf.mxu0
      %v870 = vadd.f32 %v653, %v869
      %v871 = vpop.f32.mrf.mxu0
      %v872 = vpop.f32.mrf.mxu0
      %v873 = vadd.f32 %v656, %v872
      %v874 = vpop.f32.mrf.mxu0
      %875 = vmatprep.mubr.bf16.mxu0 0
      %876 = vmatmul.mubr.bf16.gmra.mxu0 %v733
      %v877 = vpop.f32.mrf.mxu0
      %v878 = vadd.f32 %v661, %v877
      %v879 = vpop.f32.mrf.mxu0
      %v880 = vpop.f32.mrf.mxu0
      %v881 = vadd.f32 %v664, %v880
      %v882 = vpop.f32.mrf.mxu0
      %883 = vmatprep.mubr.bf16.mxu0 0
      %884 = vmatmul.mubr.bf16.gmra.mxu0 %v736
      %v885 = vpop.f32.mrf.mxu0
      %v886 = vadd.f32 %v669, %v885
      %v887 = vpop.f32.mrf.mxu0
      %v888 = vpop.f32.mrf.mxu0
      %v889 = vadd.f32 %v672, %v888
      %v890 = vpop.f32.mrf.mxu0
      %891 = vmatprep.mubr.bf16.mxu0 0
      %892 = vmatmul.mubr.bf16.gmra.mxu0 %v739
      %v893 = vpop.f32.mrf.mxu0
      %v894 = vadd.f32 %v677, %v893
      %v895 = vpop.f32.mrf.mxu0
      %v896 = vpop.f32.mrf.mxu0
      %v897 = vadd.f32 %v680, %v896
      %v898 = vpop.f32.mrf.mxu0
      %899 = vmatprep.mubr.bf16.mxu0 0
      %900 = vmatmul.mubr.bf16.gmra.mxu0 %v742
      %v901 = vpop.f32.mrf.mxu0
      %v902 = vadd.f32 %v685, %v901
      %v903 = vpop.f32.mrf.mxu0
      %v904 = vpop.f32.mrf.mxu0
      %v905 = vadd.f32 %v688, %v904
      %v906 = vpop.f32.mrf.mxu0
      %907 = vdwg.mxu0
      %v908 = vpack.c.bf16 %v272, %v271
      %s909 = scalar_lea.vmem %s1, 16
      %v910 = vld [vmem:[%s909] sm:$0xf]
      %v911 = vld [vmem:[%s909 + $0x4] sm:$0x3]
      %v914 = vunpack.c.l.b16 %v910
      %v915 = vunpack.c.l.b16 %v911
      %v916 = vpack.c.b16 %v915, %v914
      %v918 = vsel %vm477, %v908, 0
      %v921 = vsel %vm526, %v916, 0
      %923 = vmatprep.subr.bf16.mxu0 0
      %924 = vmatpush1.bf16.msra.mxu0 0
      %925 = vmatprep.subr.bf16.mxu0 0
      %926 = vmatpush1.bf16.msra.mxu0 0
      %927 = vmatprep.subr.bf16.mxu0 0
      %928 = vmatpush1.bf16.msra.mxu0 0
      %929 = vmatprep.subr.bf16.mxu0 0
      %930 = vmatpush1.bf16.msra.mxu0 0
      %931 = vmatprep.subr.bf16.mxu0 0
      %932 = vmatpush1.bf16.msra.mxu0 0
      %933 = vmatprep.subr.bf16.mxu0 0
      %934 = vmatpush1.bf16.msra.mxu0 0
      %935 = vmatprep.subr.bf16.mxu0 0
      %936 = vmatpush1.bf16.msra.mxu0 0
      %937 = vmatprep.subr.bf16.mxu0 0
      %938 = vmatpush1.bf16.msra.mxu0 %v921
      %939 = vmatprep.subr.bf16.mxu0 0
      %940 = vmatpush2.bf16.msra.mxu0 0
      %941 = vmatprep.subr.bf16.mxu0 0
      %942 = vmatpush2.bf16.msra.mxu0 0
      %943 = vmatprep.subr.bf16.mxu0 0
      %944 = vmatpush2.bf16.msra.mxu0 0
      %945 = vmatprep.subr.bf16.mxu0 0
      %946 = vmatpush2.bf16.msra.mxu0 0
      %947 = vmatprep.subr.bf16.mxu0 0
      %948 = vmatpush2.bf16.msra.mxu0 0
      %949 = vmatprep.subr.bf16.mxu0 0
      %950 = vmatpush2.bf16.msra.mxu0 0
      %951 = vmatprep.subr.bf16.mxu0 0
      %952 = vmatpush2.bf16.msra.mxu0 0
      %953 = vmatprep.subr.bf16.mxu0 0
      %954 = vmatpush2.bf16.msra.mxu0 0
      %955 = vmatprep.mubr.bf16.mxu0 0
      %956 = vmatmul.mubr.bf16.gmra.mxu0 %v700
      %v957 = vpop.f32.mrf.mxu0
      %v958 = vadd.f32 0.0, %v957
      %v959 = vpop.f32.mrf.mxu0
      %v960 = vpop.f32.mrf.mxu0
      %v961 = vadd.f32 0.0, %v960
      %v962 = vpop.f32.mrf.mxu0
      %963 = vmatprep.mubr.bf16.mxu0 0
      %964 = vmatmul.mubr.bf16.gmra.mxu0 %v703
      %v965 = vpop.f32.mrf.mxu0
      %v966 = vadd.f32 0.0, %v965
      %v967 = vpop.f32.mrf.mxu0
      %v968 = vpop.f32.mrf.mxu0
      %v969 = vadd.f32 0.0, %v968
      %v970 = vpop.f32.mrf.mxu0
      %971 = vmatprep.mubr.bf16.mxu0 0
      %972 = vmatmul.mubr.bf16.gmra.mxu0 %v706
      %v973 = vpop.f32.mrf.mxu0
      %v974 = vadd.f32 0.0, %v973
      %v975 = vpop.f32.mrf.mxu0
      %v976 = vpop.f32.mrf.mxu0
      %v977 = vadd.f32 0.0, %v976
      %v978 = vpop.f32.mrf.mxu0
      %979 = vmatprep.mubr.bf16.mxu0 0
      %980 = vmatmul.mubr.bf16.gmra.mxu0 %v709
      %v981 = vpop.f32.mrf.mxu0
      %v982 = vadd.f32 0.0, %v981
      %v983 = vpop.f32.mrf.mxu0
      %v984 = vpop.f32.mrf.mxu0
      %v985 = vadd.f32 0.0, %v984
      %v986 = vpop.f32.mrf.mxu0
      %987 = vmatprep.mubr.bf16.mxu0 0
      %988 = vmatmul.mubr.bf16.gmra.mxu0 %v712
      %v989 = vpop.f32.mrf.mxu0
      %v990 = vadd.f32 0.0, %v989
      %v991 = vpop.f32.mrf.mxu0
      %v992 = vpop.f32.mrf.mxu0
      %v993 = vadd.f32 0.0, %v992
      %v994 = vpop.f32.mrf.mxu0
      %995 = vmatprep.mubr.bf16.mxu0 0
      %996 = vmatmul.mubr.bf16.gmra.mxu0 %v715
      %v997 = vpop.f32.mrf.mxu0
      %v998 = vadd.f32 0.0, %v997
      %v999 = vpop.f32.mrf.mxu0
      %v1000 = vpop.f32.mrf.mxu0
      %v1001 = vadd.f32 0.0, %v1000
      %v1002 = vpop.f32.mrf.mxu0
      %1003 = vmatprep.mubr.bf16.mxu0 0
      %1004 = vmatmul.mubr.bf16.gmra.mxu0 %v718
      %v1005 = vpop.f32.mrf.mxu0
      %v1006 = vadd.f32 0.0, %v1005
      %v1007 = vpop.f32.mrf.mxu0
      %v1008 = vpop.f32.mrf.mxu0
      %v1009 = vadd.f32 0.0, %v1008
      %v1010 = vpop.f32.mrf.mxu0
      %1011 = vmatprep.mubr.bf16.mxu0 0
      %1012 = vmatmul.mubr.bf16.gmra.mxu0 %v721
      %v1013 = vpop.f32.mrf.mxu0
      %v1014 = vadd.f32 0.0, %v1013
      %v1015 = vpop.f32.mrf.mxu0
      %v1016 = vpop.f32.mrf.mxu0
      %v1017 = vadd.f32 0.0, %v1016
      %v1018 = vpop.f32.mrf.mxu0
      %1019 = vmatprep.mubr.bf16.mxu0 0
      %1020 = vmatmul.mubr.bf16.gmra.mxu0 %v724
      %v1021 = vpop.f32.mrf.mxu0
      %v1022 = vadd.f32 0.0, %v1021
      %v1023 = vpop.f32.mrf.mxu0
      %v1024 = vpop.f32.mrf.mxu0
      %v1025 = vadd.f32 0.0, %v1024
      %v1026 = vpop.f32.mrf.mxu0
      %1027 = vmatprep.mubr.bf16.mxu0 0
      %1028 = vmatmul.mubr.bf16.gmra.mxu0 %v727
      %v1029 = vpop.f32.mrf.mxu0
      %v1030 = vadd.f32 0.0, %v1029
      %v1031 = vpop.f32.mrf.mxu0
      %v1032 = vpop.f32.mrf.mxu0
      %v1033 = vadd.f32 0.0, %v1032
      %v1034 = vpop.f32.mrf.mxu0
      %1035 = vmatprep.mubr.bf16.mxu0 0
      %1036 = vmatmul.mubr.bf16.gmra.mxu0 %v730
      %v1037 = vpop.f32.mrf.mxu0
      %v1038 = vadd.f32 0.0, %v1037
      %v1039 = vpop.f32.mrf.mxu0
      %v1040 = vpop.f32.mrf.mxu0
      %v1041 = vadd.f32 0.0, %v1040
      %v1042 = vpop.f32.mrf.mxu0
      %1043 = vmatprep.mubr.bf16.mxu0 0
      %1044 = vmatmul.mubr.bf16.gmra.mxu0 %v733
      %v1045 = vpop.f32.mrf.mxu0
      %v1046 = vadd.f32 0.0, %v1045
      %v1047 = vpop.f32.mrf.mxu0
      %v1048 = vpop.f32.mrf.mxu0
      %v1049 = vadd.f32 0.0, %v1048
      %v1050 = vpop.f32.mrf.mxu0
      %1051 = vmatprep.mubr.bf16.mxu0 0
      %1052 = vmatmul.mubr.bf16.gmra.mxu0 %v736
      %v1053 = vpop.f32.mrf.mxu0
      %v1054 = vadd.f32 0.0, %v1053
      %v1055 = vpop.f32.mrf.mxu0
      %v1056 = vpop.f32.mrf.mxu0
      %v1057 = vadd.f32 0.0, %v1056
      %v1058 = vpop.f32.mrf.mxu0
      %1059 = vmatprep.mubr.bf16.mxu0 0
      %1060 = vmatmul.mubr.bf16.gmra.mxu0 %v739
      %v1061 = vpop.f32.mrf.mxu0
      %v1062 = vadd.f32 0.0, %v1061
      %v1063 = vpop.f32.mrf.mxu0
      %v1064 = vpop.f32.mrf.mxu0
      %v1065 = vadd.f32 0.0, %v1064
      %v1066 = vpop.f32.mrf.mxu0
      %1067 = vmatprep.mubr.bf16.mxu0 0
      %1068 = vmatmul.mubr.bf16.gmra.mxu0 %v742
      %v1069 = vpop.f32.mrf.mxu0
      %v1070 = vadd.f32 0.0, %v1069
      %v1071 = vpop.f32.mrf.mxu0
      %v1072 = vpop.f32.mrf.mxu0
      %v1073 = vadd.f32 0.0, %v1072
      %v1074 = vpop.f32.mrf.mxu0
      %1075 = vmatprep.mubr.bf16.mxu0 0
      %1076 = vmatmul.mubr.bf16.gmra.mxu0 %v918
      %v1077 = vpop.f32.mrf.mxu0
      %v1078 = vadd.f32 0.0, %v1077
      %v1079 = vpop.f32.mrf.mxu0
      %v1080 = vpop.f32.mrf.mxu0
      %v1081 = vadd.f32 0.0, %v1080
      %v1082 = vpop.f32.mrf.mxu0
      %1083 = vdwg.mxu0
      %v1084 = vadd.f32 %v782, %v958
      %v1085 = vadd.f32 %v785, %v961
      %v1086 = vadd.f32 %v790, %v966
      %v1087 = vadd.f32 %v793, %v969
      %v1088 = vadd.f32 %v798, %v974
      %v1089 = vadd.f32 %v801, %v977
      %v1090 = vadd.f32 %v806, %v982
      %v1091 = vadd.f32 %v809, %v985
      %v1092 = vadd.f32 %v814, %v990
      %v1093 = vadd.f32 %v817, %v993
      %v1094 = vadd.f32 %v822, %v998
      %v1095 = vadd.f32 %v825, %v1001
      %v1096 = vadd.f32 %v830, %v1006
      %v1097 = vadd.f32 %v833, %v1009
      %v1098 = vadd.f32 %v838, %v1014
      %v1099 = vadd.f32 %v841, %v1017
      %v1100 = vadd.f32 %v846, %v1022
      %v1101 = vadd.f32 %v849, %v1025
      %v1102 = vadd.f32 %v854, %v1030
      %v1103 = vadd.f32 %v857, %v1033
      %v1104 = vadd.f32 %v862, %v1038
      %v1105 = vadd.f32 %v865, %v1041
      %v1106 = vadd.f32 %v870, %v1046
      %v1107 = vadd.f32 %v873, %v1049
      %v1108 = vadd.f32 %v878, %v1054
      %v1109 = vadd.f32 %v881, %v1057
      %v1110 = vadd.f32 %v886, %v1062
      %v1111 = vadd.f32 %v889, %v1065
      %v1112 = vadd.f32 %v894, %v1070
      %v1113 = vadd.f32 %v897, %v1073
      %v1114 = vadd.f32 %v902, %v1078
      %v1115 = vadd.f32 %v905, %v1081
      %v1119 = vrot.slane %v271, 1
      %v1120 = vrot.slane %v272, 1
      %v1121 = vsel %vm340, %v1119, %v1120
      %v1122 = vrot.slane %v273, 1
      %v1123 = vsel %vm340, %v1120, %v1122
      %v1126 = vpack.c.bf16 %v1123, %v1121
      %s1127 = scalar_lea.vmem %s1, 24
      %v1128 = vld [vmem:[%s1127] sm:$0xf]
      %v1129 = vld [vmem:[%s1127 + $0x4] sm:$0x3]
      %v1132 = vunpack.c.l.b16 %v1128
      %v1133 = vunpack.c.l.b16 %v1129
      %v1134 = vpack.c.b16 %v1133, %v1132
      %v1136 = vsel %vm477, %v1126, 0
      %v1139 = vsel %vm526, %v1134, 0
      %1141 = vmatprep.subr.bf16.mxu0 0
      %1142 = vmatpush1.bf16.msra.mxu0 0
      %1143 = vmatprep.subr.bf16.mxu0 0
      %1144 = vmatpush1.bf16.msra.mxu0 0
      %1145 = vmatprep.subr.bf16.mxu0 0
      %1146 = vmatpush1.bf16.msra.mxu0 0
      %1147 = vmatprep.subr.bf16.mxu0 0
      %1148 = vmatpush1.bf16.msra.mxu0 0
      %1149 = vmatprep.subr.bf16.mxu0 0
      %1150 = vmatpush1.bf16.msra.mxu0 0
      %1151 = vmatprep.subr.bf16.mxu0 0
      %1152 = vmatpush1.bf16.msra.mxu0 0
      %1153 = vmatprep.subr.bf16.mxu0 0
      %1154 = vmatpush1.bf16.msra.mxu0 0
      %1155 = vmatprep.subr.bf16.mxu0 0
      %1156 = vmatpush1.bf16.msra.mxu0 %v1139
      %1157 = vmatprep.subr.bf16.mxu0 0
      %1158 = vmatpush2.bf16.msra.mxu0 0
      %1159 = vmatprep.subr.bf16.mxu0 0
      %1160 = vmatpush2.bf16.msra.mxu0 0
      %1161 = vmatprep.subr.bf16.mxu0 0
      %1162 = vmatpush2.bf16.msra.mxu0 0
      %1163 = vmatprep.subr.bf16.mxu0 0
      %1164 = vmatpush2.bf16.msra.mxu0 0
      %1165 = vmatprep.subr.bf16.mxu0 0
      %1166 = vmatpush2.bf16.msra.mxu0 0
      %1167 = vmatprep.subr.bf16.mxu0 0
      %1168 = vmatpush2.bf16.msra.mxu0 0
      %1169 = vmatprep.subr.bf16.mxu0 0
      %1170 = vmatpush2.bf16.msra.mxu0 0
      %1171 = vmatprep.subr.bf16.mxu0 0
      %1172 = vmatpush2.bf16.msra.mxu0 0
      %1173 = vmatprep.mubr.bf16.mxu0 0
      %1174 = vmatmul.mubr.bf16.gmra.mxu0 %v482
      %v1175 = vpop.f32.mrf.mxu0
      %v1176 = vadd.f32 0.0, %v1175
      %v1177 = vpop.f32.mrf.mxu0
      %v1178 = vpop.f32.mrf.mxu0
      %v1179 = vadd.f32 0.0, %v1178
      %v1180 = vpop.f32.mrf.mxu0
      %1181 = vmatprep.mubr.bf16.mxu0 0
      %1182 = vmatmul.mubr.bf16.gmra.mxu0 %v485
      %v1183 = vpop.f32.mrf.mxu0
      %v1184 = vadd.f32 0.0, %v1183
      %v1185 = vpop.f32.mrf.mxu0
      %v1186 = vpop.f32.mrf.mxu0
      %v1187 = vadd.f32 0.0, %v1186
      %v1188 = vpop.f32.mrf.mxu0
      %1189 = vmatprep.mubr.bf16.mxu0 0
      %1190 = vmatmul.mubr.bf16.gmra.mxu0 %v488
      %v1191 = vpop.f32.mrf.mxu0
      %v1192 = vadd.f32 0.0, %v1191
      %v1193 = vpop.f32.mrf.mxu0
      %v1194 = vpop.f32.mrf.mxu0
      %v1195 = vadd.f32 0.0, %v1194
      %v1196 = vpop.f32.mrf.mxu0
      %1197 = vmatprep.mubr.bf16.mxu0 0
      %1198 = vmatmul.mubr.bf16.gmra.mxu0 %v491
      %v1199 = vpop.f32.mrf.mxu0
      %v1200 = vadd.f32 0.0, %v1199
      %v1201 = vpop.f32.mrf.mxu0
      %v1202 = vpop.f32.mrf.mxu0
      %v1203 = vadd.f32 0.0, %v1202
      %v1204 = vpop.f32.mrf.mxu0
      %1205 = vmatprep.mubr.bf16.mxu0 0
      %1206 = vmatmul.mubr.bf16.gmra.mxu0 %v494
      %v1207 = vpop.f32.mrf.mxu0
      %v1208 = vadd.f32 0.0, %v1207
      %v1209 = vpop.f32.mrf.mxu0
      %v1210 = vpop.f32.mrf.mxu0
      %v1211 = vadd.f32 0.0, %v1210
      %v1212 = vpop.f32.mrf.mxu0
      %1213 = vmatprep.mubr.bf16.mxu0 0
      %1214 = vmatmul.mubr.bf16.gmra.mxu0 %v497
      %v1215 = vpop.f32.mrf.mxu0
      %v1216 = vadd.f32 0.0, %v1215
      %v1217 = vpop.f32.mrf.mxu0
      %v1218 = vpop.f32.mrf.mxu0
      %v1219 = vadd.f32 0.0, %v1218
      %v1220 = vpop.f32.mrf.mxu0
      %1221 = vmatprep.mubr.bf16.mxu0 0
      %1222 = vmatmul.mubr.bf16.gmra.mxu0 %v500
      %v1223 = vpop.f32.mrf.mxu0
      %v1224 = vadd.f32 0.0, %v1223
      %v1225 = vpop.f32.mrf.mxu0
      %v1226 = vpop.f32.mrf.mxu0
      %v1227 = vadd.f32 0.0, %v1226
      %v1228 = vpop.f32.mrf.mxu0
      %1229 = vmatprep.mubr.bf16.mxu0 0
      %1230 = vmatmul.mubr.bf16.gmra.mxu0 %v503
      %v1231 = vpop.f32.mrf.mxu0
      %v1232 = vadd.f32 0.0, %v1231
      %v1233 = vpop.f32.mrf.mxu0
      %v1234 = vpop.f32.mrf.mxu0
      %v1235 = vadd.f32 0.0, %v1234
      %v1236 = vpop.f32.mrf.mxu0
      %1237 = vmatprep.mubr.bf16.mxu0 0
      %1238 = vmatmul.mubr.bf16.gmra.mxu0 %v506
      %v1239 = vpop.f32.mrf.mxu0
      %v1240 = vadd.f32 0.0, %v1239
      %v1241 = vpop.f32.mrf.mxu0
      %v1242 = vpop.f32.mrf.mxu0
      %v1243 = vadd.f32 0.0, %v1242
      %v1244 = vpop.f32.mrf.mxu0
      %1245 = vmatprep.mubr.bf16.mxu0 0
      %1246 = vmatmul.mubr.bf16.gmra.mxu0 %v509
      %v1247 = vpop.f32.mrf.mxu0
      %v1248 = vadd.f32 0.0, %v1247
      %v1249 = vpop.f32.mrf.mxu0
      %v1250 = vpop.f32.mrf.mxu0
      %v1251 = vadd.f32 0.0, %v1250
      %v1252 = vpop.f32.mrf.mxu0
      %1253 = vmatprep.mubr.bf16.mxu0 0
      %1254 = vmatmul.mubr.bf16.gmra.mxu0 %v512
      %v1255 = vpop.f32.mrf.mxu0
      %v1256 = vadd.f32 0.0, %v1255
      %v1257 = vpop.f32.mrf.mxu0
      %v1258 = vpop.f32.mrf.mxu0
      %v1259 = vadd.f32 0.0, %v1258
      %v1260 = vpop.f32.mrf.mxu0
      %1261 = vmatprep.mubr.bf16.mxu0 0
      %1262 = vmatmul.mubr.bf16.gmra.mxu0 %v515
      %v1263 = vpop.f32.mrf.mxu0
      %v1264 = vadd.f32 0.0, %v1263
      %v1265 = vpop.f32.mrf.mxu0
      %v1266 = vpop.f32.mrf.mxu0
      %v1267 = vadd.f32 0.0, %v1266
      %v1268 = vpop.f32.mrf.mxu0
      %1269 = vmatprep.mubr.bf16.mxu0 0
      %1270 = vmatmul.mubr.bf16.gmra.mxu0 %v518
      %v1271 = vpop.f32.mrf.mxu0
      %v1272 = vadd.f32 0.0, %v1271
      %v1273 = vpop.f32.mrf.mxu0
      %v1274 = vpop.f32.mrf.mxu0
      %v1275 = vadd.f32 0.0, %v1274
      %v1276 = vpop.f32.mrf.mxu0
      %1277 = vmatprep.mubr.bf16.mxu0 0
      %1278 = vmatmul.mubr.bf16.gmra.mxu0 %v521
      %v1279 = vpop.f32.mrf.mxu0
      %v1280 = vadd.f32 0.0, %v1279
      %v1281 = vpop.f32.mrf.mxu0
      %v1282 = vpop.f32.mrf.mxu0
      %v1283 = vadd.f32 0.0, %v1282
      %v1284 = vpop.f32.mrf.mxu0
      %1285 = vmatprep.mubr.bf16.mxu0 0
      %1286 = vmatmul.mubr.bf16.gmra.mxu0 %v524
      %v1287 = vpop.f32.mrf.mxu0
      %v1288 = vadd.f32 0.0, %v1287
      %v1289 = vpop.f32.mrf.mxu0
      %v1290 = vpop.f32.mrf.mxu0
      %v1291 = vadd.f32 0.0, %v1290
      %v1292 = vpop.f32.mrf.mxu0
      %1293 = vmatprep.mubr.bf16.mxu0 0
      %1294 = vmatmul.mubr.bf16.gmra.mxu0 %v1136
      %v1295 = vpop.f32.mrf.mxu0
      %v1296 = vadd.f32 0.0, %v1295
      %v1297 = vpop.f32.mrf.mxu0
      %v1298 = vpop.f32.mrf.mxu0
      %v1299 = vadd.f32 0.0, %v1298
      %v1300 = vpop.f32.mrf.mxu0
      %1301 = vdwg.mxu0
      %v1302 = vadd.f32 %v1084, %v1176
      %v1303 = vadd.f32 %v1085, %v1179
      %v1304 = vadd.f32 %v1086, %v1184
      %v1305 = vadd.f32 %v1087, %v1187
      %v1306 = vadd.f32 %v1088, %v1192
      %v1307 = vadd.f32 %v1089, %v1195
      %v1308 = vadd.f32 %v1090, %v1200
      %v1309 = vadd.f32 %v1091, %v1203
      %v1310 = vadd.f32 %v1092, %v1208
      %v1311 = vadd.f32 %v1093, %v1211
      %v1312 = vadd.f32 %v1094, %v1216
      %v1313 = vadd.f32 %v1095, %v1219
      %v1314 = vadd.f32 %v1096, %v1224
      %v1315 = vadd.f32 %v1097, %v1227
      %v1316 = vadd.f32 %v1098, %v1232
      %v1317 = vadd.f32 %v1099, %v1235
      %v1318 = vadd.f32 %v1100, %v1240
      %v1319 = vadd.f32 %v1101, %v1243
      %v1320 = vadd.f32 %v1102, %v1248
      %v1321 = vadd.f32 %v1103, %v1251
      %v1322 = vadd.f32 %v1104, %v1256
      %v1323 = vadd.f32 %v1105, %v1259
      %v1324 = vadd.f32 %v1106, %v1264
      %v1325 = vadd.f32 %v1107, %v1267
      %v1326 = vadd.f32 %v1108, %v1272
      %v1327 = vadd.f32 %v1109, %v1275
      %v1328 = vadd.f32 %v1110, %v1280
      %v1329 = vadd.f32 %v1111, %v1283
      %v1330 = vadd.f32 %v1112, %v1288
      %v1331 = vadd.f32 %v1113, %v1291
      %v1332 = vadd.f32 %v1114, %v1296
      %v1333 = vadd.f32 %v1115, %v1299
      %v1334 = vld [vmem:[%s2] sm:$0x1]
      %v1336 = vlaneseq
      %v1337 = vshrl.u32 %v1336, 7
      %v1338 = vsub.s32 0, %v1337
      %v1339 = vrot.slane %v1334, %v1338
      %v1341 = vadd.f32 %v1302, %v1339
      %v1342 = vadd.f32 %v1303, %v1339
      %v1343 = vadd.f32 %v1304, %v1339
      %v1344 = vadd.f32 %v1305, %v1339
      %v1345 = vadd.f32 %v1306, %v1339
      %v1346 = vadd.f32 %v1307, %v1339
      %v1347 = vadd.f32 %v1308, %v1339
      %v1348 = vadd.f32 %v1309, %v1339
      %v1349 = vadd.f32 %v1310, %v1339
      %v1350 = vadd.f32 %v1311, %v1339
      %v1351 = vadd.f32 %v1312, %v1339
      %v1352 = vadd.f32 %v1313, %v1339
      %v1353 = vadd.f32 %v1314, %v1339
      %v1354 = vadd.f32 %v1315, %v1339
      %v1355 = vadd.f32 %v1316, %v1339
      %v1356 = vadd.f32 %v1317, %v1339
      %v1357 = vadd.f32 %v1318, %v1339
      %v1358 = vadd.f32 %v1319, %v1339
      %v1359 = vadd.f32 %v1320, %v1339
      %v1360 = vadd.f32 %v1321, %v1339
      %v1361 = vadd.f32 %v1322, %v1339
      %v1362 = vadd.f32 %v1323, %v1339
      %v1363 = vadd.f32 %v1324, %v1339
      %v1364 = vadd.f32 %v1325, %v1339
      %v1365 = vadd.f32 %v1326, %v1339
      %v1366 = vadd.f32 %v1327, %v1339
      %v1367 = vadd.f32 %v1328, %v1339
      %v1368 = vadd.f32 %v1329, %v1339
      %v1369 = vadd.f32 %v1330, %v1339
      %v1370 = vadd.f32 %v1331, %v1339
      %v1371 = vadd.f32 %v1332, %v1339
      %v1372 = vadd.f32 %v1333, %v1339
      %v1373 = vmax.f32 %v1341, 0.0
      %v1374 = vmax.f32 %v1342, 0.0
      %v1375 = vmax.f32 %v1343, 0.0
      %v1376 = vmax.f32 %v1344, 0.0
      %v1377 = vmax.f32 %v1345, 0.0
      %v1378 = vmax.f32 %v1346, 0.0
      %v1379 = vmax.f32 %v1347, 0.0
      %v1380 = vmax.f32 %v1348, 0.0
      %v1381 = vmax.f32 %v1349, 0.0
      %v1382 = vmax.f32 %v1350, 0.0
      %v1383 = vmax.f32 %v1351, 0.0
      %v1384 = vmax.f32 %v1352, 0.0
      %v1385 = vmax.f32 %v1353, 0.0
      %v1386 = vmax.f32 %v1354, 0.0
      %v1387 = vmax.f32 %v1355, 0.0
      %v1388 = vmax.f32 %v1356, 0.0
      %v1389 = vmax.f32 %v1357, 0.0
      %v1390 = vmax.f32 %v1358, 0.0
      %v1391 = vmax.f32 %v1359, 0.0
      %v1392 = vmax.f32 %v1360, 0.0
      %v1393 = vmax.f32 %v1361, 0.0
      %v1394 = vmax.f32 %v1362, 0.0
      %v1395 = vmax.f32 %v1363, 0.0
      %v1396 = vmax.f32 %v1364, 0.0
      %v1397 = vmax.f32 %v1365, 0.0
      %v1398 = vmax.f32 %v1366, 0.0
      %v1399 = vmax.f32 %v1367, 0.0
      %v1400 = vmax.f32 %v1368, 0.0
      %v1401 = vmax.f32 %v1369, 0.0
      %v1402 = vmax.f32 %v1370, 0.0
      %v1403 = vmax.f32 %v1371, 0.0
      %v1404 = vmax.f32 %v1372, 0.0
      %vm1405 = vcmask 130048
      %1406 = vst.msk [vmem:[%s170] sm:$0xff] %vm1405, %v1373
      %1407 = vst.msk [vmem:[%s170 + $0x8] sm:$0xff] %vm1405, %v1374
      %1408 = vst.msk [vmem:[%s170 + $0x10] sm:$0xff] %vm1405, %v1375
      %1409 = vst.msk [vmem:[%s170 + $0x18] sm:$0xff] %vm1405, %v1376
      %1410 = vst.msk [vmem:[%s170 + $0x20] sm:$0xff] %vm1405, %v1377
      %1411 = vst.msk [vmem:[%s170 + $0x28] sm:$0xff] %vm1405, %v1378
      %1412 = vst.msk [vmem:[%s170 + $0x30] sm:$0xff] %vm1405, %v1379
      %1413 = vst.msk [vmem:[%s170 + $0x38] sm:$0xff] %vm1405, %v1380
      %1414 = vst.msk [vmem:[%s170 + $0x40] sm:$0xff] %vm1405, %v1381
      %1415 = vst.msk [vmem:[%s170 + $0x48] sm:$0xff] %vm1405, %v1382
      %1416 = vst.msk [vmem:[%s170 + $0x50] sm:$0xff] %vm1405, %v1383
      %1417 = vst.msk [vmem:[%s170 + $0x58] sm:$0xff] %vm1405, %v1384
      %1418 = vst.msk [vmem:[%s170 + $0x60] sm:$0xff] %vm1405, %v1385
      %1419 = vst.msk [vmem:[%s170 + $0x68] sm:$0xff] %vm1405, %v1386
      %1420 = vst.msk [vmem:[%s170 + $0x70] sm:$0xff] %vm1405, %v1387
      %1421 = vst.msk [vmem:[%s170 + $0x78] sm:$0xff] %vm1405, %v1388
      %1422 = vst.msk [vmem:[%s170 + $0x80] sm:$0xff] %vm1405, %v1389
      %1423 = vst.msk [vmem:[%s170 + $0x88] sm:$0xff] %vm1405, %v1390
      %1424 = vst.msk [vmem:[%s170 + $0x90] sm:$0xff] %vm1405, %v1391
      %1425 = vst.msk [vmem:[%s170 + $0x98] sm:$0xff] %vm1405, %v1392
      %1426 = vst.msk [vmem:[%s170 + $0xa0] sm:$0xff] %vm1405, %v1393
      %1427 = vst.msk [vmem:[%s170 + $0xa8] sm:$0xff] %vm1405, %v1394
      %1428 = vst.msk [vmem:[%s170 + $0xb0] sm:$0xff] %vm1405, %v1395
      %1429 = vst.msk [vmem:[%s170 + $0xb8] sm:$0xff] %vm1405, %v1396
      %1430 = vst.msk [vmem:[%s170 + $0xc0] sm:$0xff] %vm1405, %v1397
      %1431 = vst.msk [vmem:[%s170 + $0xc8] sm:$0xff] %vm1405, %v1398
      %1432 = vst.msk [vmem:[%s170 + $0xd0] sm:$0xff] %vm1405, %v1399
      %1433 = vst.msk [vmem:[%s170 + $0xd8] sm:$0xff] %vm1405, %v1400
      %1434 = vst.msk [vmem:[%s170 + $0xe0] sm:$0xff] %vm1405, %v1401
      %1435 = vst.msk [vmem:[%s170 + $0xe8] sm:$0xff] %vm1405, %v1402
      %1436 = vst.msk [vmem:[%s170 + $0xf0] sm:$0xff] %vm1405, %v1403
      %1437 = vst.msk [vmem:[%s170 + $0xf8] sm:$0xff] %vm1405, %v1404
      %p1438 = scmp.lt.s32.totalorder %s14, 3
      %s1439 = scalar_select %p1438, %s14, 3
      %s1440 = smul.addr %s1439, 32
      %s1441 = smul.addr %s1440, 8
      %s1442 = scalar_lea.vmem %s3, %s1441
      // Predicated region
      $region33: #{run.8} parent=31 // pred_check
        %p1443 = pneg %p100
      $region34: #{run.8} parent=31 // pred_check_branch
        %1445 = sbr.rel (%p1443) target = $region36
      $region35: #{run.8} parent=31 // pred_region
        _
      $region36: #{run.8} parent=31 // pred_fallthru
        _
    $region32: #{run.8} parent=5 // pred_fallthru
      _
    %p1446 = scmp.le.s32.totalorder 2, %s9
    // Predicated region
    $region37: #{run.8} parent=5 // pred_check
      %p1447 = pneg %p1446
    $region38: #{run.8} parent=5 // pred_check_branch
      %1449 = sbr.rel (%p1447) target = $region40
    $region39: #{run.8} parent=5 // pred_region
      %s1450 = ssub.s32 %s9, 2
      // Predicated region
      $region41: #{run.8} parent=39 // pred_check
        %p1451 = pneg %p106
      $region42: #{run.8} parent=39 // pred_check_branch
        %1453 = sbr.rel (%p1451) target = $region44
      $region43: #{run.8} parent=39 // pred_region
        %p1454 = scmp.lt.s32.totalorder %s15, 3
        %s1455 = scalar_select %p1454, %s15, 3
        %s1456 = smul.addr %s1455, 32
        %s1457 = smul.addr %s1456, 8
        %s1458 = scalar_lea.vmem %s3, %s1457
      $region44: #{run.8} parent=39 // pred_fallthru
        _
    $region40: #{run.8} parent=5 // pred_fallthru
      _
  $region6: #{run.8} parent=0 // loop_footer
    %s13 = sadd.s32 1, %s9
  $region7: #{run.8} parent=0 // loop_footer_branch
    %8 = sbr.rel target = $region3
  $region8: #{run.8} parent=0 // loop_exit
    _

// kernel: run.9
$region0: #{run.9}
  #allocation0 [shape = 'u32[]', space=smem, size = 0x4, offset = 0x4, fixed_abs, tag = 'smem constant byte address 0x4 - core index']
  #allocation1 [shape = 'u32[144,128]{1,0:T(1,128)}', space=vmem, size = 0x12000, scoped, tag = 'internal scratch']
  %s0 = inlined_call_operand.vmem [shape: bf16[4,9,9,64], index: 0, kind: input, shape index: {}]
  %s1 = inlined_call_operand.vmem [shape: bf16[4,64,32], index: 1, kind: input, shape index: {}]
  %s2 = inlined_call_operand.vmem [shape: f32[1,32], index: 2, kind: input, shape index: {}]
  %s3 = inlined_call_operand.vmem [shape: f32[4,64,32], index: 3, kind: output, shape index: {}]
  %s4 = sld [smem:[#allocation0]]
  $region45: #{run.9} parent=0
    _
  %s6 = ssub.s32 1, %s4
  %s7 = scalar_select 0, %s6, %s4
  loop: start=0, step=1, limit=6
  $region2: #{run.9} parent=0 // loop_pre_header
    _
  $region3: #{run.9} parent=0 // loop_header
    %s9 = sphi 0, %s13
    %p10 = scmp.ge.s32.totalorder %s9, 6
    %s19 = sphi 0, %s21
    %s22 = sphi 0, %s19
    %s23 = sphi 0, %s22
    %s39 = sphi 0, %s23
    %s43 = sphi 0, %s43
    %s45 = sphi 0, %s43
    %s46 = sphi 0, %s45
    %s60 = sphi 0, %s46
    %s64 = sphi 0, %s64
    %s66 = sphi 0, %s64
    %s67 = sphi 0, %s66
    %s81 = sphi 0, %s67
    %s87 = sphi 0, %s89
    %s90 = sphi 0, %s87
    %s91 = sphi 0, %s90
    %s107 = sphi 0, %s91
  $region4: #{run.9} parent=0 // loop_header_branch
    %12 = sbr.rel (%p10) target = $region8
  $region5: #{run.9} parent=0 // loop_body
    %s14 = ssub.s32 %s9, 1
    %s15 = ssub.s32 %s9, 2
    %s16 = sadd.s32 %s9, 1
    %s17 = ssub.s32 %s9, %s16
    %p18 = scmp.eq.s32.totalorder %s17, 0
    %s20 = sadd.s32 %s19, 1
    %s21 = scalar_select %p18, %s19, %s20
    %p24 = pneg %p18
    %p25 = scmp.eq.s32.totalorder %s9, 3
    %p26 = por %p24, %p25
    %p27 = scmp.ne.s32.totalorder %s19, %s22
    %p28 = scmp.eq.s32.totalorder %s9, 0
    %p29 = por %p27, %p28
    %p30 = scmp.ne.s32.totalorder %s19, %s22
    %p31 = scmp.eq.s32.totalorder %s14, 3
    %p32 = por %p30, %p31
    %p33 = scmp.ne.s32.totalorder %s22, %s23
    %p34 = scmp.eq.s32.totalorder %s14, 0
    %p35 = por %p33, %p34
    %p36 = scmp.ne.s32.totalorder %s22, %s23
    %p37 = scmp.eq.s32.totalorder %s15, 3
    %p38 = por %p36, %p37
    %p40 = scmp.ne.s32.totalorder %s23, %s39
    %p41 = scmp.eq.s32.totalorder %s15, 0
    %p42 = por %p40, %p41
    %s44 = sadd.s32 %s43, 1
    %p47 = scmp.eq.s32.totalorder %s9, 3
    %p48 = scmp.ne.s32.totalorder %s43, %s45
    %p49 = scmp.eq.s32.totalorder %s9, 0
    %p50 = por %p48, %p49
    %p51 = scmp.ne.s32.totalorder %s43, %s45
    %p52 = scmp.eq.s32.totalorder %s14, 3
    %p53 = por %p51, %p52
    %p54 = scmp.ne.s32.totalorder %s45, %s46
    %p55 = scmp.eq.s32.totalorder %s14, 0
    %p56 = por %p54, %p55
    %p57 = scmp.ne.s32.totalorder %s45, %s46
    %p58 = scmp.eq.s32.totalorder %s15, 3
    %p59 = por %p57, %p58
    %p61 = scmp.ne.s32.totalorder %s46, %s60
    %p62 = scmp.eq.s32.totalorder %s15, 0
    %p63 = por %p61, %p62
    %s65 = sadd.s32 %s64, 1
    %p68 = scmp.eq.s32.totalorder %s9, 3
    %p69 = scmp.ne.s32.totalorder %s64, %s66
    %p70 = scmp.eq.s32.totalorder %s9, 0
    %p71 = por %p69, %p70
    %p72 = scmp.ne.s32.totalorder %s64, %s66
    %p73 = scmp.eq.s32.totalorder %s14, 3
    %p74 = por %p72, %p73
    %p75 = scmp.ne.s32.totalorder %s66, %s67
    %p76 = scmp.eq.s32.totalorder %s14, 0
    %p77 = por %p75, %p76
    %p78 = scmp.ne.s32.totalorder %s66, %s67
    %p79 = scmp.eq.s32.totalorder %s15, 3
    %p80 = por %p78, %p79
    %p82 = scmp.ne.s32.totalorder %s67, %s81
    %p83 = scmp.eq.s32.totalorder %s15, 0
    %p84 = por %p82, %p83
    %s85 = ssub.s32 %s9, %s16
    %p86 = scmp.eq.s32.totalorder %s85, 0
    %s88 = sadd.s32 %s87, 1
    %s89 = scalar_select %p86, %s87, %s88
    %p92 = pneg %p86
    %p93 = scmp.eq.s32.totalorder %s9, 3
    %p94 = por %p92, %p93
    %p95 = scmp.ne.s32.totalorder %s87, %s90
    %p96 = scmp.eq.s32.totalorder %s9, 0
    %p97 = por %p95, %p96
    %p98 = scmp.ne.s32.totalorder %s87, %s90
    %p99 = scmp.eq.s32.totalorder %s14, 3
    %p100 = por %p98, %p99
    %p101 = scmp.ne.s32.totalorder %s90, %s91
    %p102 = scmp.eq.s32.totalorder %s14, 0
    %p103 = por %p101, %p102
    %p104 = scmp.ne.s32.totalorder %s90, %s91
    %p105 = scmp.eq.s32.totalorder %s15, 3
    %p106 = por %p104, %p105
    %p108 = scmp.ne.s32.totalorder %s91, %s107
    %p109 = scmp.eq.s32.totalorder %s15, 0
    %p110 = por %p108, %p109
    %p111 = scmp.le.s32.totalorder 1, %s9
    %p112 = scmp.lt.s32.totalorder %s9, 5
    %p113 = pnand %p111, %p112
    %p114 = pneg %p113
    // Predicated region
    $region9: #{run.9} parent=5 // pred_check
      _
    $region10: #{run.9} parent=5 // pred_check_branch
      %116 = sbr.rel (%p113) target = $region12
    $region11: #{run.9} parent=5 // pred_region
      %s117 = ssub.s32 %s9, 1
      // Predicated region
      $region13: #{run.9} parent=11 // pred_check
        %p118 = pneg %p56
      $region14: #{run.9} parent=11 // pred_check_branch
        %120 = sbr.rel (%p118) target = $region16
      $region15: #{run.9} parent=11 // pred_region
        _
      $region16: #{run.9} parent=11 // pred_fallthru
        _
      // Predicated region
      $region17: #{run.9} parent=11 // pred_check
        %p121 = pneg %p77
      $region18: #{run.9} parent=11 // pred_check_branch
        %123 = sbr.rel (%p121) target = $region20
      $region19: #{run.9} parent=11 // pred_region
        _
      $region20: #{run.9} parent=11 // pred_fallthru
        _
    $region12: #{run.9} parent=5 // pred_fallthru
      _
    %p124 = scmp.lt.s32.totalorder %s9, 4
    // Predicated region
    $region21: #{run.9} parent=5 // pred_check
      %p125 = pneg %p124
    $region22: #{run.9} parent=5 // pred_check_branch
      %127 = sbr.rel (%p125) target = $region24
    $region23: #{run.9} parent=5 // pred_region
      // Predicated region
      $region25: #{run.9} parent=23 // pred_check
        %p128 = pneg %p29
      $region26: #{run.9} parent=23 // pred_check_branch
        %130 = sbr.rel (%p128) target = $region28
      $region27: #{run.9} parent=23 // pred_region
        %p131 = scmp.lt.s32.totalorder %s9, 3
        %s132 = scalar_select %p131, %s9, 3
        %s133 = smul.addr %s132, 18
        %s134 = smul.addr %s133, 4
        %s135 = scalar_lea.vmem %s0, %s134
      $region28: #{run.9} parent=23 // pred_fallthru
        _
    $region24: #{run.9} parent=5 // pred_fallthru
      _
    %p136 = scmp.le.s32.totalorder 1, %s9
    %p137 = scmp.lt.s32.totalorder %s9, 5
    %p138 = pnand %p136, %p137
    %p139 = pneg %p138
    // Predicated region
    $region29: #{run.9} parent=5 // pred_check
      _
    $region30: #{run.9} parent=5 // pred_check_branch
      %141 = sbr.rel (%p138) target = $region32
    $region31: #{run.9} parent=5 // pred_region
      %s142 = ssub.s32 %s9, 1
      %p143 = scmp.lt.s32.totalorder %s14, 3
      %s144 = scalar_select %p143, %s14, 3
      %s145 = smul.addr %s144, 18
      %s146 = smul.addr %s145, 4
      %s147 = scalar_lea.vmem %s0, %s146
      %p148 = pneg %p35
      %p149 = pneg %p32
      %p150 = pneg %p56
      %p151 = pneg %p53
      %p152 = pneg %p77
      %p153 = pneg %p74
      %p154 = pneg %p103
      %p155 = pneg %p100
      %p156 = scmp.lt.s32.totalorder %s14, 3
      %s157 = scalar_select %p156, %s14, 3
      %s158 = smul.addr %s157, 8
      %s159 = smul.addr %s158, 8
      %s160 = scalar_lea.vmem %s3, %s159
      %p161 = scmp.lt.s32.totalorder %s14, 3
      %s162 = scalar_select %p161, %s14, 3
      %s163 = smul.addr %s162, 18
      %s164 = smul.addr %s163, 4
      %s165 = scalar_lea.vmem %s0, %s164
      %p166 = scmp.lt.s32.totalorder %s14, 3
      %s167 = scalar_select %p166, %s14, 3
      %s168 = smul.addr %s167, 8
      %s169 = smul.addr %s168, 8
      %s170 = scalar_lea.vmem %s3, %s169
      %v172 = vld [vmem:[%s165] sm:$0xf]
      %v173 = vld [vmem:[%s165 + $0x4] sm:$0x1]
      %v174 = vld [vmem:[%s165 + $0x8] sm:$0xf]
      %v175 = vld [vmem:[%s165 + $0xc] sm:$0x1]
      %v176 = vld [vmem:[%s165 + $0x10] sm:$0xf]
      %v177 = vld [vmem:[%s165 + $0x14] sm:$0x1]
      %v178 = vld [vmem:[%s165 + $0x18] sm:$0xf]
      %v179 = vld [vmem:[%s165 + $0x1c] sm:$0x1]
      %v180 = vld [vmem:[%s165 + $0x20] sm:$0xf]
      %v181 = vld [vmem:[%s165 + $0x24] sm:$0x1]
      %v182 = vld [vmem:[%s165 + $0x28] sm:$0xf]
      %v183 = vld [vmem:[%s165 + $0x2c] sm:$0x1]
      %v184 = vld [vmem:[%s165 + $0x30] sm:$0xf]
      %v185 = vld [vmem:[%s165 + $0x34] sm:$0x1]
      %v186 = vld [vmem:[%s165 + $0x38] sm:$0xf]
      %v187 = vld [vmem:[%s165 + $0x3c] sm:$0x1]
      %v188 = vld [vmem:[%s165 + $0x40] sm:$0xf]
      %v189 = vld [vmem:[%s165 + $0x44] sm:$0x1]
      %v190 = vunpack.c.l.bf16 %v172
      %v191 = vunpack.c.l.bf16 %v173
      %v192 = vunpack.c.l.bf16 %v174
      %v193 = vunpack.c.l.bf16 %v175
      %v194 = vunpack.c.l.bf16 %v176
      %v195 = vunpack.c.l.bf16 %v177
      %v196 = vunpack.c.l.bf16 %v178
      %v197 = vunpack.c.l.bf16 %v179
      %v198 = vunpack.c.l.bf16 %v180
      %v199 = vunpack.c.l.bf16 %v181
      %v200 = vunpack.c.l.bf16 %v182
      %v201 = vunpack.c.l.bf16 %v183
      %v202 = vunpack.c.l.bf16 %v184
      %v203 = vunpack.c.l.bf16 %v185
      %v204 = vunpack.c.l.bf16 %v186
      %v205 = vunpack.c.l.bf16 %v187
      %v206 = vunpack.c.l.bf16 %v188
      %v207 = vunpack.c.l.bf16 %v189
      %v208 = vpack.c.bf16 %v192, %v190
      %v209 = vpack.c.bf16 %v196, %v194
      %v210 = vpack.c.bf16 %v200, %v198
      %v211 = vpack.c.bf16 %v204, %v202
      %v212 = vld [vmem:[%s1] sm:$0xf]
      %v213 = vld [vmem:[%s1 + $0x4] sm:$0xf]
      %v214 = vld [vmem:[%s1 + $0x8] sm:$0xf]
      %v215 = vld [vmem:[%s1 + $0xc] sm:$0xf]
      %v216 = vld [vmem:[%s1 + $0x10] sm:$0xf]
      %v217 = vld [vmem:[%s1 + $0x14] sm:$0xf]
      %v218 = vld [vmem:[%s1 + $0x18] sm:$0xf]
      %v219 = vld [vmem:[%s1 + $0x1c] sm:$0xf]
      %vm236 = vcmask 1046528
      %v237 = vrot.slane %v190, 1
      %v238 = vrot.slane %v191, 1
      %v239 = vsel %vm236, %v237, %v238
      %v240 = vrot.slane %v192, 1
      %v241 = vrot.slane %v193, 1
      %v242 = vsel %vm236, %v240, %v241
      %v243 = vrot.slane %v194, 1
      %v244 = vrot.slane %v195, 1
      %v245 = vsel %vm236, %v243, %v244
      %v246 = vrot.slane %v196, 1
      %v247 = vrot.slane %v197, 1
      %v248 = vsel %vm236, %v246, %v247
      %v249 = vrot.slane %v198, 1
      %v250 = vrot.slane %v199, 1
      %v251 = vsel %vm236, %v249, %v250
      %v252 = vrot.slane %v200, 1
      %v253 = vrot.slane %v201, 1
      %v254 = vsel %vm236, %v252, %v253
      %v255 = vrot.slane %v202, 1
      %v256 = vrot.slane %v203, 1
      %v257 = vsel %vm236, %v255, %v256
      %v258 = vrot.slane %v204, 1
      %v259 = vrot.slane %v205, 1
      %v260 = vsel %vm236, %v258, %v259
      %v269 = vpack.c.bf16 %v242, %v239
      %v270 = vpack.c.bf16 %v248, %v245
      %v271 = vpack.c.bf16 %v254, %v251
      %v272 = vpack.c.bf16 %v260, %v257
      %s273 = scalar_lea.vmem %s1, 32
      %v274 = vld [vmem:[%s273] sm:$0xf]
      %v275 = vld [vmem:[%s273 + $0x4] sm:$0xf]
      %v276 = vld [vmem:[%s273 + $0x8] sm:$0xf]
      %v277 = vld [vmem:[%s273 + $0xc] sm:$0xf]
      %v278 = vld [vmem:[%s273 + $0x10] sm:$0xf]
      %v279 = vld [vmem:[%s273 + $0x14] sm:$0xf]
      %v280 = vld [vmem:[%s273 + $0x18] sm:$0xf]
      %v281 = vld [vmem:[%s273 + $0x1c] sm:$0xf]
      %v290 = vunpack.c.l.b16 %v274
      %v291 = vunpack.c.l.b16 %v275
      %v292 = vunpack.c.l.b16 %v276
      %v293 = vunpack.c.l.b16 %v277
      %v294 = vunpack.c.l.b16 %v278
      %v295 = vunpack.c.l.b16 %v279
      %v296 = vunpack.c.l.b16 %v280
      %v297 = vunpack.c.l.b16 %v281
      %v298 = vpack.c.b16 %v291, %v290
      %v299 = vpack.c.b16 %v293, %v292
      %v300 = vpack.c.b16 %v295, %v294
      %v301 = vpack.c.b16 %v297, %v296
      %vm306 = vcmask 523264
      %v308 = vsel %vm306, %v269, 0
      %v311 = vsel %vm306, %v270, 0
      %v314 = vsel %vm306, %v271, 0
      %v317 = vsel %vm306, %v272, 0
      %319 = vmatprep.subr.bf16.mxu0 0
      %320 = vmatpush1.bf16.msra.mxu0 0
      %321 = vmatprep.subr.bf16.mxu0 0
      %322 = vmatpush1.bf16.msra.mxu0 0
      %323 = vmatprep.subr.bf16.mxu0 0
      %324 = vmatpush1.bf16.msra.mxu0 0
      %325 = vmatprep.subr.bf16.mxu0 0
      %326 = vmatpush1.bf16.msra.mxu0 0
      %327 = vmatprep.subr.bf16.mxu0 0
      %328 = vmatpush1.bf16.msra.mxu0 %v301
      %329 = vmatprep.subr.bf16.mxu0 0
      %330 = vmatpush1.bf16.msra.mxu0 %v300
      %331 = vmatprep.subr.bf16.mxu0 0
      %332 = vmatpush1.bf16.msra.mxu0 %v299
      %333 = vmatprep.subr.bf16.mxu0 0
      %334 = vmatpush1.bf16.msra.mxu0 %v298
      %335 = vmatprep.subr.bf16.mxu0 0
      %336 = vmatpush2.bf16.msra.mxu0 0
      %337 = vmatprep.subr.bf16.mxu0 0
      %338 = vmatpush2.bf16.msra.mxu0 0
      %339 = vmatprep.subr.bf16.mxu0 0
      %340 = vmatpush2.bf16.msra.mxu0 0
      %341 = vmatprep.subr.bf16.mxu0 0
      %342 = vmatpush2.bf16.msra.mxu0 0
      %343 = vmatprep.subr.bf16.mxu0 0
      %344 = vmatpush2.bf16.msra.mxu0 0
      %345 = vmatprep.subr.bf16.mxu0 0
      %346 = vmatpush2.bf16.msra.mxu0 0
      %347 = vmatprep.subr.bf16.mxu0 0
      %348 = vmatpush2.bf16.msra.mxu0 0
      %349 = vmatprep.subr.bf16.mxu0 0
      %350 = vmatpush2.bf16.msra.mxu0 0
      %351 = vmatprep.mubr.bf16.mxu0 0
      %352 = vmatmul.mubr.bf16.gmra.mxu0 %v308
      %v353 = vpop.f32.mrf.mxu0
      %v354 = vadd.f32 0.0, %v353
      %v355 = vpop.f32.mrf.mxu0
      %v356 = vpop.f32.mrf.mxu0
      %v357 = vadd.f32 0.0, %v356
      %v358 = vpop.f32.mrf.mxu0
      %359 = vmatprep.mubr.bf16.mxu0 0
      %360 = vmatmul.mubr.bf16.gmra.mxu0 %v311
      %v361 = vpop.f32.mrf.mxu0
      %v362 = vadd.f32 0.0, %v361
      %v363 = vpop.f32.mrf.mxu0
      %v364 = vpop.f32.mrf.mxu0
      %v365 = vadd.f32 0.0, %v364
      %v366 = vpop.f32.mrf.mxu0
      %367 = vmatprep.mubr.bf16.mxu0 0
      %368 = vmatmul.mubr.bf16.gmra.mxu0 %v314
      %v369 = vpop.f32.mrf.mxu0
      %v370 = vadd.f32 0.0, %v369
      %v371 = vpop.f32.mrf.mxu0
      %v372 = vpop.f32.mrf.mxu0
      %v373 = vadd.f32 0.0, %v372
      %v374 = vpop.f32.mrf.mxu0
      %375 = vmatprep.mubr.bf16.mxu0 0
      %376 = vmatmul.mubr.bf16.gmra.mxu0 %v317
      %v377 = vpop.f32.mrf.mxu0
      %v378 = vadd.f32 0.0, %v377
      %v379 = vpop.f32.mrf.mxu0
      %v380 = vpop.f32.mrf.mxu0
      %v381 = vadd.f32 0.0, %v380
      %v382 = vpop.f32.mrf.mxu0
      %383 = vdwg.mxu0
      %v392 = vunpack.c.l.b16 %v212
      %v393 = vunpack.c.l.b16 %v213
      %v394 = vunpack.c.l.b16 %v214
      %v395 = vunpack.c.l.b16 %v215
      %v396 = vunpack.c.l.b16 %v216
      %v397 = vunpack.c.l.b16 %v217
      %v398 = vunpack.c.l.b16 %v218
      %v399 = vunpack.c.l.b16 %v219
      %v400 = vpack.c.b16 %v393, %v392
      %v401 = vpack.c.b16 %v395, %v394
      %v402 = vpack.c.b16 %v397, %v396
      %v403 = vpack.c.b16 %v399, %v398
      %v409 = vsel %vm306, %v208, 0
      %v412 = vsel %vm306, %v209, 0
      %v415 = vsel %vm306, %v210, 0
      %v418 = vsel %vm306, %v211, 0
      %420 = vmatprep.subr.bf16.mxu0 0
      %421 = vmatpush1.bf16.msra.mxu0 0
      %422 = vmatprep.subr.bf16.mxu0 0
      %423 = vmatpush1.bf16.msra.mxu0 0
      %424 = vmatprep.subr.bf16.mxu0 0
      %425 = vmatpush1.bf16.msra.mxu0 0
      %426 = vmatprep.subr.bf16.mxu0 0
      %427 = vmatpush1.bf16.msra.mxu0 0
      %428 = vmatprep.subr.bf16.mxu0 0
      %429 = vmatpush1.bf16.msra.mxu0 %v403
      %430 = vmatprep.subr.bf16.mxu0 0
      %431 = vmatpush1.bf16.msra.mxu0 %v402
      %432 = vmatprep.subr.bf16.mxu0 0
      %433 = vmatpush1.bf16.msra.mxu0 %v401
      %434 = vmatprep.subr.bf16.mxu0 0
      %435 = vmatpush1.bf16.msra.mxu0 %v400
      %436 = vmatprep.subr.bf16.mxu0 0
      %437 = vmatpush2.bf16.msra.mxu0 0
      %438 = vmatprep.subr.bf16.mxu0 0
      %439 = vmatpush2.bf16.msra.mxu0 0
      %440 = vmatprep.subr.bf16.mxu0 0
      %441 = vmatpush2.bf16.msra.mxu0 0
      %442 = vmatprep.subr.bf16.mxu0 0
      %443 = vmatpush2.bf16.msra.mxu0 0
      %444 = vmatprep.subr.bf16.mxu0 0
      %445 = vmatpush2.bf16.msra.mxu0 0
      %446 = vmatprep.subr.bf16.mxu0 0
      %447 = vmatpush2.bf16.msra.mxu0 0
      %448 = vmatprep.subr.bf16.mxu0 0
      %449 = vmatpush2.bf16.msra.mxu0 0
      %450 = vmatprep.subr.bf16.mxu0 0
      %451 = vmatpush2.bf16.msra.mxu0 0
      %452 = vmatprep.mubr.bf16.mxu0 0
      %453 = vmatmul.mubr.bf16.gmra.mxu0 %v409
      %v454 = vpop.f32.mrf.mxu0
      %v455 = vadd.f32 %v354, %v454
      %v456 = vpop.f32.mrf.mxu0
      %v457 = vpop.f32.mrf.mxu0
      %v458 = vadd.f32 %v357, %v457
      %v459 = vpop.f32.mrf.mxu0
      %460 = vmatprep.mubr.bf16.mxu0 0
      %461 = vmatmul.mubr.bf16.gmra.mxu0 %v412
      %v462 = vpop.f32.mrf.mxu0
      %v463 = vadd.f32 %v362, %v462
      %v464 = vpop.f32.mrf.mxu0
      %v465 = vpop.f32.mrf.mxu0
      %v466 = vadd.f32 %v365, %v465
      %v467 = vpop.f32.mrf.mxu0
      %468 = vmatprep.mubr.bf16.mxu0 0
      %469 = vmatmul.mubr.bf16.gmra.mxu0 %v415
      %v470 = vpop.f32.mrf.mxu0
      %v471 = vadd.f32 %v370, %v470
      %v472 = vpop.f32.mrf.mxu0
      %v473 = vpop.f32.mrf.mxu0
      %v474 = vadd.f32 %v373, %v473
      %v475 = vpop.f32.mrf.mxu0
      %476 = vmatprep.mubr.bf16.mxu0 0
      %477 = vmatmul.mubr.bf16.gmra.mxu0 %v418
      %v478 = vpop.f32.mrf.mxu0
      %v479 = vadd.f32 %v378, %v478
      %v480 = vpop.f32.mrf.mxu0
      %v481 = vpop.f32.mrf.mxu0
      %v482 = vadd.f32 %v381, %v481
      %v483 = vpop.f32.mrf.mxu0
      %484 = vdwg.mxu0
      %v485 = vpack.c.bf16 %v194, %v192
      %v486 = vpack.c.bf16 %v198, %v196
      %v487 = vpack.c.bf16 %v202, %v200
      %v488 = vpack.c.bf16 %v206, %v204
      %s489 = scalar_lea.vmem %s1, 64
      %v490 = vld [vmem:[%s489] sm:$0xf]
      %v491 = vld [vmem:[%s489 + $0x4] sm:$0xf]
      %v492 = vld [vmem:[%s489 + $0x8] sm:$0xf]
      %v493 = vld [vmem:[%s489 + $0xc] sm:$0xf]
      %v494 = vld [vmem:[%s489 + $0x10] sm:$0xf]
      %v495 = vld [vmem:[%s489 + $0x14] sm:$0xf]
      %v496 = vld [vmem:[%s489 + $0x18] sm:$0xf]
      %v497 = vld [vmem:[%s489 + $0x1c] sm:$0xf]
      %v506 = vunpack.c.l.b16 %v490
      %v507 = vunpack.c.l.b16 %v491
      %v508 = vunpack.c.l.b16 %v492
      %v509 = vunpack.c.l.b16 %v493
      %v510 = vunpack.c.l.b16 %v494
      %v511 = vunpack.c.l.b16 %v495
      %v512 = vunpack.c.l.b16 %v496
      %v513 = vunpack.c.l.b16 %v497
      %v514 = vpack.c.b16 %v507, %v506
      %v515 = vpack.c.b16 %v509, %v508
      %v516 = vpack.c.b16 %v511, %v510
      %v517 = vpack.c.b16 %v513, %v512
      %v523 = vsel %vm306, %v485, 0
      %v526 = vsel %vm306, %v486, 0
      %v529 = vsel %vm306, %v487, 0
      %v532 = vsel %vm306, %v488, 0
      %534 = vmatprep.subr.bf16.mxu0 0
      %535 = vmatpush1.bf16.msra.mxu0 0
      %536 = vmatprep.subr.bf16.mxu0 0
      %537 = vmatpush1.bf16.msra.mxu0 0
      %538 = vmatprep.subr.bf16.mxu0 0
      %539 = vmatpush1.bf16.msra.mxu0 0
      %540 = vmatprep.subr.bf16.mxu0 0
      %541 = vmatpush1.bf16.msra.mxu0 0
      %542 = vmatprep.subr.bf16.mxu0 0
      %543 = vmatpush1.bf16.msra.mxu0 %v517
      %544 = vmatprep.subr.bf16.mxu0 0
      %545 = vmatpush1.bf16.msra.mxu0 %v516
      %546 = vmatprep.subr.bf16.mxu0 0
      %547 = vmatpush1.bf16.msra.mxu0 %v515
      %548 = vmatprep.subr.bf16.mxu0 0
      %549 = vmatpush1.bf16.msra.mxu0 %v514
      %550 = vmatprep.subr.bf16.mxu0 0
      %551 = vmatpush2.bf16.msra.mxu0 0
      %552 = vmatprep.subr.bf16.mxu0 0
      %553 = vmatpush2.bf16.msra.mxu0 0
      %554 = vmatprep.subr.bf16.mxu0 0
      %555 = vmatpush2.bf16.msra.mxu0 0
      %556 = vmatprep.subr.bf16.mxu0 0
      %557 = vmatpush2.bf16.msra.mxu0 0
      %558 = vmatprep.subr.bf16.mxu0 0
      %559 = vmatpush2.bf16.msra.mxu0 0
      %560 = vmatprep.subr.bf16.mxu0 0
      %561 = vmatpush2.bf16.msra.mxu0 0
      %562 = vmatprep.subr.bf16.mxu0 0
      %563 = vmatpush2.bf16.msra.mxu0 0
      %564 = vmatprep.subr.bf16.mxu0 0
      %565 = vmatpush2.bf16.msra.mxu0 0
      %566 = vmatprep.mubr.bf16.mxu0 0
      %567 = vmatmul.mubr.bf16.gmra.mxu0 %v523
      %v568 = vpop.f32.mrf.mxu0
      %v569 = vadd.f32 0.0, %v568
      %v570 = vpop.f32.mrf.mxu0
      %v571 = vpop.f32.mrf.mxu0
      %v572 = vadd.f32 0.0, %v571
      %v573 = vpop.f32.mrf.mxu0
      %574 = vmatprep.mubr.bf16.mxu0 0
      %575 = vmatmul.mubr.bf16.gmra.mxu0 %v526
      %v576 = vpop.f32.mrf.mxu0
      %v577 = vadd.f32 0.0, %v576
      %v578 = vpop.f32.mrf.mxu0
      %v579 = vpop.f32.mrf.mxu0
      %v580 = vadd.f32 0.0, %v579
      %v581 = vpop.f32.mrf.mxu0
      %582 = vmatprep.mubr.bf16.mxu0 0
      %583 = vmatmul.mubr.bf16.gmra.mxu0 %v529
      %v584 = vpop.f32.mrf.mxu0
      %v585 = vadd.f32 0.0, %v584
      %v586 = vpop.f32.mrf.mxu0
      %v587 = vpop.f32.mrf.mxu0
      %v588 = vadd.f32 0.0, %v587
      %v589 = vpop.f32.mrf.mxu0
      %590 = vmatprep.mubr.bf16.mxu0 0
      %591 = vmatmul.mubr.bf16.gmra.mxu0 %v532
      %v592 = vpop.f32.mrf.mxu0
      %v593 = vadd.f32 0.0, %v592
      %v594 = vpop.f32.mrf.mxu0
      %v595 = vpop.f32.mrf.mxu0
      %v596 = vadd.f32 0.0, %v595
      %v597 = vpop.f32.mrf.mxu0
      %598 = vdwg.mxu0
      %v599 = vadd.f32 %v455, %v569
      %v600 = vadd.f32 %v458, %v572
      %v601 = vadd.f32 %v463, %v577
      %v602 = vadd.f32 %v466, %v580
      %v603 = vadd.f32 %v471, %v585
      %v604 = vadd.f32 %v474, %v588
      %v605 = vadd.f32 %v479, %v593
      %v606 = vadd.f32 %v482, %v596
      %v609 = vrot.slane %v206, 1
      %v610 = vrot.slane %v207, 1
      %v611 = vsel %vm236, %v609, %v610
      %v613 = vpack.c.bf16 %v245, %v242
      %v614 = vpack.c.bf16 %v251, %v248
      %v615 = vpack.c.bf16 %v257, %v254
      %v616 = vpack.c.bf16 %v611, %v260
      %s617 = scalar_lea.vmem %s1, 96
      %v618 = vld [vmem:[%s617] sm:$0xf]
      %v619 = vld [vmem:[%s617 + $0x4] sm:$0xf]
      %v620 = vld [vmem:[%s617 + $0x8] sm:$0xf]
      %v621 = vld [vmem:[%s617 + $0xc] sm:$0xf]
      %v622 = vld [vmem:[%s617 + $0x10] sm:$0xf]
      %v623 = vld [vmem:[%s617 + $0x14] sm:$0xf]
      %v624 = vld [vmem:[%s617 + $0x18] sm:$0xf]
      %v625 = vld [vmem:[%s617 + $0x1c] sm:$0xf]
      %v634 = vunpack.c.l.b16 %v618
      %v635 = vunpack.c.l.b16 %v619
      %v636 = vunpack.c.l.b16 %v620
      %v637 = vunpack.c.l.b16 %v621
      %v638 = vunpack.c.l.b16 %v622
      %v639 = vunpack.c.l.b16 %v623
      %v640 = vunpack.c.l.b16 %v624
      %v641 = vunpack.c.l.b16 %v625
      %v642 = vpack.c.b16 %v635, %v634
      %v643 = vpack.c.b16 %v637, %v636
      %v644 = vpack.c.b16 %v639, %v638
      %v645 = vpack.c.b16 %v641, %v640
      %v651 = vsel %vm306, %v613, 0
      %v654 = vsel %vm306, %v614, 0
      %v657 = vsel %vm306, %v615, 0
      %v660 = vsel %vm306, %v616, 0
      %662 = vmatprep.subr.bf16.mxu0 0
      %663 = vmatpush1.bf16.msra.mxu0 0
      %664 = vmatprep.subr.bf16.mxu0 0
      %665 = vmatpush1.bf16.msra.mxu0 0
      %666 = vmatprep.subr.bf16.mxu0 0
      %667 = vmatpush1.bf16.msra.mxu0 0
      %668 = vmatprep.subr.bf16.mxu0 0
      %669 = vmatpush1.bf16.msra.mxu0 0
      %670 = vmatprep.subr.bf16.mxu0 0
      %671 = vmatpush1.bf16.msra.mxu0 %v645
      %672 = vmatprep.subr.bf16.mxu0 0
      %673 = vmatpush1.bf16.msra.mxu0 %v644
      %674 = vmatprep.subr.bf16.mxu0 0
      %675 = vmatpush1.bf16.msra.mxu0 %v643
      %676 = vmatprep.subr.bf16.mxu0 0
      %677 = vmatpush1.bf16.msra.mxu0 %v642
      %678 = vmatprep.subr.bf16.mxu0 0
      %679 = vmatpush2.bf16.msra.mxu0 0
      %680 = vmatprep.subr.bf16.mxu0 0
      %681 = vmatpush2.bf16.msra.mxu0 0
      %682 = vmatprep.subr.bf16.mxu0 0
      %683 = vmatpush2.bf16.msra.mxu0 0
      %684 = vmatprep.subr.bf16.mxu0 0
      %685 = vmatpush2.bf16.msra.mxu0 0
      %686 = vmatprep.subr.bf16.mxu0 0
      %687 = vmatpush2.bf16.msra.mxu0 0
      %688 = vmatprep.subr.bf16.mxu0 0
      %689 = vmatpush2.bf16.msra.mxu0 0
      %690 = vmatprep.subr.bf16.mxu0 0
      %691 = vmatpush2.bf16.msra.mxu0 0
      %692 = vmatprep.subr.bf16.mxu0 0
      %693 = vmatpush2.bf16.msra.mxu0 0
      %694 = vmatprep.mubr.bf16.mxu0 0
      %695 = vmatmul.mubr.bf16.gmra.mxu0 %v651
      %v696 = vpop.f32.mrf.mxu0
      %v697 = vadd.f32 0.0, %v696
      %v698 = vpop.f32.mrf.mxu0
      %v699 = vpop.f32.mrf.mxu0
      %v700 = vadd.f32 0.0, %v699
      %v701 = vpop.f32.mrf.mxu0
      %702 = vmatprep.mubr.bf16.mxu0 0
      %703 = vmatmul.mubr.bf16.gmra.mxu0 %v654
      %v704 = vpop.f32.mrf.mxu0
      %v705 = vadd.f32 0.0, %v704
      %v706 = vpop.f32.mrf.mxu0
      %v707 = vpop.f32.mrf.mxu0
      %v708 = vadd.f32 0.0, %v707
      %v709 = vpop.f32.mrf.mxu0
      %710 = vmatprep.mubr.bf16.mxu0 0
      %711 = vmatmul.mubr.bf16.gmra.mxu0 %v657
      %v712 = vpop.f32.mrf.mxu0
      %v713 = vadd.f32 0.0, %v712
      %v714 = vpop.f32.mrf.mxu0
      %v715 = vpop.f32.mrf.mxu0
      %v716 = vadd.f32 0.0, %v715
      %v717 = vpop.f32.mrf.mxu0
      %718 = vmatprep.mubr.bf16.mxu0 0
      %719 = vmatmul.mubr.bf16.gmra.mxu0 %v660
      %v720 = vpop.f32.mrf.mxu0
      %v721 = vadd.f32 0.0, %v720
      %v722 = vpop.f32.mrf.mxu0
      %v723 = vpop.f32.mrf.mxu0
      %v724 = vadd.f32 0.0, %v723
      %v725 = vpop.f32.mrf.mxu0
      %726 = vdwg.mxu0
      %v727 = vadd.f32 %v599, %v697
      %v728 = vadd.f32 %v600, %v700
      %v729 = vadd.f32 %v601, %v705
      %v730 = vadd.f32 %v602, %v708
      %v731 = vadd.f32 %v603, %v713
      %v732 = vadd.f32 %v604, %v716
      %v733 = vadd.f32 %v605, %v721
      %v734 = vadd.f32 %v606, %v724
      %v735 = vld [vmem:[%s2] sm:$0x1]
      %v737 = vlaneseq
      %v738 = vshrl.u32 %v737, 7
      %v739 = vsub.s32 0, %v738
      %v740 = vrot.slane %v735, %v739
      %v742 = vadd.f32 %v727, %v740
      %v743 = vadd.f32 %v728, %v740
      %v744 = vadd.f32 %v729, %v740
      %v745 = vadd.f32 %v730, %v740
      %v746 = vadd.f32 %v731, %v740
      %v747 = vadd.f32 %v732, %v740
      %v748 = vadd.f32 %v733, %v740
      %v749 = vadd.f32 %v734, %v740
      %v750 = vmax.f32 %v742, 0.0
      %v751 = vmax.f32 %v743, 0.0
      %v752 = vmax.f32 %v744, 0.0
      %v753 = vmax.f32 %v745, 0.0
      %v754 = vmax.f32 %v746, 0.0
      %v755 = vmax.f32 %v747, 0.0
      %v756 = vmax.f32 %v748, 0.0
      %v757 = vmax.f32 %v749, 0.0
      %vm758 = vcmask 261120
      %759 = vst.msk [vmem:[%s170] sm:$0xff] %vm758, %v750
      %760 = vst.msk [vmem:[%s170 + $0x8] sm:$0xff] %vm758, %v751
      %761 = vst.msk [vmem:[%s170 + $0x10] sm:$0xff] %vm758, %v752
      %762 = vst.msk [vmem:[%s170 + $0x18] sm:$0xff] %vm758, %v753
      %763 = vst.msk [vmem:[%s170 + $0x20] sm:$0xff] %vm758, %v754
      %764 = vst.msk [vmem:[%s170 + $0x28] sm:$0xff] %vm758, %v755
      %765 = vst.msk [vmem:[%s170 + $0x30] sm:$0xff] %vm758, %v756
      %766 = vst.msk [vmem:[%s170 + $0x38] sm:$0xff] %vm758, %v757
      %p767 = scmp.lt.s32.totalorder %s14, 3
      %s768 = scalar_select %p767, %s14, 3
      %s769 = smul.addr %s768, 8
      %s770 = smul.addr %s769, 8
      %s771 = scalar_lea.vmem %s3, %s770
      // Predicated region
      $region33: #{run.9} parent=31 // pred_check
        %p772 = pneg %p100
      $region34: #{run.9} parent=31 // pred_check_branch
        %774 = sbr.rel (%p772) target = $region36
      $region35: #{run.9} parent=31 // pred_region
        _
      $region36: #{run.9} parent=31 // pred_fallthru
        _
    $region32: #{run.9} parent=5 // pred_fallthru
      _
    %p775 = scmp.le.s32.totalorder 2, %s9
    // Predicated region
    $region37: #{run.9} parent=5 // pred_check
      %p776 = pneg %p775
    $region38: #{run.9} parent=5 // pred_check_branch
      %778 = sbr.rel (%p776) target = $region40
    $region39: #{run.9} parent=5 // pred_region
      %s779 = ssub.s32 %s9, 2
      // Predicated region
      $region41: #{run.9} parent=39 // pred_check
        %p780 = pneg %p106
      $region42: #{run.9} parent=39 // pred_check_branch
        %782 = sbr.rel (%p780) target = $region44
      $region43: #{run.9} parent=39 // pred_region
        %p783 = scmp.lt.s32.totalorder %s15, 3
        %s784 = scalar_select %p783, %s15, 3
        %s785 = smul.addr %s784, 8
        %s786 = smul.addr %s785, 8
        %s787 = scalar_lea.vmem %s3, %s786
      $region44: #{run.9} parent=39 // pred_fallthru
        _
    $region40: #{run.9} parent=5 // pred_fallthru
      _
  $region6: #{run.9} parent=0 // loop_footer
    %s13 = sadd.s32 1, %s9
  $region7: #{run.9} parent=0 // loop_footer_branch
    %8 = sbr.rel target = $region3
  $region8: #{run.9} parent=0 // loop_exit
    _

// kernel: run.13
$region0: #{run.13}
  #allocation0 [shape = 'u32[]', space=smem, size = 0x4, offset = 0x4, fixed_abs, tag = 'smem constant byte address 0x4 - core index']
  #allocation1 [shape = 'u32[144,128]{1,0:T(1,128)}', space=vmem, size = 0x12000, scoped, tag = 'internal scratch']
  %s0 = inlined_call_operand.vmem [shape: bf16[256,32], index: 0, kind: input, shape index: {}]
  %s1 = inlined_call_operand.vmem [shape: bf16[32,32], index: 1, kind: input, shape index: {}]
  %s2 = inlined_call_operand.vmem [shape: f32[1,32], index: 2, kind: input, shape index: {}]
  %s3 = inlined_call_operand.vmem [shape: f32[256,32], index: 3, kind: output, shape index: {}]
  %s4 = sld [smem:[#allocation0]]
  $region30: #{run.13} parent=0
    _
  %s6 = ssub.s32 1, %s4
  %s7 = scalar_select 0, %s6, %s4
  // Predicated region
  $region2: #{run.13} parent=0 // pred_check
    _
  $region3: #{run.13} parent=0 // pred_check_branch
    %9 = sbr.rel (0) target = $region5
  $region4: #{run.13} parent=0 // pred_region
    _
  $region5: #{run.13} parent=0 // pred_fallthru
    _
  // Predicated region
  $region6: #{run.13} parent=0 // pred_check
    _
  $region7: #{run.13} parent=0 // pred_check_branch
    %11 = sbr.rel (0) target = $region9
  $region8: #{run.13} parent=0 // pred_region
    _
  $region9: #{run.13} parent=0 // pred_fallthru
    _
  // Predicated region
  $region10: #{run.13} parent=0 // pred_check
    _
  $region11: #{run.13} parent=0 // pred_check_branch
    %13 = sbr.rel (0) target = $region13
  $region12: #{run.13} parent=0 // pred_region
    _
  $region13: #{run.13} parent=0 // pred_fallthru
    _
  %p15 = scmp.eq.s32.totalorder 0, 0
  // Predicated region
  $region14: #{run.13} parent=0 // pred_check
    %p16 = pneg %p15
  $region15: #{run.13} parent=0 // pred_check_branch
    %18 = sbr.rel (%p16) target = $region17
  $region16: #{run.13} parent=0 // pred_region
    %vm19 = vcmask 261120
    %20 = vst.msk [vmem:[%s3] sm:$0xff] %vm19, 0.0
    %21 = vst.msk [vmem:[%s3 + $0x8] sm:$0xff] %vm19, 0.0
    %22 = vst.msk [vmem:[%s3 + $0x10] sm:$0xff] %vm19, 0.0
    %23 = vst.msk [vmem:[%s3 + $0x18] sm:$0xff] %vm19, 0.0
    %24 = vst.msk [vmem:[%s3 + $0x20] sm:$0xff] %vm19, 0.0
    %25 = vst.msk [vmem:[%s3 + $0x28] sm:$0xff] %vm19, 0.0
    %26 = vst.msk [vmem:[%s3 + $0x30] sm:$0xff] %vm19, 0.0
    %27 = vst.msk [vmem:[%s3 + $0x38] sm:$0xff] %vm19, 0.0
    %28 = vst.msk [vmem:[%s3 + $0x40] sm:$0xff] %vm19, 0.0
    %29 = vst.msk [vmem:[%s3 + $0x48] sm:$0xff] %vm19, 0.0
    %30 = vst.msk [vmem:[%s3 + $0x50] sm:$0xff] %vm19, 0.0
    %31 = vst.msk [vmem:[%s3 + $0x58] sm:$0xff] %vm19, 0.0
    %32 = vst.msk [vmem:[%s3 + $0x60] sm:$0xff] %vm19, 0.0
    %33 = vst.msk [vmem:[%s3 + $0x68] sm:$0xff] %vm19, 0.0
    %34 = vst.msk [vmem:[%s3 + $0x70] sm:$0xff] %vm19, 0.0
    %35 = vst.msk [vmem:[%s3 + $0x78] sm:$0xff] %vm19, 0.0
    %36 = vst.msk [vmem:[%s3 + $0x80] sm:$0xff] %vm19, 0.0
    %37 = vst.msk [vmem:[%s3 + $0x88] sm:$0xff] %vm19, 0.0
    %38 = vst.msk [vmem:[%s3 + $0x90] sm:$0xff] %vm19, 0.0
    %39 = vst.msk [vmem:[%s3 + $0x98] sm:$0xff] %vm19, 0.0
    %40 = vst.msk [vmem:[%s3 + $0xa0] sm:$0xff] %vm19, 0.0
    %41 = vst.msk [vmem:[%s3 + $0xa8] sm:$0xff] %vm19, 0.0
    %42 = vst.msk [vmem:[%s3 + $0xb0] sm:$0xff] %vm19, 0.0
    %43 = vst.msk [vmem:[%s3 + $0xb8] sm:$0xff] %vm19, 0.0
    %44 = vst.msk [vmem:[%s3 + $0xc0] sm:$0xff] %vm19, 0.0
    %45 = vst.msk [vmem:[%s3 + $0xc8] sm:$0xff] %vm19, 0.0
    %46 = vst.msk [vmem:[%s3 + $0xd0] sm:$0xff] %vm19, 0.0
    %47 = vst.msk [vmem:[%s3 + $0xd8] sm:$0xff] %vm19, 0.0
    %48 = vst.msk [vmem:[%s3 + $0xe0] sm:$0xff] %vm19, 0.0
    %49 = vst.msk [vmem:[%s3 + $0xe8] sm:$0xff] %vm19, 0.0
    %50 = vst.msk [vmem:[%s3 + $0xf0] sm:$0xff] %vm19, 0.0
    %51 = vst.msk [vmem:[%s3 + $0xf8] sm:$0xff] %vm19, 0.0
  $region17: #{run.13} parent=0 // pred_fallthru
    _
  %v52 = vld [vmem:[%s3] sm:$0xff]
  %v53 = vld [vmem:[%s3 + $0x8] sm:$0xff]
  %v54 = vld [vmem:[%s3 + $0x10] sm:$0xff]
  %v55 = vld [vmem:[%s3 + $0x18] sm:$0xff]
  %v56 = vld [vmem:[%s3 + $0x20] sm:$0xff]
  %v57 = vld [vmem:[%s3 + $0x28] sm:$0xff]
  %v58 = vld [vmem:[%s3 + $0x30] sm:$0xff]
  %v59 = vld [vmem:[%s3 + $0x38] sm:$0xff]
  %v60 = vld [vmem:[%s3 + $0x40] sm:$0xff]
  %v61 = vld [vmem:[%s3 + $0x48] sm:$0xff]
  %v62 = vld [vmem:[%s3 + $0x50] sm:$0xff]
  %v63 = vld [vmem:[%s3 + $0x58] sm:$0xff]
  %v64 = vld [vmem:[%s3 + $0x60] sm:$0xff]
  %v65 = vld [vmem:[%s3 + $0x68] sm:$0xff]
  %v66 = vld [vmem:[%s3 + $0x70] sm:$0xff]
  %v67 = vld [vmem:[%s3 + $0x78] sm:$0xff]
  %v68 = vld [vmem:[%s3 + $0x80] sm:$0xff]
  %v69 = vld [vmem:[%s3 + $0x88] sm:$0xff]
  %v70 = vld [vmem:[%s3 + $0x90] sm:$0xff]
  %v71 = vld [vmem:[%s3 + $0x98] sm:$0xff]
  %v72 = vld [vmem:[%s3 + $0xa0] sm:$0xff]
  %v73 = vld [vmem:[%s3 + $0xa8] sm:$0xff]
  %v74 = vld [vmem:[%s3 + $0xb0] sm:$0xff]
  %v75 = vld [vmem:[%s3 + $0xb8] sm:$0xff]
  %v76 = vld [vmem:[%s3 + $0xc0] sm:$0xff]
  %v77 = vld [vmem:[%s3 + $0xc8] sm:$0xff]
  %v78 = vld [vmem:[%s3 + $0xd0] sm:$0xff]
  %v79 = vld [vmem:[%s3 + $0xd8] sm:$0xff]
  %v80 = vld [vmem:[%s3 + $0xe0] sm:$0xff]
  %v81 = vld [vmem:[%s3 + $0xe8] sm:$0xff]
  %v82 = vld [vmem:[%s3 + $0xf0] sm:$0xff]
  %v83 = vld [vmem:[%s3 + $0xf8] sm:$0xff]
  %v84 = vld [vmem:[%s0] sm:$0xf]
  %v85 = vld [vmem:[%s0 + $0x4] sm:$0xf]
  %v86 = vld [vmem:[%s0 + $0x8] sm:$0xf]
  %v87 = vld [vmem:[%s0 + $0xc] sm:$0xf]
  %v88 = vld [vmem:[%s0 + $0x10] sm:$0xf]
  %v89 = vld [vmem:[%s0 + $0x14] sm:$0xf]
  %v90 = vld [vmem:[%s0 + $0x18] sm:$0xf]
  %v91 = vld [vmem:[%s0 + $0x1c] sm:$0xf]
  %v92 = vld [vmem:[%s0 + $0x20] sm:$0xf]
  %v93 = vld [vmem:[%s0 + $0x24] sm:$0xf]
  %v94 = vld [vmem:[%s0 + $0x28] sm:$0xf]
  %v95 = vld [vmem:[%s0 + $0x2c] sm:$0xf]
  %v96 = vld [vmem:[%s0 + $0x30] sm:$0xf]
  %v97 = vld [vmem:[%s0 + $0x34] sm:$0xf]
  %v98 = vld [vmem:[%s0 + $0x38] sm:$0xf]
  %v99 = vld [vmem:[%s0 + $0x3c] sm:$0xf]
  %v100 = vld [vmem:[%s0 + $0x40] sm:$0xf]
  %v101 = vld [vmem:[%s0 + $0x44] sm:$0xf]
  %v102 = vld [vmem:[%s0 + $0x48] sm:$0xf]
  %v103 = vld [vmem:[%s0 + $0x4c] sm:$0xf]
  %v104 = vld [vmem:[%s0 + $0x50] sm:$0xf]
  %v105 = vld [vmem:[%s0 + $0x54] sm:$0xf]
  %v106 = vld [vmem:[%s0 + $0x58] sm:$0xf]
  %v107 = vld [vmem:[%s0 + $0x5c] sm:$0xf]
  %v108 = vld [vmem:[%s0 + $0x60] sm:$0xf]
  %v109 = vld [vmem:[%s0 + $0x64] sm:$0xf]
  %v110 = vld [vmem:[%s0 + $0x68] sm:$0xf]
  %v111 = vld [vmem:[%s0 + $0x6c] sm:$0xf]
  %v112 = vld [vmem:[%s0 + $0x70] sm:$0xf]
  %v113 = vld [vmem:[%s0 + $0x74] sm:$0xf]
  %v114 = vld [vmem:[%s0 + $0x78] sm:$0xf]
  %v115 = vld [vmem:[%s0 + $0x7c] sm:$0xf]
  %v116 = vld [vmem:[%s1] sm:$0xf]
  %v117 = vld [vmem:[%s1 + $0x4] sm:$0xf]
  %v118 = vld [vmem:[%s1 + $0x8] sm:$0xf]
  %v119 = vld [vmem:[%s1 + $0xc] sm:$0xf]
  %v152 = vunpack.c.l.b16 %v84
  %v153 = vunpack.c.l.b16 %v85
  %v154 = vunpack.c.l.b16 %v86
  %v155 = vunpack.c.l.b16 %v87
  %v156 = vunpack.c.l.b16 %v88
  %v157 = vunpack.c.l.b16 %v89
  %v158 = vunpack.c.l.b16 %v90
  %v159 = vunpack.c.l.b16 %v91
  %v160 = vunpack.c.l.b16 %v92
  %v161 = vunpack.c.l.b16 %v93
  %v162 = vunpack.c.l.b16 %v94
  %v163 = vunpack.c.l.b16 %v95
  %v164 = vunpack.c.l.b16 %v96
  %v165 = vunpack.c.l.b16 %v97
  %v166 = vunpack.c.l.b16 %v98
  %v167 = vunpack.c.l.b16 %v99
  %v168 = vunpack.c.l.b16 %v100
  %v169 = vunpack.c.l.b16 %v101
  %v170 = vunpack.c.l.b16 %v102
  %v171 = vunpack.c.l.b16 %v103
  %v172 = vunpack.c.l.b16 %v104
  %v173 = vunpack.c.l.b16 %v105
  %v174 = vunpack.c.l.b16 %v106
  %v175 = vunpack.c.l.b16 %v107
  %v176 = vunpack.c.l.b16 %v108
  %v177 = vunpack.c.l.b16 %v109
  %v178 = vunpack.c.l.b16 %v110
  %v179 = vunpack.c.l.b16 %v111
  %v180 = vunpack.c.l.b16 %v112
  %v181 = vunpack.c.l.b16 %v113
  %v182 = vunpack.c.l.b16 %v114
  %v183 = vunpack.c.l.b16 %v115
  %v184 = vpack.c.b16 %v153, %v152
  %v185 = vpack.c.b16 %v155, %v154
  %v186 = vpack.c.b16 %v157, %v156
  %v187 = vpack.c.b16 %v159, %v158
  %v188 = vpack.c.b16 %v161, %v160
  %v189 = vpack.c.b16 %v163, %v162
  %v190 = vpack.c.b16 %v165, %v164
  %v191 = vpack.c.b16 %v167, %v166
  %v192 = vpack.c.b16 %v169, %v168
  %v193 = vpack.c.b16 %v171, %v170
  %v194 = vpack.c.b16 %v173, %v172
  %v195 = vpack.c.b16 %v175, %v174
  %v196 = vpack.c.b16 %v177, %v176
  %v197 = vpack.c.b16 %v179, %v178
  %v198 = vpack.c.b16 %v181, %v180
  %v199 = vpack.c.b16 %v183, %v182
  %v204 = vunpack.c.l.b16 %v116
  %v205 = vunpack.c.l.b16 %v117
  %v206 = vunpack.c.l.b16 %v118
  %v207 = vunpack.c.l.b16 %v119
  %v208 = vpack.c.b16 %v205, %v204
  %v209 = vpack.c.b16 %v207, %v206
  %vm212 = vcmask 261120
  %v214 = vsel %vm212, %v184, 0
  %v217 = vsel %vm212, %v185, 0
  %v220 = vsel %vm212, %v186, 0
  %v223 = vsel %vm212, %v187, 0
  %v226 = vsel %vm212, %v188, 0
  %v229 = vsel %vm212, %v189, 0
  %v232 = vsel %vm212, %v190, 0
  %v235 = vsel %vm212, %v191, 0
  %v238 = vsel %vm212, %v192, 0
  %v241 = vsel %vm212, %v193, 0
  %v244 = vsel %vm212, %v194, 0
  %v247 = vsel %vm212, %v195, 0
  %v250 = vsel %vm212, %v196, 0
  %v253 = vsel %vm212, %v197, 0
  %v256 = vsel %vm212, %v198, 0
  %v259 = vsel %vm212, %v199, 0
  %261 = vmatprep.subr.bf16.mxu0 0
  %262 = vmatpush1.bf16.msra.mxu0 0
  %263 = vmatprep.subr.bf16.mxu0 0
  %264 = vmatpush1.bf16.msra.mxu0 0
  %265 = vmatprep.subr.bf16.mxu0 0
  %266 = vmatpush1.bf16.msra.mxu0 0
  %267 = vmatprep.subr.bf16.mxu0 0
  %268 = vmatpush1.bf16.msra.mxu0 0
  %269 = vmatprep.subr.bf16.mxu0 0
  %270 = vmatpush1.bf16.msra.mxu0 0
  %271 = vmatprep.subr.bf16.mxu0 0
  %272 = vmatpush1.bf16.msra.mxu0 0
  %273 = vmatprep.subr.bf16.mxu0 0
  %274 = vmatpush1.bf16.msra.mxu0 %v209
  %275 = vmatprep.subr.bf16.mxu0 0
  %276 = vmatpush1.bf16.msra.mxu0 %v208
  %277 = vmatprep.subr.bf16.mxu0 0
  %278 = vmatpush2.bf16.msra.mxu0 0
  %279 = vmatprep.subr.bf16.mxu0 0
  %280 = vmatpush2.bf16.msra.mxu0 0
  %281 = vmatprep.subr.bf16.mxu0 0
  %282 = vmatpush2.bf16.msra.mxu0 0
  %283 = vmatprep.subr.bf16.mxu0 0
  %284 = vmatpush2.bf16.msra.mxu0 0
  %285 = vmatprep.subr.bf16.mxu0 0
  %286 = vmatpush2.bf16.msra.mxu0 0
  %287 = vmatprep.subr.bf16.mxu0 0
  %288 = vmatpush2.bf16.msra.mxu0 0
  %289 = vmatprep.subr.bf16.mxu0 0
  %290 = vmatpush2.bf16.msra.mxu0 0
  %291 = vmatprep.subr.bf16.mxu0 0
  %292 = vmatpush2.bf16.msra.mxu0 0
  %293 = vmatprep.mubr.bf16.mxu0 0
  %294 = vmatmul.mubr.bf16.gmra.mxu0 %v214
  %v295 = vpop.f32.mrf.mxu0
  %v296 = vadd.f32 0.0, %v295
  %v297 = vpop.f32.mrf.mxu0
  %v298 = vpop.f32.mrf.mxu0
  %v299 = vadd.f32 0.0, %v298
  %v300 = vpop.f32.mrf.mxu0
  %301 = vmatprep.mubr.bf16.mxu0 0
  %302 = vmatmul.mubr.bf16.gmra.mxu0 %v217
  %v303 = vpop.f32.mrf.mxu0
  %v304 = vadd.f32 0.0, %v303
  %v305 = vpop.f32.mrf.mxu0
  %v306 = vpop.f32.mrf.mxu0
  %v307 = vadd.f32 0.0, %v306
  %v308 = vpop.f32.mrf.mxu0
  %309 = vmatprep.mubr.bf16.mxu0 0
  %310 = vmatmul.mubr.bf16.gmra.mxu0 %v220
  %v311 = vpop.f32.mrf.mxu0
  %v312 = vadd.f32 0.0, %v311
  %v313 = vpop.f32.mrf.mxu0
  %v314 = vpop.f32.mrf.mxu0
  %v315 = vadd.f32 0.0, %v314
  %v316 = vpop.f32.mrf.mxu0
  %317 = vmatprep.mubr.bf16.mxu0 0
  %318 = vmatmul.mubr.bf16.gmra.mxu0 %v223
  %v319 = vpop.f32.mrf.mxu0
  %v320 = vadd.f32 0.0, %v319
  %v321 = vpop.f32.mrf.mxu0
  %v322 = vpop.f32.mrf.mxu0
  %v323 = vadd.f32 0.0, %v322
  %v324 = vpop.f32.mrf.mxu0
  %325 = vmatprep.mubr.bf16.mxu0 0
  %326 = vmatmul.mubr.bf16.gmra.mxu0 %v226
  %v327 = vpop.f32.mrf.mxu0
  %v328 = vadd.f32 0.0, %v327
  %v329 = vpop.f32.mrf.mxu0
  %v330 = vpop.f32.mrf.mxu0
  %v331 = vadd.f32 0.0, %v330
  %v332 = vpop.f32.mrf.mxu0
  %333 = vmatprep.mubr.bf16.mxu0 0
  %334 = vmatmul.mubr.bf16.gmra.mxu0 %v229
  %v335 = vpop.f32.mrf.mxu0
  %v336 = vadd.f32 0.0, %v335
  %v337 = vpop.f32.mrf.mxu0
  %v338 = vpop.f32.mrf.mxu0
  %v339 = vadd.f32 0.0, %v338
  %v340 = vpop.f32.mrf.mxu0
  %341 = vmatprep.mubr.bf16.mxu0 0
  %342 = vmatmul.mubr.bf16.gmra.mxu0 %v232
  %v343 = vpop.f32.mrf.mxu0
  %v344 = vadd.f32 0.0, %v343
  %v345 = vpop.f32.mrf.mxu0
  %v346 = vpop.f32.mrf.mxu0
  %v347 = vadd.f32 0.0, %v346
  %v348 = vpop.f32.mrf.mxu0
  %349 = vmatprep.mubr.bf16.mxu0 0
  %350 = vmatmul.mubr.bf16.gmra.mxu0 %v235
  %v351 = vpop.f32.mrf.mxu0
  %v352 = vadd.f32 0.0, %v351
  %v353 = vpop.f32.mrf.mxu0
  %v354 = vpop.f32.mrf.mxu0
  %v355 = vadd.f32 0.0, %v354
  %v356 = vpop.f32.mrf.mxu0
  %357 = vmatprep.mubr.bf16.mxu0 0
  %358 = vmatmul.mubr.bf16.gmra.mxu0 %v238
  %v359 = vpop.f32.mrf.mxu0
  %v360 = vadd.f32 0.0, %v359
  %v361 = vpop.f32.mrf.mxu0
  %v362 = vpop.f32.mrf.mxu0
  %v363 = vadd.f32 0.0, %v362
  %v364 = vpop.f32.mrf.mxu0
  %365 = vmatprep.mubr.bf16.mxu0 0
  %366 = vmatmul.mubr.bf16.gmra.mxu0 %v241
  %v367 = vpop.f32.mrf.mxu0
  %v368 = vadd.f32 0.0, %v367
  %v369 = vpop.f32.mrf.mxu0
  %v370 = vpop.f32.mrf.mxu0
  %v371 = vadd.f32 0.0, %v370
  %v372 = vpop.f32.mrf.mxu0
  %373 = vmatprep.mubr.bf16.mxu0 0
  %374 = vmatmul.mubr.bf16.gmra.mxu0 %v244
  %v375 = vpop.f32.mrf.mxu0
  %v376 = vadd.f32 0.0, %v375
  %v377 = vpop.f32.mrf.mxu0
  %v378 = vpop.f32.mrf.mxu0
  %v379 = vadd.f32 0.0, %v378
  %v380 = vpop.f32.mrf.mxu0
  %381 = vmatprep.mubr.bf16.mxu0 0
  %382 = vmatmul.mubr.bf16.gmra.mxu0 %v247
  %v383 = vpop.f32.mrf.mxu0
  %v384 = vadd.f32 0.0, %v383
  %v385 = vpop.f32.mrf.mxu0
  %v386 = vpop.f32.mrf.mxu0
  %v387 = vadd.f32 0.0, %v386
  %v388 = vpop.f32.mrf.mxu0
  %389 = vmatprep.mubr.bf16.mxu0 0
  %390 = vmatmul.mubr.bf16.gmra.mxu0 %v250
  %v391 = vpop.f32.mrf.mxu0
  %v392 = vadd.f32 0.0, %v391
  %v393 = vpop.f32.mrf.mxu0
  %v394 = vpop.f32.mrf.mxu0
  %v395 = vadd.f32 0.0, %v394
  %v396 = vpop.f32.mrf.mxu0
  %397 = vmatprep.mubr.bf16.mxu0 0
  %398 = vmatmul.mubr.bf16.gmra.mxu0 %v253
  %v399 = vpop.f32.mrf.mxu0
  %v400 = vadd.f32 0.0, %v399
  %v401 = vpop.f32.mrf.mxu0
  %v402 = vpop.f32.mrf.mxu0
  %v403 = vadd.f32 0.0, %v402
  %v404 = vpop.f32.mrf.mxu0
  %405 = vmatprep.mubr.bf16.mxu0 0
  %406 = vmatmul.mubr.bf16.gmra.mxu0 %v256
  %v407 = vpop.f32.mrf.mxu0
  %v408 = vadd.f32 0.0, %v407
  %v409 = vpop.f32.mrf.mxu0
  %v410 = vpop.f32.mrf.mxu0
  %v411 = vadd.f32 0.0, %v410
  %v412 = vpop.f32.mrf.mxu0
  %413 = vmatprep.mubr.bf16.mxu0 0
  %414 = vmatmul.mubr.bf16.gmra.mxu0 %v259
  %v415 = vpop.f32.mrf.mxu0
  %v416 = vadd.f32 0.0, %v415
  %v417 = vpop.f32.mrf.mxu0
  %v418 = vpop.f32.mrf.mxu0
  %v419 = vadd.f32 0.0, %v418
  %v420 = vpop.f32.mrf.mxu0
  %421 = vdwg.mxu0
  %v422 = vadd.f32 %v52, %v296
  %v423 = vadd.f32 %v53, %v299
  %v424 = vadd.f32 %v54, %v304
  %v425 = vadd.f32 %v55, %v307
  %v426 = vadd.f32 %v56, %v312
  %v427 = vadd.f32 %v57, %v315
  %v428 = vadd.f32 %v58, %v320
  %v429 = vadd.f32 %v59, %v323
  %v430 = vadd.f32 %v60, %v328
  %v431 = vadd.f32 %v61, %v331
  %v432 = vadd.f32 %v62, %v336
  %v433 = vadd.f32 %v63, %v339
  %v434 = vadd.f32 %v64, %v344
  %v435 = vadd.f32 %v65, %v347
  %v436 = vadd.f32 %v66, %v352
  %v437 = vadd.f32 %v67, %v355
  %v438 = vadd.f32 %v68, %v360
  %v439 = vadd.f32 %v69, %v363
  %v440 = vadd.f32 %v70, %v368
  %v441 = vadd.f32 %v71, %v371
  %v442 = vadd.f32 %v72, %v376
  %v443 = vadd.f32 %v73, %v379
  %v444 = vadd.f32 %v74, %v384
  %v445 = vadd.f32 %v75, %v387
  %v446 = vadd.f32 %v76, %v392
  %v447 = vadd.f32 %v77, %v395
  %v448 = vadd.f32 %v78, %v400
  %v449 = vadd.f32 %v79, %v403
  %v450 = vadd.f32 %v80, %v408
  %v451 = vadd.f32 %v81, %v411
  %v452 = vadd.f32 %v82, %v416
  %v453 = vadd.f32 %v83, %v419
  %454 = vst.msk [vmem:[%s3] sm:$0xff] %vm212, %v422
  %455 = vst.msk [vmem:[%s3 + $0x8] sm:$0xff] %vm212, %v423
  %456 = vst.msk [vmem:[%s3 + $0x10] sm:$0xff] %vm212, %v424
  %457 = vst.msk [vmem:[%s3 + $0x18] sm:$0xff] %vm212, %v425
  %458 = vst.msk [vmem:[%s3 + $0x20] sm:$0xff] %vm212, %v426
  %459 = vst.msk [vmem:[%s3 + $0x28] sm:$0xff] %vm212, %v427
  %460 = vst.msk [vmem:[%s3 + $0x30] sm:$0xff] %vm212, %v428
  %461 = vst.msk [vmem:[%s3 + $0x38] sm:$0xff] %vm212, %v429
  %462 = vst.msk [vmem:[%s3 + $0x40] sm:$0xff] %vm212, %v430
  %463 = vst.msk [vmem:[%s3 + $0x48] sm:$0xff] %vm212, %v431
  %464 = vst.msk [vmem:[%s3 + $0x50] sm:$0xff] %vm212, %v432
  %465 = vst.msk [vmem:[%s3 + $0x58] sm:$0xff] %vm212, %v433
  %466 = vst.msk [vmem:[%s3 + $0x60] sm:$0xff] %vm212, %v434
  %467 = vst.msk [vmem:[%s3 + $0x68] sm:$0xff] %vm212, %v435
  %468 = vst.msk [vmem:[%s3 + $0x70] sm:$0xff] %vm212, %v436
  %469 = vst.msk [vmem:[%s3 + $0x78] sm:$0xff] %vm212, %v437
  %470 = vst.msk [vmem:[%s3 + $0x80] sm:$0xff] %vm212, %v438
  %471 = vst.msk [vmem:[%s3 + $0x88] sm:$0xff] %vm212, %v439
  %472 = vst.msk [vmem:[%s3 + $0x90] sm:$0xff] %vm212, %v440
  %473 = vst.msk [vmem:[%s3 + $0x98] sm:$0xff] %vm212, %v441
  %474 = vst.msk [vmem:[%s3 + $0xa0] sm:$0xff] %vm212, %v442
  %475 = vst.msk [vmem:[%s3 + $0xa8] sm:$0xff] %vm212, %v443
  %476 = vst.msk [vmem:[%s3 + $0xb0] sm:$0xff] %vm212, %v444
  %477 = vst.msk [vmem:[%s3 + $0xb8] sm:$0xff] %vm212, %v445
  %478 = vst.msk [vmem:[%s3 + $0xc0] sm:$0xff] %vm212, %v446
  %479 = vst.msk [vmem:[%s3 + $0xc8] sm:$0xff] %vm212, %v447
  %480 = vst.msk [vmem:[%s3 + $0xd0] sm:$0xff] %vm212, %v448
  %481 = vst.msk [vmem:[%s3 + $0xd8] sm:$0xff] %vm212, %v449
  %482 = vst.msk [vmem:[%s3 + $0xe0] sm:$0xff] %vm212, %v450
  %483 = vst.msk [vmem:[%s3 + $0xe8] sm:$0xff] %vm212, %v451
  %484 = vst.msk [vmem:[%s3 + $0xf0] sm:$0xff] %vm212, %v452
  %485 = vst.msk [vmem:[%s3 + $0xf8] sm:$0xff] %vm212, %v453
  // Predicated region
  $region18: #{run.13} parent=0 // pred_check
    %p486 = pneg %p15
  $region19: #{run.13} parent=0 // pred_check_branch
    %488 = sbr.rel (%p486) target = $region21
  $region20: #{run.13} parent=0 // pred_region
    %v489 = vld [vmem:[%s3] sm:$0xff]
    %v490 = vld [vmem:[%s3 + $0x8] sm:$0xff]
    %v491 = vld [vmem:[%s3 + $0x10] sm:$0xff]
    %v492 = vld [vmem:[%s3 + $0x18] sm:$0xff]
    %v493 = vld [vmem:[%s3 + $0x20] sm:$0xff]
    %v494 = vld [vmem:[%s3 + $0x28] sm:$0xff]
    %v495 = vld [vmem:[%s3 + $0x30] sm:$0xff]
    %v496 = vld [vmem:[%s3 + $0x38] sm:$0xff]
    %v497 = vld [vmem:[%s3 + $0x40] sm:$0xff]
    %v498 = vld [vmem:[%s3 + $0x48] sm:$0xff]
    %v499 = vld [vmem:[%s3 + $0x50] sm:$0xff]
    %v500 = vld [vmem:[%s3 + $0x58] sm:$0xff]
    %v501 = vld [vmem:[%s3 + $0x60] sm:$0xff]
    %v502 = vld [vmem:[%s3 + $0x68] sm:$0xff]
    %v503 = vld [vmem:[%s3 + $0x70] sm:$0xff]
    %v504 = vld [vmem:[%s3 + $0x78] sm:$0xff]
    %v505 = vld [vmem:[%s3 + $0x80] sm:$0xff]
    %v506 = vld [vmem:[%s3 + $0x88] sm:$0xff]
    %v507 = vld [vmem:[%s3 + $0x90] sm:$0xff]
    %v508 = vld [vmem:[%s3 + $0x98] sm:$0xff]
    %v509 = vld [vmem:[%s3 + $0xa0] sm:$0xff]
    %v510 = vld [vmem:[%s3 + $0xa8] sm:$0xff]
    %v511 = vld [vmem:[%s3 + $0xb0] sm:$0xff]
    %v512 = vld [vmem:[%s3 + $0xb8] sm:$0xff]
    %v513 = vld [vmem:[%s3 + $0xc0] sm:$0xff]
    %v514 = vld [vmem:[%s3 + $0xc8] sm:$0xff]
    %v515 = vld [vmem:[%s3 + $0xd0] sm:$0xff]
    %v516 = vld [vmem:[%s3 + $0xd8] sm:$0xff]
    %v517 = vld [vmem:[%s3 + $0xe0] sm:$0xff]
    %v518 = vld [vmem:[%s3 + $0xe8] sm:$0xff]
    %v519 = vld [vmem:[%s3 + $0xf0] sm:$0xff]
    %v520 = vld [vmem:[%s3 + $0xf8] sm:$0xff]
    %v521 = vld [vmem:[%s2] sm:$0x1]
    %v523 = vlaneseq
    %v524 = vshrl.u32 %v523, 7
    %v525 = vsub.s32 0, %v524
    %v526 = vrot.slane %v521, %v525
    %v528 = vadd.f32 %v489, %v526
    %v529 = vadd.f32 %v490, %v526
    %v530 = vadd.f32 %v491, %v526
    %v531 = vadd.f32 %v492, %v526
    %v532 = vadd.f32 %v493, %v526
    %v533 = vadd.f32 %v494, %v526
    %v534 = vadd.f32 %v495, %v526
    %v535 = vadd.f32 %v496, %v526
    %v536 = vadd.f32 %v497, %v526
    %v537 = vadd.f32 %v498, %v526
    %v538 = vadd.f32 %v499, %v526
    %v539 = vadd.f32 %v500, %v526
    %v540 = vadd.f32 %v501, %v526
    %v541 = vadd.f32 %v502, %v526
    %v542 = vadd.f32 %v503, %v526
    %v543 = vadd.f32 %v504, %v526
    %v544 = vadd.f32 %v505, %v526
    %v545 = vadd.f32 %v506, %v526
    %v546 = vadd.f32 %v507, %v526
    %v547 = vadd.f32 %v508, %v526
    %v548 = vadd.f32 %v509, %v526
    %v549 = vadd.f32 %v510, %v526
    %v550 = vadd.f32 %v511, %v526
    %v551 = vadd.f32 %v512, %v526
    %v552 = vadd.f32 %v513, %v526
    %v553 = vadd.f32 %v514, %v526
    %v554 = vadd.f32 %v515, %v526
    %v555 = vadd.f32 %v516, %v526
    %v556 = vadd.f32 %v517, %v526
    %v557 = vadd.f32 %v518, %v526
    %v558 = vadd.f32 %v519, %v526
    %v559 = vadd.f32 %v520, %v526
    %v560 = vmax.f32 %v528, 0.0
    %v561 = vmax.f32 %v529, 0.0
    %v562 = vmax.f32 %v530, 0.0
    %v563 = vmax.f32 %v531, 0.0
    %v564 = vmax.f32 %v532, 0.0
    %v565 = vmax.f32 %v533, 0.0
    %v566 = vmax.f32 %v534, 0.0
    %v567 = vmax.f32 %v535, 0.0
    %v568 = vmax.f32 %v536, 0.0
    %v569 = vmax.f32 %v537, 0.0
    %v570 = vmax.f32 %v538, 0.0
    %v571 = vmax.f32 %v539, 0.0
    %v572 = vmax.f32 %v540, 0.0
    %v573 = vmax.f32 %v541, 0.0
    %v574 = vmax.f32 %v542, 0.0
    %v575 = vmax.f32 %v543, 0.0
    %v576 = vmax.f32 %v544, 0.0
    %v577 = vmax.f32 %v545, 0.0
    %v578 = vmax.f32 %v546, 0.0
    %v579 = vmax.f32 %v547, 0.0
    %v580 = vmax.f32 %v548, 0.0
    %v581 = vmax.f32 %v549, 0.0
    %v582 = vmax.f32 %v550, 0.0
    %v583 = vmax.f32 %v551, 0.0
    %v584 = vmax.f32 %v552, 0.0
    %v585 = vmax.f32 %v553, 0.0
    %v586 = vmax.f32 %v554, 0.0
    %v587 = vmax.f32 %v555, 0.0
    %v588 = vmax.f32 %v556, 0.0
    %v589 = vmax.f32 %v557, 0.0
    %v590 = vmax.f32 %v558, 0.0
    %v591 = vmax.f32 %v559, 0.0
    %592 = vst.msk [vmem:[%s3] sm:$0xff] %vm212, %v560
    %593 = vst.msk [vmem:[%s3 + $0x8] sm:$0xff] %vm212, %v561
    %594 = vst.msk [vmem:[%s3 + $0x10] sm:$0xff] %vm212, %v562
    %595 = vst.msk [vmem:[%s3 + $0x18] sm:$0xff] %vm212, %v563
    %596 = vst.msk [vmem:[%s3 + $0x20] sm:$0xff] %vm212, %v564
    %597 = vst.msk [vmem:[%s3 + $0x28] sm:$0xff] %vm212, %v565
    %598 = vst.msk [vmem:[%s3 + $0x30] sm:$0xff] %vm212, %v566
    %599 = vst.msk [vmem:[%s3 + $0x38] sm:$0xff] %vm212, %v567
    %600 = vst.msk [vmem:[%s3 + $0x40] sm:$0xff] %vm212, %v568
    %601 = vst.msk [vmem:[%s3 + $0x48] sm:$0xff] %vm212, %v569
    %602 = vst.msk [vmem:[%s3 + $0x50] sm:$0xff] %vm212, %v570
    %603 = vst.msk [vmem:[%s3 + $0x58] sm:$0xff] %vm212, %v571
    %604 = vst.msk [vmem:[%s3 + $0x60] sm:$0xff] %vm212, %v572
    %605 = vst.msk [vmem:[%s3 + $0x68] sm:$0xff] %vm212, %v573
    %606 = vst.msk [vmem:[%s3 + $0x70] sm:$0xff] %vm212, %v574
    %607 = vst.msk [vmem:[%s3 + $0x78] sm:$0xff] %vm212, %v575
    %608 = vst.msk [vmem:[%s3 + $0x80] sm:$0xff] %vm212, %v576
    %609 = vst.msk [vmem:[%s3 + $0x88] sm:$0xff] %vm212, %v577
    %610 = vst.msk [vmem:[%s3 + $0x90] sm:$0xff] %vm212, %v578
    %611 = vst.msk [vmem:[%s3 + $0x98] sm:$0xff] %vm212, %v579
    %612 = vst.msk [vmem:[%s3 + $0xa0] sm:$0xff] %vm212, %v580
    %613 = vst.msk [vmem:[%s3 + $0xa8] sm:$0xff] %vm212, %v581
    %614 = vst.msk [vmem:[%s3 + $0xb0] sm:$0xff] %vm212, %v582
    %615 = vst.msk [vmem:[%s3 + $0xb8] sm:$0xff] %vm212, %v583
    %616 = vst.msk [vmem:[%s3 + $0xc0] sm:$0xff] %vm212, %v584
    %617 = vst.msk [vmem:[%s3 + $0xc8] sm:$0xff] %vm212, %v585
    %618 = vst.msk [vmem:[%s3 + $0xd0] sm:$0xff] %vm212, %v586
    %619 = vst.msk [vmem:[%s3 + $0xd8] sm:$0xff] %vm212, %v587
    %620 = vst.msk [vmem:[%s3 + $0xe0] sm:$0xff] %vm212, %v588
    %621 = vst.msk [vmem:[%s3 + $0xe8] sm:$0xff] %vm212, %v589
    %622 = vst.msk [vmem:[%s3 + $0xf0] sm:$0xff] %vm212, %v590
    %623 = vst.msk [vmem:[%s3 + $0xf8] sm:$0xff] %vm212, %v591
  $region21: #{run.13} parent=0 // pred_fallthru
    _
  // Predicated region
  $region22: #{run.13} parent=0 // pred_check
    _
  $region23: #{run.13} parent=0 // pred_check_branch
    %625 = sbr.rel (0) target = $region25
  $region24: #{run.13} parent=0 // pred_region
    _
  $region25: #{run.13} parent=0 // pred_fallthru
    _
  // Predicated region
  $region26: #{run.13} parent=0 // pred_check
    _
  $region27: #{run.13} parent=0 // pred_check_branch
    %627 = sbr.rel (0) target = $region29
  $region28: #{run.13} parent=0 // pred_region
    _
  $region29: #{run.13} parent=0 // pred_fallthru
    _

// kernel: run.14
$region0: #{run.14}
  #allocation0 [shape = 'u32[]', space=smem, size = 0x4, offset = 0x4, fixed_abs, tag = 'smem constant byte address 0x4 - core index']
  #allocation1 [shape = 'u32[144,128]{1,0:T(1,128)}', space=vmem, size = 0x12000, scoped, tag = 'internal scratch']
  %s0 = inlined_call_operand.vmem [shape: bf16[4,64,32], index: 0, kind: input, shape index: {}]
  %s1 = inlined_call_operand.vmem [shape: bf16[32,32], index: 1, kind: input, shape index: {}]
  %s2 = inlined_call_operand.vmem [shape: f32[1,32], index: 2, kind: input, shape index: {}]
  %s3 = inlined_call_operand.vmem [shape: f32[4,1,32], index: 3, kind: input, shape index: {}]
  %s4 = inlined_call_operand.vmem [shape: f32[4,64,1], index: 4, kind: output, shape index: {}]
  %s5 = sld [smem:[#allocation0]]
  $region49: #{run.14} parent=0
    _
  %s7 = ssub.s32 1, %s5
  %s8 = scalar_select 0, %s7, %s5
  loop: start=0, step=1, limit=6
  $region2: #{run.14} parent=0 // loop_pre_header
    _
  $region3: #{run.14} parent=0 // loop_header
    %s10 = sphi 0, %s14
    %p11 = scmp.ge.s32.totalorder %s10, 6
    %s20 = sphi 0, %s22
    %s23 = sphi 0, %s20
    %s24 = sphi 0, %s23
    %s40 = sphi 0, %s24
    %s44 = sphi 0, %s44
    %s46 = sphi 0, %s44
    %s47 = sphi 0, %s46
    %s61 = sphi 0, %s47
    %s65 = sphi 0, %s65
    %s67 = sphi 0, %s65
    %s68 = sphi 0, %s67
    %s82 = sphi 0, %s68
    %s88 = sphi 0, %s90
    %s91 = sphi 0, %s88
    %s92 = sphi 0, %s91
    %s108 = sphi 0, %s92
    %s114 = sphi 0, %s116
    %s117 = sphi 0, %s114
    %s118 = sphi 0, %s117
    %s134 = sphi 0, %s118
  $region4: #{run.14} parent=0 // loop_header_branch
    %13 = sbr.rel (%p11) target = $region8
  $region5: #{run.14} parent=0 // loop_body
    %s15 = ssub.s32 %s10, 1
    %s16 = ssub.s32 %s10, 2
    %s17 = sadd.s32 %s10, 1
    %s18 = ssub.s32 %s10, %s17
    %p19 = scmp.eq.s32.totalorder %s18, 0
    %s21 = sadd.s32 %s20, 1
    %s22 = scalar_select %p19, %s20, %s21
    %p25 = pneg %p19
    %p26 = scmp.eq.s32.totalorder %s10, 3
    %p27 = por %p25, %p26
    %p28 = scmp.ne.s32.totalorder %s20, %s23
    %p29 = scmp.eq.s32.totalorder %s10, 0
    %p30 = por %p28, %p29
    %p31 = scmp.ne.s32.totalorder %s20, %s23
    %p32 = scmp.eq.s32.totalorder %s15, 3
    %p33 = por %p31, %p32
    %p34 = scmp.ne.s32.totalorder %s23, %s24
    %p35 = scmp.eq.s32.totalorder %s15, 0
    %p36 = por %p34, %p35
    %p37 = scmp.ne.s32.totalorder %s23, %s24
    %p38 = scmp.eq.s32.totalorder %s16, 3
    %p39 = por %p37, %p38
    %p41 = scmp.ne.s32.totalorder %s24, %s40
    %p42 = scmp.eq.s32.totalorder %s16, 0
    %p43 = por %p41, %p42
    %s45 = sadd.s32 %s44, 1
    %p48 = scmp.eq.s32.totalorder %s10, 3
    %p49 = scmp.ne.s32.totalorder %s44, %s46
    %p50 = scmp.eq.s32.totalorder %s10, 0
    %p51 = por %p49, %p50
    %p52 = scmp.ne.s32.totalorder %s44, %s46
    %p53 = scmp.eq.s32.totalorder %s15, 3
    %p54 = por %p52, %p53
    %p55 = scmp.ne.s32.totalorder %s46, %s47
    %p56 = scmp.eq.s32.totalorder %s15, 0
    %p57 = por %p55, %p56
    %p58 = scmp.ne.s32.totalorder %s46, %s47
    %p59 = scmp.eq.s32.totalorder %s16, 3
    %p60 = por %p58, %p59
    %p62 = scmp.ne.s32.totalorder %s47, %s61
    %p63 = scmp.eq.s32.totalorder %s16, 0
    %p64 = por %p62, %p63
    %s66 = sadd.s32 %s65, 1
    %p69 = scmp.eq.s32.totalorder %s10, 3
    %p70 = scmp.ne.s32.totalorder %s65, %s67
    %p71 = scmp.eq.s32.totalorder %s10, 0
    %p72 = por %p70, %p71
    %p73 = scmp.ne.s32.totalorder %s65, %s67
    %p74 = scmp.eq.s32.totalorder %s15, 3
    %p75 = por %p73, %p74
    %p76 = scmp.ne.s32.totalorder %s67, %s68
    %p77 = scmp.eq.s32.totalorder %s15, 0
    %p78 = por %p76, %p77
    %p79 = scmp.ne.s32.totalorder %s67, %s68
    %p80 = scmp.eq.s32.totalorder %s16, 3
    %p81 = por %p79, %p80
    %p83 = scmp.ne.s32.totalorder %s68, %s82
    %p84 = scmp.eq.s32.totalorder %s16, 0
    %p85 = por %p83, %p84
    %s86 = ssub.s32 %s10, %s17
    %p87 = scmp.eq.s32.totalorder %s86, 0
    %s89 = sadd.s32 %s88, 1
    %s90 = scalar_select %p87, %s88, %s89
    %p93 = pneg %p87
    %p94 = scmp.eq.s32.totalorder %s10, 3
    %p95 = por %p93, %p94
    %p96 = scmp.ne.s32.totalorder %s88, %s91
    %p97 = scmp.eq.s32.totalorder %s10, 0
    %p98 = por %p96, %p97
    %p99 = scmp.ne.s32.totalorder %s88, %s91
    %p100 = scmp.eq.s32.totalorder %s15, 3
    %p101 = por %p99, %p100
    %p102 = scmp.ne.s32.totalorder %s91, %s92
    %p103 = scmp.eq.s32.totalorder %s15, 0
    %p104 = por %p102, %p103
    %p105 = scmp.ne.s32.totalorder %s91, %s92
    %p106 = scmp.eq.s32.totalorder %s16, 3
    %p107 = por %p105, %p106
    %p109 = scmp.ne.s32.totalorder %s92, %s108
    %p110 = scmp.eq.s32.totalorder %s16, 0
    %p111 = por %p109, %p110
    %s112 = ssub.s32 %s10, %s17
    %p113 = scmp.eq.s32.totalorder %s112, 0
    %s115 = sadd.s32 %s114, 1
    %s116 = scalar_select %p113, %s114, %s115
    %p119 = pneg %p113
    %p120 = scmp.eq.s32.totalorder %s10, 3
    %p121 = por %p119, %p120
    %p122 = scmp.ne.s32.totalorder %s114, %s117
    %p123 = scmp.eq.s32.totalorder %s10, 0
    %p124 = por %p122, %p123
    %p125 = scmp.ne.s32.totalorder %s114, %s117
    %p126 = scmp.eq.s32.totalorder %s15, 3
    %p127 = por %p125, %p126
    %p128 = scmp.ne.s32.totalorder %s117, %s118
    %p129 = scmp.eq.s32.totalorder %s15, 0
    %p130 = por %p128, %p129
    %p131 = scmp.ne.s32.totalorder %s117, %s118
    %p132 = scmp.eq.s32.totalorder %s16, 3
    %p133 = por %p131, %p132
    %p135 = scmp.ne.s32.totalorder %s118, %s134
    %p136 = scmp.eq.s32.totalorder %s16, 0
    %p137 = por %p135, %p136
    %p138 = scmp.le.s32.totalorder 1, %s10
    %p139 = scmp.lt.s32.totalorder %s10, 5
    %p140 = pnand %p138, %p139
    %p141 = pneg %p140
    // Predicated region
    $region9: #{run.14} parent=5 // pred_check
      _
    $region10: #{run.14} parent=5 // pred_check_branch
      %143 = sbr.rel (%p140) target = $region12
    $region11: #{run.14} parent=5 // pred_region
      %s144 = ssub.s32 %s10, 1
      // Predicated region
      $region13: #{run.14} parent=11 // pred_check
        %p145 = pneg %p57
      $region14: #{run.14} parent=11 // pred_check_branch
        %147 = sbr.rel (%p145) target = $region16
      $region15: #{run.14} parent=11 // pred_region
        _
      $region16: #{run.14} parent=11 // pred_fallthru
        _
      // Predicated region
      $region17: #{run.14} parent=11 // pred_check
        %p148 = pneg %p78
      $region18: #{run.14} parent=11 // pred_check_branch
        %150 = sbr.rel (%p148) target = $region20
      $region19: #{run.14} parent=11 // pred_region
        _
      $region20: #{run.14} parent=11 // pred_fallthru
        _
    $region12: #{run.14} parent=5 // pred_fallthru
      _
    %p151 = scmp.lt.s32.totalorder %s10, 4
    // Predicated region
    $region21: #{run.14} parent=5 // pred_check
      %p152 = pneg %p151
    $region22: #{run.14} parent=5 // pred_check_branch
      %154 = sbr.rel (%p152) target = $region24
    $region23: #{run.14} parent=5 // pred_region
      // Predicated region
      $region25: #{run.14} parent=23 // pred_check
        %p155 = pneg %p30
      $region26: #{run.14} parent=23 // pred_check_branch
        %157 = sbr.rel (%p155) target = $region28
      $region27: #{run.14} parent=23 // pred_region
        %p158 = scmp.lt.s32.totalorder %s10, 3
        %s159 = scalar_select %p158, %s10, 3
        %s160 = smul.addr %s159, 8
        %s161 = smul.addr %s160, 4
        %s162 = scalar_lea.vmem %s0, %s161
      $region28: #{run.14} parent=23 // pred_fallthru
        _
      // Predicated region
      $region29: #{run.14} parent=23 // pred_check
        %p163 = pneg %p98
      $region30: #{run.14} parent=23 // pred_check_branch
        %165 = sbr.rel (%p163) target = $region32
      $region31: #{run.14} parent=23 // pred_region
        %p166 = scmp.lt.s32.totalorder %s10, 3
        %s167 = scalar_select %p166, %s10, 3
        %s168 = scalar_lea.vmem %s3, %s167
      $region32: #{run.14} parent=23 // pred_fallthru
        _
    $region24: #{run.14} parent=5 // pred_fallthru
      _
    %p169 = scmp.le.s32.totalorder 1, %s10
    %p170 = scmp.lt.s32.totalorder %s10, 5
    %p171 = pnand %p169, %p170
    %p172 = pneg %p171
    // Predicated region
    $region33: #{run.14} parent=5 // pred_check
      _
    $region34: #{run.14} parent=5 // pred_check_branch
      %174 = sbr.rel (%p171) target = $region36
    $region35: #{run.14} parent=5 // pred_region
      %s175 = ssub.s32 %s10, 1
      %p176 = scmp.lt.s32.totalorder %s15, 3
      %s177 = scalar_select %p176, %s15, 3
      %s178 = smul.addr %s177, 8
      %s179 = smul.addr %s178, 4
      %s180 = scalar_lea.vmem %s0, %s179
      %p181 = pneg %p36
      %p182 = pneg %p33
      %p183 = pneg %p57
      %p184 = pneg %p54
      %p185 = pneg %p78
      %p186 = pneg %p75
      %p187 = scmp.lt.s32.totalorder %s15, 3
      %s188 = scalar_select %p187, %s15, 3
      %s189 = scalar_lea.vmem %s3, %s188
      %p190 = pneg %p104
      %p191 = pneg %p101
      %p192 = pneg %p130
      %p193 = pneg %p127
      %p194 = scmp.lt.s32.totalorder %s15, 3
      %s195 = scalar_select %p194, %s15, 3
      %s196 = smul.addr %s195, 8
      %s197 = smul.addr %s196, 8
      %s198 = scalar_lea.vmem %s4, %s197
      %p199 = scmp.lt.s32.totalorder %s15, 3
      %s200 = scalar_select %p199, %s15, 3
      %s201 = smul.addr %s200, 8
      %s202 = smul.addr %s201, 4
      %s203 = scalar_lea.vmem %s0, %s202
      %p204 = scmp.lt.s32.totalorder %s15, 3
      %s205 = scalar_select %p204, %s15, 3
      %s206 = scalar_lea.vmem %s3, %s205
      %p207 = scmp.lt.s32.totalorder %s15, 3
      %s208 = scalar_select %p207, %s15, 3
      %s209 = smul.addr %s208, 8
      %s210 = smul.addr %s209, 8
      %s211 = scalar_lea.vmem %s4, %s210
      %v213 = vld [vmem:[%s203] sm:$0xf]
      %v214 = vld [vmem:[%s203 + $0x4] sm:$0xf]
      %v215 = vld [vmem:[%s203 + $0x8] sm:$0xf]
      %v216 = vld [vmem:[%s203 + $0xc] sm:$0xf]
      %v217 = vld [vmem:[%s203 + $0x10] sm:$0xf]
      %v218 = vld [vmem:[%s203 + $0x14] sm:$0xf]
      %v219 = vld [vmem:[%s203 + $0x18] sm:$0xf]
      %v220 = vld [vmem:[%s203 + $0x1c] sm:$0xf]
      %v221 = vld [vmem:[%s1] sm:$0xf]
      %v222 = vld [vmem:[%s1 + $0x4] sm:$0xf]
      %v223 = vld [vmem:[%s1 + $0x8] sm:$0xf]
      %v224 = vld [vmem:[%s1 + $0xc] sm:$0xf]
      %v225 = vld [vmem:[%s2] sm:$0x1]
      %v227 = vlaneseq
      %v228 = vshrl.u32 %v227, 7
      %v229 = vsub.s32 0, %v228
      %v230 = vrot.slane %v225, %v229
      %v240 = vunpack.c.l.b16 %v213
      %v241 = vunpack.c.l.b16 %v214
      %v242 = vunpack.c.l.b16 %v215
      %v243 = vunpack.c.l.b16 %v216
      %v244 = vunpack.c.l.b16 %v217
      %v245 = vunpack.c.l.b16 %v218
      %v246 = vunpack.c.l.b16 %v219
      %v247 = vunpack.c.l.b16 %v220
      %v248 = vpack.c.b16 %v241, %v240
      %v249 = vpack.c.b16 %v243, %v242
      %v250 = vpack.c.b16 %v245, %v244
      %v251 = vpack.c.b16 %v247, %v246
      %v256 = vunpack.c.l.b16 %v221
      %v257 = vunpack.c.l.b16 %v222
      %v258 = vunpack.c.l.b16 %v223
      %v259 = vunpack.c.l.b16 %v224
      %v260 = vpack.c.b16 %v257, %v256
      %v261 = vpack.c.b16 %v259, %v258
      %vm264 = vcmask 261120
      %v266 = vsel %vm264, %v248, 0
      %v269 = vsel %vm264, %v249, 0
      %v272 = vsel %vm264, %v250, 0
      %v275 = vsel %vm264, %v251, 0
      %277 = vmatprep.subr.bf16.mxu0 0
      %278 = vmatpush1.bf16.msra.mxu0 0
      %279 = vmatprep.subr.bf16.mxu0 0
      %280 = vmatpush1.bf16.msra.mxu0 0
      %281 = vmatprep.subr.bf16.mxu0 0
      %282 = vmatpush1.bf16.msra.mxu0 0
      %283 = vmatprep.subr.bf16.mxu0 0
      %284 = vmatpush1.bf16.msra.mxu0 0
      %285 = vmatprep.subr.bf16.mxu0 0
      %286 = vmatpush1.bf16.msra.mxu0 0
      %287 = vmatprep.subr.bf16.mxu0 0
      %288 = vmatpush1.bf16.msra.mxu0 0
      %289 = vmatprep.subr.bf16.mxu0 0
      %290 = vmatpush1.bf16.msra.mxu0 %v261
      %291 = vmatprep.subr.bf16.mxu0 0
      %292 = vmatpush1.bf16.msra.mxu0 %v260
      %293 = vmatprep.subr.bf16.mxu0 0
      %294 = vmatpush2.bf16.msra.mxu0 0
      %295 = vmatprep.subr.bf16.mxu0 0
      %296 = vmatpush2.bf16.msra.mxu0 0
      %297 = vmatprep.subr.bf16.mxu0 0
      %298 = vmatpush2.bf16.msra.mxu0 0
      %299 = vmatprep.subr.bf16.mxu0 0
      %300 = vmatpush2.bf16.msra.mxu0 0
      %301 = vmatprep.subr.bf16.mxu0 0
      %302 = vmatpush2.bf16.msra.mxu0 0
      %303 = vmatprep.subr.bf16.mxu0 0
      %304 = vmatpush2.bf16.msra.mxu0 0
      %305 = vmatprep.subr.bf16.mxu0 0
      %306 = vmatpush2.bf16.msra.mxu0 0
      %307 = vmatprep.subr.bf16.mxu0 0
      %308 = vmatpush2.bf16.msra.mxu0 0
      %309 = vmatprep.mubr.bf16.mxu0 0
      %310 = vmatmul.mubr.bf16.gmra.mxu0 %v266
      %v311 = vpop.f32.mrf.mxu0
      %v312 = vadd.f32 %v230, %v311
      %v313 = vpop.f32.mrf.mxu0
      %v314 = vpop.f32.mrf.mxu0
      %v315 = vadd.f32 %v230, %v314
      %v316 = vpop.f32.mrf.mxu0
      %317 = vmatprep.mubr.bf16.mxu0 0
      %318 = vmatmul.mubr.bf16.gmra.mxu0 %v269
      %v319 = vpop.f32.mrf.mxu0
      %v320 = vadd.f32 %v230, %v319
      %v321 = vpop.f32.mrf.mxu0
      %v322 = vpop.f32.mrf.mxu0
      %v323 = vadd.f32 %v230, %v322
      %v324 = vpop.f32.mrf.mxu0
      %325 = vmatprep.mubr.bf16.mxu0 0
      %326 = vmatmul.mubr.bf16.gmra.mxu0 %v272
      %v327 = vpop.f32.mrf.mxu0
      %v328 = vadd.f32 %v230, %v327
      %v329 = vpop.f32.mrf.mxu0
      %v330 = vpop.f32.mrf.mxu0
      %v331 = vadd.f32 %v230, %v330
      %v332 = vpop.f32.mrf.mxu0
      %333 = vmatprep.mubr.bf16.mxu0 0
      %334 = vmatmul.mubr.bf16.gmra.mxu0 %v275
      %v335 = vpop.f32.mrf.mxu0
      %v336 = vadd.f32 %v230, %v335
      %v337 = vpop.f32.mrf.mxu0
      %v338 = vpop.f32.mrf.mxu0
      %v339 = vadd.f32 %v230, %v338
      %v340 = vpop.f32.mrf.mxu0
      %341 = vdwg.mxu0
      %v342 = vmax.f32 %v312, 0.0
      %v343 = vmax.f32 %v315, 0.0
      %v344 = vmax.f32 %v320, 0.0
      %v345 = vmax.f32 %v323, 0.0
      %v346 = vmax.f32 %v328, 0.0
      %v347 = vmax.f32 %v331, 0.0
      %v348 = vmax.f32 %v336, 0.0
      %v349 = vmax.f32 %v339, 0.0
      %v350 = vld [vmem:[%s206] sm:$0x1]
      %v352 = vlaneseq
      %v353 = vshrl.u32 %v352, 7
      %v354 = vsub.s32 0, %v353
      %v355 = vrot.slane %v350, %v354
      %v357 = vmul.f32 %v342, %v355
      %v358 = vmul.f32 %v343, %v355
      %v359 = vmul.f32 %v344, %v355
      %v360 = vmul.f32 %v345, %v355
      %v361 = vmul.f32 %v346, %v355
      %v362 = vmul.f32 %v347, %v355
      %v363 = vmul.f32 %v348, %v355
      %v364 = vmul.f32 %v349, %v355
      %v365 = vsel %vm264, %v357, 0.0
      %366 = vadd.xlane.f32.xlu0 %v365
      %v367 = vpop.xlane.xlu0 %366
      %v368 = vsel %vm264, %v358, 0.0
      %369 = vadd.xlane.f32.xlu0 %v368
      %v370 = vpop.xlane.xlu0 %369
      %v371 = vsel %vm264, %v359, 0.0
      %372 = vadd.xlane.f32.xlu0 %v371
      %v373 = vpop.xlane.xlu0 %372
      %v374 = vsel %vm264, %v360, 0.0
      %375 = vadd.xlane.f32.xlu0 %v374
      %v376 = vpop.xlane.xlu0 %375
      %v377 = vsel %vm264, %v361, 0.0
      %378 = vadd.xlane.f32.xlu0 %v377
      %v379 = vpop.xlane.xlu0 %378
      %v380 = vsel %vm264, %v362, 0.0
      %381 = vadd.xlane.f32.xlu0 %v380
      %v382 = vpop.xlane.xlu0 %381
      %v383 = vsel %vm264, %v363, 0.0
      %384 = vadd.xlane.f32.xlu0 %v383
      %v385 = vpop.xlane.xlu0 %384
      %v386 = vsel %vm264, %v364, 0.0
      %387 = vadd.xlane.f32.xlu0 %v386
      %v388 = vpop.xlane.xlu0 %387
      %vm389 = vcmask 7168
      %390 = vst.msk [vmem:[%s211] sm:$0xff] %vm389, %v367
      %391 = vst.msk [vmem:[%s211 + $0x8] sm:$0xff] %vm389, %v370
      %392 = vst.msk [vmem:[%s211 + $0x10] sm:$0xff] %vm389, %v373
      %393 = vst.msk [vmem:[%s211 + $0x18] sm:$0xff] %vm389, %v376
      %394 = vst.msk [vmem:[%s211 + $0x20] sm:$0xff] %vm389, %v379
      %395 = vst.msk [vmem:[%s211 + $0x28] sm:$0xff] %vm389, %v382
      %396 = vst.msk [vmem:[%s211 + $0x30] sm:$0xff] %vm389, %v385
      %397 = vst.msk [vmem:[%s211 + $0x38] sm:$0xff] %vm389, %v388
      %p398 = scmp.lt.s32.totalorder %s15, 3
      %s399 = scalar_select %p398, %s15, 3
      %s400 = smul.addr %s399, 8
      %s401 = smul.addr %s400, 8
      %s402 = scalar_lea.vmem %s4, %s401
      // Predicated region
      $region37: #{run.14} parent=35 // pred_check
        %p403 = pneg %p127
      $region38: #{run.14} parent=35 // pred_check_branch
        %405 = sbr.rel (%p403) target = $region40
      $region39: #{run.14} parent=35 // pred_region
        _
      $region40: #{run.14} parent=35 // pred_fallthru
        _
    $region36: #{run.14} parent=5 // pred_fallthru
      _
    %p406 = scmp.le.s32.totalorder 2, %s10
    // Predicated region
    $region41: #{run.14} parent=5 // pred_check
      %p407 = pneg %p406
    $region42: #{run.14} parent=5 // pred_check_branch
      %409 = sbr.rel (%p407) target = $region44
    $region43: #{run.14} parent=5 // pred_region
      %s410 = ssub.s32 %s10, 2
      // Predicated region
      $region45: #{run.14} parent=43 // pred_check
        %p411 = pneg %p133
      $region46: #{run.14} parent=43 // pred_check_branch
        %413 = sbr.rel (%p411) target = $region48
      $region47: #{run.14} parent=43 // pred_region
        %p414 = scmp.lt.s32.totalorder %s16, 3
        %s415 = scalar_select %p414, %s16, 3
        %s416 = smul.addr %s415, 8
        %s417 = smul.addr %s416, 8
        %s418 = scalar_lea.vmem %s4, %s417
      $region48: #{run.14} parent=43 // pred_fallthru
        _
    $region44: #{run.14} parent=5 // pred_fallthru
      _
  $region6: #{run.14} parent=0 // loop_footer
    %s14 = sadd.s32 1, %s10
  $region7: #{run.14} parent=0 // loop_footer_branch
    %9 = sbr.rel target = $region3
  $region8: #{run.14} parent=0 // loop_exit
    _

// kernel: run.12
$region0: #{run.12}
  #allocation0 [shape = 'u32[]', space=smem, size = 0x4, offset = 0x4, fixed_abs, tag = 'smem constant byte address 0x4 - core index']
  #allocation1 [shape = 'u32[144,128]{1,0:T(1,128)}', space=vmem, size = 0x12000, scoped, tag = 'internal scratch']
  %s0 = inlined_call_operand.vmem [shape: f32[4,64,32], index: 0, kind: input, shape index: {}]
  %s1 = inlined_call_operand.vmem [shape: bf16[32,32], index: 1, kind: input, shape index: {}]
  %s2 = inlined_call_operand.vmem [shape: f32[1,32], index: 2, kind: input, shape index: {}, may-alias: {2,4,6,8,12}]
  %s3 = inlined_call_operand.vmem [shape: bf16[32,32], index: 3, kind: input, shape index: {}]
  %s4 = inlined_call_operand.vmem [shape: f32[1,32], index: 4, kind: input, shape index: {}, may-alias: {2,4,6,8,12}]
  %s5 = inlined_call_operand.vmem [shape: bf16[32,32], index: 5, kind: input, shape index: {}]
  %s6 = inlined_call_operand.vmem [shape: f32[1,32], index: 6, kind: input, shape index: {}, may-alias: {2,4,6,8,12}]
  %s7 = inlined_call_operand.vmem [shape: bf16[32,32], index: 7, kind: input, shape index: {}]
  %s8 = inlined_call_operand.vmem [shape: f32[1,32], index: 8, kind: input, shape index: {}, may-alias: {2,4,6,8,12}]
  %s9 = inlined_call_operand.vmem [shape: bf16[32,64], index: 9, kind: input, shape index: {}]
  %s10 = inlined_call_operand.vmem [shape: f32[1,64], index: 10, kind: input, shape index: {}]
  %s11 = inlined_call_operand.vmem [shape: bf16[64,32], index: 11, kind: input, shape index: {}]
  %s12 = inlined_call_operand.vmem [shape: f32[1,32], index: 12, kind: input, shape index: {}, may-alias: {2,4,6,8,12}]
  %s13 = inlined_call_operand.vmem [shape: f32[4,64,32], index: 13, kind: output, shape index: {}]
  %s14 = sld [smem:[#allocation0]]
  $region85: #{run.12} parent=0
    _
  %s16 = ssub.s32 1, %s14
  %s17 = scalar_select 0, %s16, %s14
  loop: start=0, step=1, limit=6
  $region2: #{run.12} parent=0 // loop_pre_header
    _
  $region3: #{run.12} parent=0 // loop_header
    %s19 = sphi 0, %s23
    %p20 = scmp.ge.s32.totalorder %s19, 6
    %s29 = sphi 0, %s31
    %s32 = sphi 0, %s29
    %s33 = sphi 0, %s32
    %s49 = sphi 0, %s33
    %s53 = sphi 0, %s53
    %s55 = sphi 0, %s53
    %s56 = sphi 0, %s55
    %s70 = sphi 0, %s56
    %s74 = sphi 0, %s74
    %s76 = sphi 0, %s74
    %s77 = sphi 0, %s76
    %s91 = sphi 0, %s77
    %s95 = sphi 0, %s95
    %s97 = sphi 0, %s95
    %s98 = sphi 0, %s97
    %s112 = sphi 0, %s98
    %s116 = sphi 0, %s116
    %s118 = sphi 0, %s116
    %s119 = sphi 0, %s118
    %s133 = sphi 0, %s119
    %s137 = sphi 0, %s137
    %s139 = sphi 0, %s137
    %s140 = sphi 0, %s139
    %s154 = sphi 0, %s140
    %s158 = sphi 0, %s158
    %s160 = sphi 0, %s158
    %s161 = sphi 0, %s160
    %s175 = sphi 0, %s161
    %s179 = sphi 0, %s179
    %s181 = sphi 0, %s179
    %s182 = sphi 0, %s181
    %s196 = sphi 0, %s182
    %s200 = sphi 0, %s200
    %s202 = sphi 0, %s200
    %s203 = sphi 0, %s202
    %s217 = sphi 0, %s203
    %s221 = sphi 0, %s221
    %s223 = sphi 0, %s221
    %s224 = sphi 0, %s223
    %s238 = sphi 0, %s224
    %s242 = sphi 0, %s242
    %s244 = sphi 0, %s242
    %s245 = sphi 0, %s244
    %s259 = sphi 0, %s245
    %s263 = sphi 0, %s263
    %s265 = sphi 0, %s263
    %s266 = sphi 0, %s265
    %s280 = sphi 0, %s266
    %s284 = sphi 0, %s284
    %s286 = sphi 0, %s284
    %s287 = sphi 0, %s286
    %s301 = sphi 0, %s287
    %s307 = sphi 0, %s309
    %s310 = sphi 0, %s307
    %s311 = sphi 0, %s310
    %s327 = sphi 0, %s311
  $region4: #{run.12} parent=0 // loop_header_branch
    %22 = sbr.rel (%p20) target = $region8
  $region5: #{run.12} parent=0 // loop_body
    %s24 = ssub.s32 %s19, 1
    %s25 = ssub.s32 %s19, 2
    %s26 = sadd.s32 %s19, 1
    %s27 = ssub.s32 %s19, %s26
    %p28 = scmp.eq.s32.totalorder %s27, 0
    %s30 = sadd.s32 %s29, 1
    %s31 = scalar_select %p28, %s29, %s30
    %p34 = pneg %p28
    %p35 = scmp.eq.s32.totalorder %s19, 3
    %p36 = por %p34, %p35
    %p37 = scmp.ne.s32.totalorder %s29, %s32
    %p38 = scmp.eq.s32.totalorder %s19, 0
    %p39 = por %p37, %p38
    %p40 = scmp.ne.s32.totalorder %s29, %s32
    %p41 = scmp.eq.s32.totalorder %s24, 3
    %p42 = por %p40, %p41
    %p43 = scmp.ne.s32.totalorder %s32, %s33
    %p44 = scmp.eq.s32.totalorder %s24, 0
    %p45 = por %p43, %p44
    %p46 = scmp.ne.s32.totalorder %s32, %s33
    %p47 = scmp.eq.s32.totalorder %s25, 3
    %p48 = por %p46, %p47
    %p50 = scmp.ne.s32.totalorder %s33, %s49
    %p51 = scmp.eq.s32.totalorder %s25, 0
    %p52 = por %p50, %p51
    %s54 = sadd.s32 %s53, 1
    %p57 = scmp.eq.s32.totalorder %s19, 3
    %p58 = scmp.ne.s32.totalorder %s53, %s55
    %p59 = scmp.eq.s32.totalorder %s19, 0
    %p60 = por %p58, %p59
    %p61 = scmp.ne.s32.totalorder %s53, %s55
    %p62 = scmp.eq.s32.totalorder %s24, 3
    %p63 = por %p61, %p62
    %p64 = scmp.ne.s32.totalorder %s55, %s56
    %p65 = scmp.eq.s32.totalorder %s24, 0
    %p66 = por %p64, %p65
    %p67 = scmp.ne.s32.totalorder %s55, %s56
    %p68 = scmp.eq.s32.totalorder %s25, 3
    %p69 = por %p67, %p68
    %p71 = scmp.ne.s32.totalorder %s56, %s70
    %p72 = scmp.eq.s32.totalorder %s25, 0
    %p73 = por %p71, %p72
    %s75 = sadd.s32 %s74, 1
    %p78 = scmp.eq.s32.totalorder %s19, 3
    %p79 = scmp.ne.s32.totalorder %s74, %s76
    %p80 = scmp.eq.s32.totalorder %s19, 0
    %p81 = por %p79, %p80
    %p82 = scmp.ne.s32.totalorder %s74, %s76
    %p83 = scmp.eq.s32.totalorder %s24, 3
    %p84 = por %p82, %p83
    %p85 = scmp.ne.s32.totalorder %s76, %s77
    %p86 = scmp.eq.s32.totalorder %s24, 0
    %p87 = por %p85, %p86
    %p88 = scmp.ne.s32.totalorder %s76, %s77
    %p89 = scmp.eq.s32.totalorder %s25, 3
    %p90 = por %p88, %p89
    %p92 = scmp.ne.s32.totalorder %s77, %s91
    %p93 = scmp.eq.s32.totalorder %s25, 0
    %p94 = por %p92, %p93
    %s96 = sadd.s32 %s95, 1
    %p99 = scmp.eq.s32.totalorder %s19, 3
    %p100 = scmp.ne.s32.totalorder %s95, %s97
    %p101 = scmp.eq.s32.totalorder %s19, 0
    %p102 = por %p100, %p101
    %p103 = scmp.ne.s32.totalorder %s95, %s97
    %p104 = scmp.eq.s32.totalorder %s24, 3
    %p105 = por %p103, %p104
    %p106 = scmp.ne.s32.totalorder %s97, %s98
    %p107 = scmp.eq.s32.totalorder %s24, 0
    %p108 = por %p106, %p107
    %p109 = scmp.ne.s32.totalorder %s97, %s98
    %p110 = scmp.eq.s32.totalorder %s25, 3
    %p111 = por %p109, %p110
    %p113 = scmp.ne.s32.totalorder %s98, %s112
    %p114 = scmp.eq.s32.totalorder %s25, 0
    %p115 = por %p113, %p114
    %s117 = sadd.s32 %s116, 1
    %p120 = scmp.eq.s32.totalorder %s19, 3
    %p121 = scmp.ne.s32.totalorder %s116, %s118
    %p122 = scmp.eq.s32.totalorder %s19, 0
    %p123 = por %p121, %p122
    %p124 = scmp.ne.s32.totalorder %s116, %s118
    %p125 = scmp.eq.s32.totalorder %s24, 3
    %p126 = por %p124, %p125
    %p127 = scmp.ne.s32.totalorder %s118, %s119
    %p128 = scmp.eq.s32.totalorder %s24, 0
    %p129 = por %p127, %p128
    %p130 = scmp.ne.s32.totalorder %s118, %s119
    %p131 = scmp.eq.s32.totalorder %s25, 3
    %p132 = por %p130, %p131
    %p134 = scmp.ne.s32.totalorder %s119, %s133
    %p135 = scmp.eq.s32.totalorder %s25, 0
    %p136 = por %p134, %p135
    %s138 = sadd.s32 %s137, 1
    %p141 = scmp.eq.s32.totalorder %s19, 3
    %p142 = scmp.ne.s32.totalorder %s137, %s139
    %p143 = scmp.eq.s32.totalorder %s19, 0
    %p144 = por %p142, %p143
    %p145 = scmp.ne.s32.totalorder %s137, %s139
    %p146 = scmp.eq.s32.totalorder %s24, 3
    %p147 = por %p145, %p146
    %p148 = scmp.ne.s32.totalorder %s139, %s140
    %p149 = scmp.eq.s32.totalorder %s24, 0
    %p150 = por %p148, %p149
    %p151 = scmp.ne.s32.totalorder %s139, %s140
    %p152 = scmp.eq.s32.totalorder %s25, 3
    %p153 = por %p151, %p152
    %p155 = scmp.ne.s32.totalorder %s140, %s154
    %p156 = scmp.eq.s32.totalorder %s25, 0
    %p157 = por %p155, %p156
    %s159 = sadd.s32 %s158, 1
    %p162 = scmp.eq.s32.totalorder %s19, 3
    %p163 = scmp.ne.s32.totalorder %s158, %s160
    %p164 = scmp.eq.s32.totalorder %s19, 0
    %p165 = por %p163, %p164
    %p166 = scmp.ne.s32.totalorder %s158, %s160
    %p167 = scmp.eq.s32.totalorder %s24, 3
    %p168 = por %p166, %p167
    %p169 = scmp.ne.s32.totalorder %s160, %s161
    %p170 = scmp.eq.s32.totalorder %s24, 0
    %p171 = por %p169, %p170
    %p172 = scmp.ne.s32.totalorder %s160, %s161
    %p173 = scmp.eq.s32.totalorder %s25, 3
    %p174 = por %p172, %p173
    %p176 = scmp.ne.s32.totalorder %s161, %s175
    %p177 = scmp.eq.s32.totalorder %s25, 0
    %p178 = por %p176, %p177
    %s180 = sadd.s32 %s179, 1
    %p183 = scmp.eq.s32.totalorder %s19, 3
    %p184 = scmp.ne.s32.totalorder %s179, %s181
    %p185 = scmp.eq.s32.totalorder %s19, 0
    %p186 = por %p184, %p185
    %p187 = scmp.ne.s32.totalorder %s179, %s181
    %p188 = scmp.eq.s32.totalorder %s24, 3
    %p189 = por %p187, %p188
    %p190 = scmp.ne.s32.totalorder %s181, %s182
    %p191 = scmp.eq.s32.totalorder %s24, 0
    %p192 = por %p190, %p191
    %p193 = scmp.ne.s32.totalorder %s181, %s182
    %p194 = scmp.eq.s32.totalorder %s25, 3
    %p195 = por %p193, %p194
    %p197 = scmp.ne.s32.totalorder %s182, %s196
    %p198 = scmp.eq.s32.totalorder %s25, 0
    %p199 = por %p197, %p198
    %s201 = sadd.s32 %s200, 1
    %p204 = scmp.eq.s32.totalorder %s19, 3
    %p205 = scmp.ne.s32.totalorder %s200, %s202
    %p206 = scmp.eq.s32.totalorder %s19, 0
    %p207 = por %p205, %p206
    %p208 = scmp.ne.s32.totalorder %s200, %s202
    %p209 = scmp.eq.s32.totalorder %s24, 3
    %p210 = por %p208, %p209
    %p211 = scmp.ne.s32.totalorder %s202, %s203
    %p212 = scmp.eq.s32.totalorder %s24, 0
    %p213 = por %p211, %p212
    %p214 = scmp.ne.s32.totalorder %s202, %s203
    %p215 = scmp.eq.s32.totalorder %s25, 3
    %p216 = por %p214, %p215
    %p218 = scmp.ne.s32.totalorder %s203, %s217
    %p219 = scmp.eq.s32.totalorder %s25, 0
    %p220 = por %p218, %p219
    %s222 = sadd.s32 %s221, 1
    %p225 = scmp.eq.s32.totalorder %s19, 3
    %p226 = scmp.ne.s32.totalorder %s221, %s223
    %p227 = scmp.eq.s32.totalorder %s19, 0
    %p228 = por %p226, %p227
    %p229 = scmp.ne.s32.totalorder %s221, %s223
    %p230 = scmp.eq.s32.totalorder %s24, 3
    %p231 = por %p229, %p230
    %p232 = scmp.ne.s32.totalorder %s223, %s224
    %p233 = scmp.eq.s32.totalorder %s24, 0
    %p234 = por %p232, %p233
    %p235 = scmp.ne.s32.totalorder %s223, %s224
    %p236 = scmp.eq.s32.totalorder %s25, 3
    %p237 = por %p235, %p236
    %p239 = scmp.ne.s32.totalorder %s224, %s238
    %p240 = scmp.eq.s32.totalorder %s25, 0
    %p241 = por %p239, %p240
    %s243 = sadd.s32 %s242, 1
    %p246 = scmp.eq.s32.totalorder %s19, 3
    %p247 = scmp.ne.s32.totalorder %s242, %s244
    %p248 = scmp.eq.s32.totalorder %s19, 0
    %p249 = por %p247, %p248
    %p250 = scmp.ne.s32.totalorder %s242, %s244
    %p251 = scmp.eq.s32.totalorder %s24, 3
    %p252 = por %p250, %p251
    %p253 = scmp.ne.s32.totalorder %s244, %s245
    %p254 = scmp.eq.s32.totalorder %s24, 0
    %p255 = por %p253, %p254
    %p256 = scmp.ne.s32.totalorder %s244, %s245
    %p257 = scmp.eq.s32.totalorder %s25, 3
    %p258 = por %p256, %p257
    %p260 = scmp.ne.s32.totalorder %s245, %s259
    %p261 = scmp.eq.s32.totalorder %s25, 0
    %p262 = por %p260, %p261
    %s264 = sadd.s32 %s263, 1
    %p267 = scmp.eq.s32.totalorder %s19, 3
    %p268 = scmp.ne.s32.totalorder %s263, %s265
    %p269 = scmp.eq.s32.totalorder %s19, 0
    %p270 = por %p268, %p269
    %p271 = scmp.ne.s32.totalorder %s263, %s265
    %p272 = scmp.eq.s32.totalorder %s24, 3
    %p273 = por %p271, %p272
    %p274 = scmp.ne.s32.totalorder %s265, %s266
    %p275 = scmp.eq.s32.totalorder %s24, 0
    %p276 = por %p274, %p275
    %p277 = scmp.ne.s32.totalorder %s265, %s266
    %p278 = scmp.eq.s32.totalorder %s25, 3
    %p279 = por %p277, %p278
    %p281 = scmp.ne.s32.totalorder %s266, %s280
    %p282 = scmp.eq.s32.totalorder %s25, 0
    %p283 = por %p281, %p282
    %s285 = sadd.s32 %s284, 1
    %p288 = scmp.eq.s32.totalorder %s19, 3
    %p289 = scmp.ne.s32.totalorder %s284, %s286
    %p290 = scmp.eq.s32.totalorder %s19, 0
    %p291 = por %p289, %p290
    %p292 = scmp.ne.s32.totalorder %s284, %s286
    %p293 = scmp.eq.s32.totalorder %s24, 3
    %p294 = por %p292, %p293
    %p295 = scmp.ne.s32.totalorder %s286, %s287
    %p296 = scmp.eq.s32.totalorder %s24, 0
    %p297 = por %p295, %p296
    %p298 = scmp.ne.s32.totalorder %s286, %s287
    %p299 = scmp.eq.s32.totalorder %s25, 3
    %p300 = por %p298, %p299
    %p302 = scmp.ne.s32.totalorder %s287, %s301
    %p303 = scmp.eq.s32.totalorder %s25, 0
    %p304 = por %p302, %p303
    %s305 = ssub.s32 %s19, %s26
    %p306 = scmp.eq.s32.totalorder %s305, 0
    %s308 = sadd.s32 %s307, 1
    %s309 = scalar_select %p306, %s307, %s308
    %p312 = pneg %p306
    %p313 = scmp.eq.s32.totalorder %s19, 3
    %p314 = por %p312, %p313
    %p315 = scmp.ne.s32.totalorder %s307, %s310
    %p316 = scmp.eq.s32.totalorder %s19, 0
    %p317 = por %p315, %p316
    %p318 = scmp.ne.s32.totalorder %s307, %s310
    %p319 = scmp.eq.s32.totalorder %s24, 3
    %p320 = por %p318, %p319
    %p321 = scmp.ne.s32.totalorder %s310, %s311
    %p322 = scmp.eq.s32.totalorder %s24, 0
    %p323 = por %p321, %p322
    %p324 = scmp.ne.s32.totalorder %s310, %s311
    %p325 = scmp.eq.s32.totalorder %s25, 3
    %p326 = por %p324, %p325
    %p328 = scmp.ne.s32.totalorder %s311, %s327
    %p329 = scmp.eq.s32.totalorder %s25, 0
    %p330 = por %p328, %p329
    %p331 = scmp.le.s32.totalorder 1, %s19
    %p332 = scmp.lt.s32.totalorder %s19, 5
    %p333 = pnand %p331, %p332
    %p334 = pneg %p333
    // Predicated region
    $region9: #{run.12} parent=5 // pred_check
      _
    $region10: #{run.12} parent=5 // pred_check_branch
      %336 = sbr.rel (%p333) target = $region12
    $region11: #{run.12} parent=5 // pred_region
      %s337 = ssub.s32 %s19, 1
      // Predicated region
      $region13: #{run.12} parent=11 // pred_check
        %p338 = pneg %p66
      $region14: #{run.12} parent=11 // pred_check_branch
        %340 = sbr.rel (%p338) target = $region16
      $region15: #{run.12} parent=11 // pred_region
        _
      $region16: #{run.12} parent=11 // pred_fallthru
        _
      // Predicated region
      $region17: #{run.12} parent=11 // pred_check
        %p341 = pneg %p87
      $region18: #{run.12} parent=11 // pred_check_branch
        %343 = sbr.rel (%p341) target = $region20
      $region19: #{run.12} parent=11 // pred_region
        _
      $region20: #{run.12} parent=11 // pred_fallthru
        _
      // Predicated region
      $region21: #{run.12} parent=11 // pred_check
        %p344 = pneg %p108
      $region22: #{run.12} parent=11 // pred_check_branch
        %346 = sbr.rel (%p344) target = $region24
      $region23: #{run.12} parent=11 // pred_region
        _
      $region24: #{run.12} parent=11 // pred_fallthru
        _
      // Predicated region
      $region25: #{run.12} parent=11 // pred_check
        %p347 = pneg %p129
      $region26: #{run.12} parent=11 // pred_check_branch
        %349 = sbr.rel (%p347) target = $region28
      $region27: #{run.12} parent=11 // pred_region
        _
      $region28: #{run.12} parent=11 // pred_fallthru
        _
      // Predicated region
      $region29: #{run.12} parent=11 // pred_check
        %p350 = pneg %p150
      $region30: #{run.12} parent=11 // pred_check_branch
        %352 = sbr.rel (%p350) target = $region32
      $region31: #{run.12} parent=11 // pred_region
        _
      $region32: #{run.12} parent=11 // pred_fallthru
        _
      // Predicated region
      $region33: #{run.12} parent=11 // pred_check
        %p353 = pneg %p171
      $region34: #{run.12} parent=11 // pred_check_branch
        %355 = sbr.rel (%p353) target = $region36
      $region35: #{run.12} parent=11 // pred_region
        _
      $region36: #{run.12} parent=11 // pred_fallthru
        _
      // Predicated region
      $region37: #{run.12} parent=11 // pred_check
        %p356 = pneg %p192
      $region38: #{run.12} parent=11 // pred_check_branch
        %358 = sbr.rel (%p356) target = $region40
      $region39: #{run.12} parent=11 // pred_region
        _
      $region40: #{run.12} parent=11 // pred_fallthru
        _
      // Predicated region
      $region41: #{run.12} parent=11 // pred_check
        %p359 = pneg %p213
      $region42: #{run.12} parent=11 // pred_check_branch
        %361 = sbr.rel (%p359) target = $region44
      $region43: #{run.12} parent=11 // pred_region
        _
      $region44: #{run.12} parent=11 // pred_fallthru
        _
      // Predicated region
      $region45: #{run.12} parent=11 // pred_check
        %p362 = pneg %p234
      $region46: #{run.12} parent=11 // pred_check_branch
        %364 = sbr.rel (%p362) target = $region48
      $region47: #{run.12} parent=11 // pred_region
        _
      $region48: #{run.12} parent=11 // pred_fallthru
        _
      // Predicated region
      $region49: #{run.12} parent=11 // pred_check
        %p365 = pneg %p255
      $region50: #{run.12} parent=11 // pred_check_branch
        %367 = sbr.rel (%p365) target = $region52
      $region51: #{run.12} parent=11 // pred_region
        _
      $region52: #{run.12} parent=11 // pred_fallthru
        _
      // Predicated region
      $region53: #{run.12} parent=11 // pred_check
        %p368 = pneg %p276
      $region54: #{run.12} parent=11 // pred_check_branch
        %370 = sbr.rel (%p368) target = $region56
      $region55: #{run.12} parent=11 // pred_region
        _
      $region56: #{run.12} parent=11 // pred_fallthru
        _
      // Predicated region
      $region57: #{run.12} parent=11 // pred_check
        %p371 = pneg %p297
      $region58: #{run.12} parent=11 // pred_check_branch
        %373 = sbr.rel (%p371) target = $region60
      $region59: #{run.12} parent=11 // pred_region
        _
      $region60: #{run.12} parent=11 // pred_fallthru
        _
    $region12: #{run.12} parent=5 // pred_fallthru
      _
    %p374 = scmp.lt.s32.totalorder %s19, 4
    // Predicated region
    $region61: #{run.12} parent=5 // pred_check
      %p375 = pneg %p374
    $region62: #{run.12} parent=5 // pred_check_branch
      %377 = sbr.rel (%p375) target = $region64
    $region63: #{run.12} parent=5 // pred_region
      // Predicated region
      $region65: #{run.12} parent=63 // pred_check
        %p378 = pneg %p39
      $region66: #{run.12} parent=63 // pred_check_branch
        %380 = sbr.rel (%p378) target = $region68
      $region67: #{run.12} parent=63 // pred_region
        %p381 = scmp.lt.s32.totalorder %s19, 3
        %s382 = scalar_select %p381, %s19, 3
        %s383 = smul.addr %s382, 8
        %s384 = smul.addr %s383, 8
        %s385 = scalar_lea.vmem %s0, %s384
      $region68: #{run.12} parent=63 // pred_fallthru
        _
    $region64: #{run.12} parent=5 // pred_fallthru
      _
    %p386 = scmp.le.s32.totalorder 1, %s19
    %p387 = scmp.lt.s32.totalorder %s19, 5
    %p388 = pnand %p386, %p387
    %p389 = pneg %p388
    // Predicated region
    $region69: #{run.12} parent=5 // pred_check
      _
    $region70: #{run.12} parent=5 // pred_check_branch
      %391 = sbr.rel (%p388) target = $region72
    $region71: #{run.12} parent=5 // pred_region
      %s392 = ssub.s32 %s19, 1
      %p393 = scmp.lt.s32.totalorder %s24, 3
      %s394 = scalar_select %p393, %s24, 3
      %s395 = smul.addr %s394, 8
      %s396 = smul.addr %s395, 8
      %s397 = scalar_lea.vmem %s0, %s396
      %p398 = pneg %p45
      %p399 = pneg %p42
      %p400 = pneg %p66
      %p401 = pneg %p63
      %p402 = pneg %p87
      %p403 = pneg %p84
      %p404 = pneg %p108
      %p405 = pneg %p105
      %p406 = pneg %p129
      %p407 = pneg %p126
      %p408 = pneg %p150
      %p409 = pneg %p147
      %p410 = pneg %p171
      %p411 = pneg %p168
      %p412 = pneg %p192
      %p413 = pneg %p189
      %p414 = pneg %p213
      %p415 = pneg %p210
      %p416 = pneg %p234
      %p417 = pneg %p231
      %p418 = pneg %p255
      %p419 = pneg %p252
      %p420 = pneg %p276
      %p421 = pneg %p273
      %p422 = pneg %p297
      %p423 = pneg %p294
      %p424 = pneg %p323
      %p425 = pneg %p320
      %p426 = scmp.lt.s32.totalorder %s24, 3
      %s427 = scalar_select %p426, %s24, 3
      %s428 = smul.addr %s427, 8
      %s429 = smul.addr %s428, 8
      %s430 = scalar_lea.vmem %s13, %s429
      %p431 = scmp.lt.s32.totalorder %s24, 3
      %s432 = scalar_select %p431, %s24, 3
      %s433 = smul.addr %s432, 8
      %s434 = smul.addr %s433, 8
      %s435 = scalar_lea.vmem %s0, %s434
      %p436 = scmp.lt.s32.totalorder %s24, 3
      %s437 = scalar_select %p436, %s24, 3
      %s438 = smul.addr %s437, 8
      %s439 = smul.addr %s438, 8
      %s440 = scalar_lea.vmem %s13, %s439
      %v442 = vld [vmem:[%s435] sm:$0xff]
      %v443 = vld [vmem:[%s435 + $0x8] sm:$0xff]
      %v444 = vld [vmem:[%s435 + $0x10] sm:$0xff]
      %v445 = vld [vmem:[%s435 + $0x18] sm:$0xff]
      %v446 = vld [vmem:[%s435 + $0x20] sm:$0xff]
      %v447 = vld [vmem:[%s435 + $0x28] sm:$0xff]
      %v448 = vld [vmem:[%s435 + $0x30] sm:$0xff]
      %v449 = vld [vmem:[%s435 + $0x38] sm:$0xff]
      %v450 = vpack.c.bf16 %v443, %v442
      %v451 = vpack.c.bf16 %v445, %v444
      %v452 = vpack.c.bf16 %v447, %v446
      %v453 = vpack.c.bf16 %v449, %v448
      %v454 = vld [vmem:[%s1] sm:$0xf]
      %v455 = vld [vmem:[%s1 + $0x4] sm:$0xf]
      %v456 = vld [vmem:[%s1 + $0x8] sm:$0xf]
      %v457 = vld [vmem:[%s1 + $0xc] sm:$0xf]
      %v458 = vld [vmem:[%s2] sm:$0x1]
      %v460 = vlaneseq
      %v461 = vshrl.u32 %v460, 7
      %v462 = vsub.s32 0, %v461
      %v463 = vrot.slane %v458, %v462
      %v469 = vunpack.c.l.b16 %v454
      %v470 = vunpack.c.l.b16 %v455
      %v471 = vunpack.c.l.b16 %v456
      %v472 = vunpack.c.l.b16 %v457
      %v473 = vpack.c.b16 %v470, %v469
      %v474 = vpack.c.b16 %v472, %v471
      %vm477 = vcmask 261120
      %v479 = vsel %vm477, %v450, 0
      %v482 = vsel %vm477, %v451, 0
      %v485 = vsel %vm477, %v452, 0
      %v488 = vsel %vm477, %v453, 0
      %490 = vmatprep.subr.bf16.mxu0 0
      %491 = vmatpush1.bf16.msra.mxu0 0
      %492 = vmatprep.subr.bf16.mxu0 0
      %493 = vmatpush1.bf16.msra.mxu0 0
      %494 = vmatprep.subr.bf16.mxu0 0
      %495 = vmatpush1.bf16.msra.mxu0 0
      %496 = vmatprep.subr.bf16.mxu0 0
      %497 = vmatpush1.bf16.msra.mxu0 0
      %498 = vmatprep.subr.bf16.mxu0 0
      %499 = vmatpush1.bf16.msra.mxu0 0
      %500 = vmatprep.subr.bf16.mxu0 0
      %501 = vmatpush1.bf16.msra.mxu0 0
      %502 = vmatprep.subr.bf16.mxu0 0
      %503 = vmatpush1.bf16.msra.mxu0 %v474
      %504 = vmatprep.subr.bf16.mxu0 0
      %505 = vmatpush1.bf16.msra.mxu0 %v473
      %506 = vmatprep.subr.bf16.mxu0 0
      %507 = vmatpush2.bf16.msra.mxu0 0
      %508 = vmatprep.subr.bf16.mxu0 0
      %509 = vmatpush2.bf16.msra.mxu0 0
      %510 = vmatprep.subr.bf16.mxu0 0
      %511 = vmatpush2.bf16.msra.mxu0 0
      %512 = vmatprep.subr.bf16.mxu0 0
      %513 = vmatpush2.bf16.msra.mxu0 0
      %514 = vmatprep.subr.bf16.mxu0 0
      %515 = vmatpush2.bf16.msra.mxu0 0
      %516 = vmatprep.subr.bf16.mxu0 0
      %517 = vmatpush2.bf16.msra.mxu0 0
      %518 = vmatprep.subr.bf16.mxu0 0
      %519 = vmatpush2.bf16.msra.mxu0 0
      %520 = vmatprep.subr.bf16.mxu0 0
      %521 = vmatpush2.bf16.msra.mxu0 0
      %522 = vmatprep.mubr.bf16.mxu0 0
      %523 = vmatmul.mubr.bf16.gmra.mxu0 %v479
      %v524 = vpop.f32.mrf.mxu0
      %v525 = vadd.f32 %v463, %v524
      %v526 = vpop.f32.mrf.mxu0
      %v527 = vpop.f32.mrf.mxu0
      %v528 = vadd.f32 %v463, %v527
      %v529 = vpop.f32.mrf.mxu0
      %530 = vmatprep.mubr.bf16.mxu0 0
      %531 = vmatmul.mubr.bf16.gmra.mxu0 %v482
      %v532 = vpop.f32.mrf.mxu0
      %v533 = vadd.f32 %v463, %v532
      %v534 = vpop.f32.mrf.mxu0
      %v535 = vpop.f32.mrf.mxu0
      %v536 = vadd.f32 %v463, %v535
      %v537 = vpop.f32.mrf.mxu0
      %538 = vmatprep.mubr.bf16.mxu0 0
      %539 = vmatmul.mubr.bf16.gmra.mxu0 %v485
      %v540 = vpop.f32.mrf.mxu0
      %v541 = vadd.f32 %v463, %v540
      %v542 = vpop.f32.mrf.mxu0
      %v543 = vpop.f32.mrf.mxu0
      %v544 = vadd.f32 %v463, %v543
      %v545 = vpop.f32.mrf.mxu0
      %546 = vmatprep.mubr.bf16.mxu0 0
      %547 = vmatmul.mubr.bf16.gmra.mxu0 %v488
      %v548 = vpop.f32.mrf.mxu0
      %v549 = vadd.f32 %v463, %v548
      %v550 = vpop.f32.mrf.mxu0
      %v551 = vpop.f32.mrf.mxu0
      %v552 = vadd.f32 %v463, %v551
      %v553 = vpop.f32.mrf.mxu0
      %554 = vdwg.mxu0
      %v555 = vld [vmem:[%s3] sm:$0xf]
      %v556 = vld [vmem:[%s3 + $0x4] sm:$0xf]
      %v557 = vld [vmem:[%s3 + $0x8] sm:$0xf]
      %v558 = vld [vmem:[%s3 + $0xc] sm:$0xf]
      %v559 = vld [vmem:[%s4] sm:$0x1]
      %v561 = vlaneseq
      %v562 = vshrl.u32 %v561, 7
      %v563 = vsub.s32 0, %v562
      %v564 = vrot.slane %v559, %v563
      %v570 = vunpack.c.l.b16 %v555
      %v571 = vunpack.c.l.b16 %v556
      %v572 = vunpack.c.l.b16 %v557
      %v573 = vunpack.c.l.b16 %v558
      %v574 = vpack.c.b16 %v571, %v570
      %v575 = vpack.c.b16 %v573, %v572
      %578 = vmatprep.subr.bf16.mxu0 0
      %579 = vmatpush1.bf16.msra.mxu0 0
      %580 = vmatprep.subr.bf16.mxu0 0
      %581 = vmatpush1.bf16.msra.mxu0 0
      %582 = vmatprep.subr.bf16.mxu0 0
      %583 = vmatpush1.bf16.msra.mxu0 0
      %584 = vmatprep.subr.bf16.mxu0 0
      %585 = vmatpush1.bf16.msra.mxu0 0
      %586 = vmatprep.subr.bf16.mxu0 0
      %587 = vmatpush1.bf16.msra.mxu0 0
      %588 = vmatprep.subr.bf16.mxu0 0
      %589 = vmatpush1.bf16.msra.mxu0 0
      %590 = vmatprep.subr.bf16.mxu0 0
      %591 = vmatpush1.bf16.msra.mxu0 %v575
      %592 = vmatprep.subr.bf16.mxu0 0
      %593 = vmatpush1.bf16.msra.mxu0 %v574
      %594 = vmatprep.subr.bf16.mxu0 0
      %595 = vmatpush2.bf16.msra.mxu0 0
      %596 = vmatprep.subr.bf16.mxu0 0
      %597 = vmatpush2.bf16.msra.mxu0 0
      %598 = vmatprep.subr.bf16.mxu0 0
      %599 = vmatpush2.bf16.msra.mxu0 0
      %600 = vmatprep.subr.bf16.mxu0 0
      %601 = vmatpush2.bf16.msra.mxu0 0
      %602 = vmatprep.subr.bf16.mxu0 0
      %603 = vmatpush2.bf16.msra.mxu0 0
      %604 = vmatprep.subr.bf16.mxu0 0
      %605 = vmatpush2.bf16.msra.mxu0 0
      %606 = vmatprep.subr.bf16.mxu0 0
      %607 = vmatpush2.bf16.msra.mxu0 0
      %608 = vmatprep.subr.bf16.mxu0 0
      %609 = vmatpush2.bf16.msra.mxu0 0
      %610 = vmatprep.mubr.bf16.mxu0 0
      %611 = vmatmul.mubr.bf16.gmra.mxu0 %v479
      %v612 = vpop.f32.mrf.mxu0
      %v613 = vadd.f32 %v564, %v612
      %v614 = vpop.f32.mrf.mxu0
      %v615 = vpop.f32.mrf.mxu0
      %v616 = vadd.f32 %v564, %v615
      %v617 = vpop.f32.mrf.mxu0
      %618 = vmatprep.mubr.bf16.mxu0 0
      %619 = vmatmul.mubr.bf16.gmra.mxu0 %v482
      %v620 = vpop.f32.mrf.mxu0
      %v621 = vadd.f32 %v564, %v620
      %v622 = vpop.f32.mrf.mxu0
      %v623 = vpop.f32.mrf.mxu0
      %v624 = vadd.f32 %v564, %v623
      %v625 = vpop.f32.mrf.mxu0
      %626 = vmatprep.mubr.bf16.mxu0 0
      %627 = vmatmul.mubr.bf16.gmra.mxu0 %v485
      %v628 = vpop.f32.mrf.mxu0
      %v629 = vadd.f32 %v564, %v628
      %v630 = vpop.f32.mrf.mxu0
      %v631 = vpop.f32.mrf.mxu0
      %v632 = vadd.f32 %v564, %v631
      %v633 = vpop.f32.mrf.mxu0
      %634 = vmatprep.mubr.bf16.mxu0 0
      %635 = vmatmul.mubr.bf16.gmra.mxu0 %v488
      %v636 = vpop.f32.mrf.mxu0
      %v637 = vadd.f32 %v564, %v636
      %v638 = vpop.f32.mrf.mxu0
      %v639 = vpop.f32.mrf.mxu0
      %v640 = vadd.f32 %v564, %v639
      %v641 = vpop.f32.mrf.mxu0
      %642 = vdwg.mxu0
      %v643 = vld [vmem:[%s5] sm:$0xf]
      %v644 = vld [vmem:[%s5 + $0x4] sm:$0xf]
      %v645 = vld [vmem:[%s5 + $0x8] sm:$0xf]
      %v646 = vld [vmem:[%s5 + $0xc] sm:$0xf]
      %v647 = vld [vmem:[%s6] sm:$0x1]
      %v649 = vlaneseq
      %v650 = vshrl.u32 %v649, 7
      %v651 = vsub.s32 0, %v650
      %v652 = vrot.slane %v647, %v651
      %v658 = vunpack.c.l.b16 %v643
      %v659 = vunpack.c.l.b16 %v644
      %v660 = vunpack.c.l.b16 %v645
      %v661 = vunpack.c.l.b16 %v646
      %v662 = vpack.c.b16 %v659, %v658
      %v663 = vpack.c.b16 %v661, %v660
      %666 = vmatprep.subr.bf16.mxu0 0
      %667 = vmatpush1.bf16.msra.mxu0 0
      %668 = vmatprep.subr.bf16.mxu0 0
      %669 = vmatpush1.bf16.msra.mxu0 0
      %670 = vmatprep.subr.bf16.mxu0 0
      %671 = vmatpush1.bf16.msra.mxu0 0
      %672 = vmatprep.subr.bf16.mxu0 0
      %673 = vmatpush1.bf16.msra.mxu0 0
      %674 = vmatprep.subr.bf16.mxu0 0
      %675 = vmatpush1.bf16.msra.mxu0 0
      %676 = vmatprep.subr.bf16.mxu0 0
      %677 = vmatpush1.bf16.msra.mxu0 0
      %678 = vmatprep.subr.bf16.mxu0 0
      %679 = vmatpush1.bf16.msra.mxu0 %v663
      %680 = vmatprep.subr.bf16.mxu0 0
      %681 = vmatpush1.bf16.msra.mxu0 %v662
      %682 = vmatprep.subr.bf16.mxu0 0
      %683 = vmatpush2.bf16.msra.mxu0 0
      %684 = vmatprep.subr.bf16.mxu0 0
      %685 = vmatpush2.bf16.msra.mxu0 0
      %686 = vmatprep.subr.bf16.mxu0 0
      %687 = vmatpush2.bf16.msra.mxu0 0
      %688 = vmatprep.subr.bf16.mxu0 0
      %689 = vmatpush2.bf16.msra.mxu0 0
      %690 = vmatprep.subr.bf16.mxu0 0
      %691 = vmatpush2.bf16.msra.mxu0 0
      %692 = vmatprep.subr.bf16.mxu0 0
      %693 = vmatpush2.bf16.msra.mxu0 0
      %694 = vmatprep.subr.bf16.mxu0 0
      %695 = vmatpush2.bf16.msra.mxu0 0
      %696 = vmatprep.subr.bf16.mxu0 0
      %697 = vmatpush2.bf16.msra.mxu0 0
      %698 = vmatprep.mubr.bf16.mxu0 0
      %699 = vmatmul.mubr.bf16.gmra.mxu0 %v479
      %v700 = vpop.f32.mrf.mxu0
      %v701 = vadd.f32 %v652, %v700
      %v702 = vpop.f32.mrf.mxu0
      %v703 = vpop.f32.mrf.mxu0
      %v704 = vadd.f32 %v652, %v703
      %v705 = vpop.f32.mrf.mxu0
      %706 = vmatprep.mubr.bf16.mxu0 0
      %707 = vmatmul.mubr.bf16.gmra.mxu0 %v482
      %v708 = vpop.f32.mrf.mxu0
      %v709 = vadd.f32 %v652, %v708
      %v710 = vpop.f32.mrf.mxu0
      %v711 = vpop.f32.mrf.mxu0
      %v712 = vadd.f32 %v652, %v711
      %v713 = vpop.f32.mrf.mxu0
      %714 = vmatprep.mubr.bf16.mxu0 0
      %715 = vmatmul.mubr.bf16.gmra.mxu0 %v485
      %v716 = vpop.f32.mrf.mxu0
      %v717 = vadd.f32 %v652, %v716
      %v718 = vpop.f32.mrf.mxu0
      %v719 = vpop.f32.mrf.mxu0
      %v720 = vadd.f32 %v652, %v719
      %v721 = vpop.f32.mrf.mxu0
      %722 = vmatprep.mubr.bf16.mxu0 0
      %723 = vmatmul.mubr.bf16.gmra.mxu0 %v488
      %v724 = vpop.f32.mrf.mxu0
      %v725 = vadd.f32 %v652, %v724
      %v726 = vpop.f32.mrf.mxu0
      %v727 = vpop.f32.mrf.mxu0
      %v728 = vadd.f32 %v652, %v727
      %v729 = vpop.f32.mrf.mxu0
      %730 = vdwg.mxu0
      %v731 = vpack.c.bf16 %v528, %v525
      %v732 = vpack.c.bf16 %v536, %v533
      %v733 = vpack.c.bf16 %v544, %v541
      %v734 = vpack.c.bf16 %v552, %v549
      %v735 = vpack.c.bf16 %v616, %v613
      %v736 = vpack.c.bf16 %v624, %v621
      %v737 = vpack.c.bf16 %v632, %v629
      %v738 = vpack.c.bf16 %v640, %v637
      %v740 = vsel %vm477, %v731, 0
      %v743 = vsel %vm477, %v732, 0
      %v746 = vsel %vm477, %v733, 0
      %v749 = vsel %vm477, %v734, 0
      %v752 = vsel %vm477, %v735, 0
      %v755 = vsel %vm477, %v736, 0
      %v758 = vsel %vm477, %v737, 0
      %v761 = vsel %vm477, %v738, 0
      %763 = vmatprep.subr.bf16.mxu0 0
      %764 = vmatpush1.bf16.xpose.msra.mxu0 0
      %765 = vmatprep.subr.bf16.mxu0 0
      %766 = vmatpush1.bf16.xpose.msra.mxu0 0
      %767 = vmatprep.subr.bf16.mxu0 0
      %768 = vmatpush1.bf16.xpose.msra.mxu0 0
      %769 = vmatprep.subr.bf16.mxu0 0
      %770 = vmatpush1.bf16.xpose.msra.mxu0 0
      %771 = vmatprep.subr.bf16.mxu0 0
      %772 = vmatpush1.bf16.xpose.msra.mxu0 %v761
      %773 = vmatprep.subr.bf16.mxu0 0
      %774 = vmatpush1.bf16.xpose.msra.mxu0 %v758
      %775 = vmatprep.subr.bf16.mxu0 0
      %776 = vmatpush1.bf16.xpose.msra.mxu0 %v755
      %777 = vmatprep.subr.bf16.mxu0 0
      %778 = vmatpush1.bf16.xpose.msra.mxu0 %v752
      %779 = vmatprep.subr.bf16.mxu0 0
      %780 = vmatpush2.bf16.xpose.msra.mxu0 0
      %781 = vmatprep.subr.bf16.mxu0 0
      %782 = vmatpush2.bf16.xpose.msra.mxu0 0
      %783 = vmatprep.subr.bf16.mxu0 0
      %784 = vmatpush2.bf16.xpose.msra.mxu0 0
      %785 = vmatprep.subr.bf16.mxu0 0
      %786 = vmatpush2.bf16.xpose.msra.mxu0 0
      %787 = vmatprep.subr.bf16.mxu0 0
      %788 = vmatpush2.bf16.xpose.msra.mxu0 0
      %789 = vmatprep.subr.bf16.mxu0 0
      %790 = vmatpush2.bf16.xpose.msra.mxu0 0
      %791 = vmatprep.subr.bf16.mxu0 0
      %792 = vmatpush2.bf16.xpose.msra.mxu0 0
      %793 = vmatprep.subr.bf16.mxu0 0
      %794 = vmatpush2.bf16.xpose.msra.mxu0 0
      %795 = vmatprep.mubr.bf16.mxu0 0
      %796 = vmatmul.mubr.bf16.gmra.mxu0 %v740
      %v797 = vpop.f32.mrf.mxu0
      %v798 = vadd.f32 0.0, %v797
      %v799 = vpop.f32.mrf.mxu0
      %v800 = vpop.f32.mrf.mxu0
      %v801 = vadd.f32 0.0, %v800
      %v802 = vpop.f32.mrf.mxu0
      %803 = vmatprep.mubr.bf16.mxu0 0
      %804 = vmatmul.mubr.bf16.gmra.mxu0 %v743
      %v805 = vpop.f32.mrf.mxu0
      %v806 = vadd.f32 0.0, %v805
      %v807 = vpop.f32.mrf.mxu0
      %v808 = vpop.f32.mrf.mxu0
      %v809 = vadd.f32 0.0, %v808
      %v810 = vpop.f32.mrf.mxu0
      %811 = vmatprep.mubr.bf16.mxu0 0
      %812 = vmatmul.mubr.bf16.gmra.mxu0 %v746
      %v813 = vpop.f32.mrf.mxu0
      %v814 = vadd.f32 0.0, %v813
      %v815 = vpop.f32.mrf.mxu0
      %v816 = vpop.f32.mrf.mxu0
      %v817 = vadd.f32 0.0, %v816
      %v818 = vpop.f32.mrf.mxu0
      %819 = vmatprep.mubr.bf16.mxu0 0
      %820 = vmatmul.mubr.bf16.gmra.mxu0 %v749
      %v821 = vpop.f32.mrf.mxu0
      %v822 = vadd.f32 0.0, %v821
      %v823 = vpop.f32.mrf.mxu0
      %v824 = vpop.f32.mrf.mxu0
      %v825 = vadd.f32 0.0, %v824
      %v826 = vpop.f32.mrf.mxu0
      %827 = vdwg.mxu0
      %v828 = vmul.f32 %v798, 0.17677669
      %v829 = vmul.f32 %v801, 0.17677669
      %v830 = vmul.f32 %v806, 0.17677669
      %v831 = vmul.f32 %v809, 0.17677669
      %v832 = vmul.f32 %v814, 0.17677669
      %v833 = vmul.f32 %v817, 0.17677669
      %v834 = vmul.f32 %v822, 0.17677669
      %v835 = vmul.f32 %v825, 0.17677669
      %vm836 = vcmask 523264
      %v837 = vsel %vm836, %v828, -inf
      %838 = vmax.xlane.f32.xlu0 %v837
      %v839 = vpop.xlane.xlu0 %838
      %v840 = vsel %vm836, %v829, -inf
      %841 = vmax.xlane.f32.xlu0 %v840
      %v842 = vpop.xlane.xlu0 %841
      %v843 = vsel %vm836, %v830, -inf
      %844 = vmax.xlane.f32.xlu0 %v843
      %v845 = vpop.xlane.xlu0 %844
      %v846 = vsel %vm836, %v831, -inf
      %847 = vmax.xlane.f32.xlu0 %v846
      %v848 = vpop.xlane.xlu0 %847
      %v849 = vsel %vm836, %v832, -inf
      %850 = vmax.xlane.f32.xlu0 %v849
      %v851 = vpop.xlane.xlu0 %850
      %v852 = vsel %vm836, %v833, -inf
      %853 = vmax.xlane.f32.xlu0 %v852
      %v854 = vpop.xlane.xlu0 %853
      %v855 = vsel %vm836, %v834, -inf
      %856 = vmax.xlane.f32.xlu0 %v855
      %v857 = vpop.xlane.xlu0 %856
      %v858 = vsel %vm836, %v835, -inf
      %859 = vmax.xlane.f32.xlu0 %v858
      %v860 = vpop.xlane.xlu0 %859
      %v861 = vsub.f32 %v828, %v839
      %v862 = vsub.f32 %v829, %v842
      %v863 = vsub.f32 %v830, %v845
      %v864 = vsub.f32 %v831, %v848
      %v865 = vsub.f32 %v832, %v851
      %v866 = vsub.f32 %v833, %v854
      %v867 = vsub.f32 %v834, %v857
      %v868 = vsub.f32 %v835, %v860
      %v869 = vmul.f32 %v861, 1.442695
      %v870 = vpow.pop %v869
      %v871 = vmul.f32 %v862, 1.442695
      %v872 = vpow.pop %v871
      %v873 = vmul.f32 %v863, 1.442695
      %v874 = vpow.pop %v873
      %v875 = vmul.f32 %v864, 1.442695
      %v876 = vpow.pop %v875
      %v877 = vmul.f32 %v865, 1.442695
      %v878 = vpow.pop %v877
      %v879 = vmul.f32 %v866, 1.442695
      %v880 = vpow.pop %v879
      %v881 = vmul.f32 %v867, 1.442695
      %v882 = vpow.pop %v881
      %v883 = vmul.f32 %v868, 1.442695
      %v884 = vpow.pop %v883
      %v885 = vsel %vm836, %v870, 0.0
      %886 = vadd.xlane.f32.xlu0 %v885
      %v887 = vpop.xlane.xlu0 %886
      %v888 = vsel %vm836, %v872, 0.0
      %889 = vadd.xlane.f32.xlu0 %v888
      %v890 = vpop.xlane.xlu0 %889
      %v891 = vsel %vm836, %v874, 0.0
      %892 = vadd.xlane.f32.xlu0 %v891
      %v893 = vpop.xlane.xlu0 %892
      %v894 = vsel %vm836, %v876, 0.0
      %895 = vadd.xlane.f32.xlu0 %v894
      %v896 = vpop.xlane.xlu0 %895
      %v897 = vsel %vm836, %v878, 0.0
      %898 = vadd.xlane.f32.xlu0 %v897
      %v899 = vpop.xlane.xlu0 %898
      %v900 = vsel %vm836, %v880, 0.0
      %901 = vadd.xlane.f32.xlu0 %v900
      %v902 = vpop.xlane.xlu0 %901
      %v903 = vsel %vm836, %v882, 0.0
      %904 = vadd.xlane.f32.xlu0 %v903
      %v905 = vpop.xlane.xlu0 %904
      %v906 = vsel %vm836, %v884, 0.0
      %907 = vadd.xlane.f32.xlu0 %v906
      %v908 = vpop.xlane.xlu0 %907
      %v909 = vrcp.pop %v887
      %v910 = vrcp.pop %v890
      %v911 = vrcp.pop %v893
      %v912 = vrcp.pop %v896
      %v913 = vrcp.pop %v899
      %v914 = vrcp.pop %v902
      %v915 = vrcp.pop %v905
      %v916 = vrcp.pop %v908
      %v917 = vmul.f32 %v870, %v909
      %v918 = vmul.f32 %v872, %v910
      %v919 = vmul.f32 %v874, %v911
      %v920 = vmul.f32 %v876, %v912
      %v921 = vmul.f32 %v878, %v913
      %v922 = vmul.f32 %v880, %v914
      %v923 = vmul.f32 %v882, %v915
      %v924 = vmul.f32 %v884, %v916
      %v925 = vpack.c.bf16 %v918, %v917
      %v926 = vpack.c.bf16 %v920, %v919
      %v927 = vpack.c.bf16 %v922, %v921
      %v928 = vpack.c.bf16 %v924, %v923
      %v929 = vpack.c.bf16 %v704, %v701
      %v930 = vpack.c.bf16 %v712, %v709
      %v931 = vpack.c.bf16 %v720, %v717
      %v932 = vpack.c.bf16 %v728, %v725
      %v934 = vsel %vm836, %v925, 0
      %v937 = vsel %vm836, %v926, 0
      %v940 = vsel %vm836, %v927, 0
      %v943 = vsel %vm836, %v928, 0
      %945 = vmatprep.subr.bf16.mxu0 0
      %946 = vmatpush1.bf16.msra.mxu0 0
      %947 = vmatprep.subr.bf16.mxu0 0
      %948 = vmatpush1.bf16.msra.mxu0 0
      %949 = vmatprep.subr.bf16.mxu0 0
      %950 = vmatpush1.bf16.msra.mxu0 0
      %951 = vmatprep.subr.bf16.mxu0 0
      %952 = vmatpush1.bf16.msra.mxu0 0
      %953 = vmatprep.subr.bf16.mxu0 0
      %954 = vmatpush1.bf16.msra.mxu0 %v932
      %955 = vmatprep.subr.bf16.mxu0 0
      %956 = vmatpush1.bf16.msra.mxu0 %v931
      %957 = vmatprep.subr.bf16.mxu0 0
      %958 = vmatpush1.bf16.msra.mxu0 %v930
      %959 = vmatprep.subr.bf16.mxu0 0
      %960 = vmatpush1.bf16.msra.mxu0 %v929
      %961 = vmatprep.subr.bf16.mxu0 0
      %962 = vmatpush2.bf16.msra.mxu0 0
      %963 = vmatprep.subr.bf16.mxu0 0
      %964 = vmatpush2.bf16.msra.mxu0 0
      %965 = vmatprep.subr.bf16.mxu0 0
      %966 = vmatpush2.bf16.msra.mxu0 0
      %967 = vmatprep.subr.bf16.mxu0 0
      %968 = vmatpush2.bf16.msra.mxu0 0
      %969 = vmatprep.subr.bf16.mxu0 0
      %970 = vmatpush2.bf16.msra.mxu0 0
      %971 = vmatprep.subr.bf16.mxu0 0
      %972 = vmatpush2.bf16.msra.mxu0 0
      %973 = vmatprep.subr.bf16.mxu0 0
      %974 = vmatpush2.bf16.msra.mxu0 0
      %975 = vmatprep.subr.bf16.mxu0 0
      %976 = vmatpush2.bf16.msra.mxu0 0
      %977 = vmatprep.mubr.bf16.mxu0 0
      %978 = vmatmul.mubr.bf16.gmra.mxu0 %v934
      %v979 = vpop.f32.mrf.mxu0
      %v980 = vadd.f32 0.0, %v979
      %v981 = vpop.f32.mrf.mxu0
      %v982 = vpop.f32.mrf.mxu0
      %v983 = vadd.f32 0.0, %v982
      %v984 = vpop.f32.mrf.mxu0
      %985 = vmatprep.mubr.bf16.mxu0 0
      %986 = vmatmul.mubr.bf16.gmra.mxu0 %v937
      %v987 = vpop.f32.mrf.mxu0
      %v988 = vadd.f32 0.0, %v987
      %v989 = vpop.f32.mrf.mxu0
      %v990 = vpop.f32.mrf.mxu0
      %v991 = vadd.f32 0.0, %v990
      %v992 = vpop.f32.mrf.mxu0
      %993 = vmatprep.mubr.bf16.mxu0 0
      %994 = vmatmul.mubr.bf16.gmra.mxu0 %v940
      %v995 = vpop.f32.mrf.mxu0
      %v996 = vadd.f32 0.0, %v995
      %v997 = vpop.f32.mrf.mxu0
      %v998 = vpop.f32.mrf.mxu0
      %v999 = vadd.f32 0.0, %v998
      %v1000 = vpop.f32.mrf.mxu0
      %1001 = vmatprep.mubr.bf16.mxu0 0
      %1002 = vmatmul.mubr.bf16.gmra.mxu0 %v943
      %v1003 = vpop.f32.mrf.mxu0
      %v1004 = vadd.f32 0.0, %v1003
      %v1005 = vpop.f32.mrf.mxu0
      %v1006 = vpop.f32.mrf.mxu0
      %v1007 = vadd.f32 0.0, %v1006
      %v1008 = vpop.f32.mrf.mxu0
      %1009 = vdwg.mxu0
      %v1010 = vpack.c.bf16 %v983, %v980
      %v1011 = vpack.c.bf16 %v991, %v988
      %v1012 = vpack.c.bf16 %v999, %v996
      %v1013 = vpack.c.bf16 %v1007, %v1004
      %v1014 = vld [vmem:[%s7] sm:$0xf]
      %v1015 = vld [vmem:[%s7 + $0x4] sm:$0xf]
      %v1016 = vld [vmem:[%s7 + $0x8] sm:$0xf]
      %v1017 = vld [vmem:[%s7 + $0xc] sm:$0xf]
      %v1018 = vld [vmem:[%s8] sm:$0x1]
      %v1020 = vlaneseq
      %v1021 = vshrl.u32 %v1020, 7
      %v1022 = vsub.s32 0, %v1021
      %v1023 = vrot.slane %v1018, %v1022
      %v1029 = vunpack.c.l.b16 %v1014
      %v1030 = vunpack.c.l.b16 %v1015
      %v1031 = vunpack.c.l.b16 %v1016
      %v1032 = vunpack.c.l.b16 %v1017
      %v1033 = vpack.c.b16 %v1030, %v1029
      %v1034 = vpack.c.b16 %v1032, %v1031
      %v1038 = vsel %vm477, %v1010, 0
      %v1041 = vsel %vm477, %v1011, 0
      %v1044 = vsel %vm477, %v1012, 0
      %v1047 = vsel %vm477, %v1013, 0
      %1049 = vmatprep.subr.bf16.mxu0 0
      %1050 = vmatpush1.bf16.msra.mxu0 0
      %1051 = vmatprep.subr.bf16.mxu0 0
      %1052 = vmatpush1.bf16.msra.mxu0 0
      %1053 = vmatprep.subr.bf16.mxu0 0
      %1054 = vmatpush1.bf16.msra.mxu0 0
      %1055 = vmatprep.subr.bf16.mxu0 0
      %1056 = vmatpush1.bf16.msra.mxu0 0
      %1057 = vmatprep.subr.bf16.mxu0 0
      %1058 = vmatpush1.bf16.msra.mxu0 0
      %1059 = vmatprep.subr.bf16.mxu0 0
      %1060 = vmatpush1.bf16.msra.mxu0 0
      %1061 = vmatprep.subr.bf16.mxu0 0
      %1062 = vmatpush1.bf16.msra.mxu0 %v1034
      %1063 = vmatprep.subr.bf16.mxu0 0
      %1064 = vmatpush1.bf16.msra.mxu0 %v1033
      %1065 = vmatprep.subr.bf16.mxu0 0
      %1066 = vmatpush2.bf16.msra.mxu0 0
      %1067 = vmatprep.subr.bf16.mxu0 0
      %1068 = vmatpush2.bf16.msra.mxu0 0
      %1069 = vmatprep.subr.bf16.mxu0 0
      %1070 = vmatpush2.bf16.msra.mxu0 0
      %1071 = vmatprep.subr.bf16.mxu0 0
      %1072 = vmatpush2.bf16.msra.mxu0 0
      %1073 = vmatprep.subr.bf16.mxu0 0
      %1074 = vmatpush2.bf16.msra.mxu0 0
      %1075 = vmatprep.subr.bf16.mxu0 0
      %1076 = vmatpush2.bf16.msra.mxu0 0
      %1077 = vmatprep.subr.bf16.mxu0 0
      %1078 = vmatpush2.bf16.msra.mxu0 0
      %1079 = vmatprep.subr.bf16.mxu0 0
      %1080 = vmatpush2.bf16.msra.mxu0 0
      %1081 = vmatprep.mubr.bf16.mxu0 0
      %1082 = vmatmul.mubr.bf16.gmra.mxu0 %v1038
      %v1083 = vpop.f32.mrf.mxu0
      %v1084 = vadd.f32 %v1023, %v1083
      %v1085 = vpop.f32.mrf.mxu0
      %v1086 = vpop.f32.mrf.mxu0
      %v1087 = vadd.f32 %v1023, %v1086
      %v1088 = vpop.f32.mrf.mxu0
      %1089 = vmatprep.mubr.bf16.mxu0 0
      %1090 = vmatmul.mubr.bf16.gmra.mxu0 %v1041
      %v1091 = vpop.f32.mrf.mxu0
      %v1092 = vadd.f32 %v1023, %v1091
      %v1093 = vpop.f32.mrf.mxu0
      %v1094 = vpop.f32.mrf.mxu0
      %v1095 = vadd.f32 %v1023, %v1094
      %v1096 = vpop.f32.mrf.mxu0
      %1097 = vmatprep.mubr.bf16.mxu0 0
      %1098 = vmatmul.mubr.bf16.gmra.mxu0 %v1044
      %v1099 = vpop.f32.mrf.mxu0
      %v1100 = vadd.f32 %v1023, %v1099
      %v1101 = vpop.f32.mrf.mxu0
      %v1102 = vpop.f32.mrf.mxu0
      %v1103 = vadd.f32 %v1023, %v1102
      %v1104 = vpop.f32.mrf.mxu0
      %1105 = vmatprep.mubr.bf16.mxu0 0
      %1106 = vmatmul.mubr.bf16.gmra.mxu0 %v1047
      %v1107 = vpop.f32.mrf.mxu0
      %v1108 = vadd.f32 %v1023, %v1107
      %v1109 = vpop.f32.mrf.mxu0
      %v1110 = vpop.f32.mrf.mxu0
      %v1111 = vadd.f32 %v1023, %v1110
      %v1112 = vpop.f32.mrf.mxu0
      %1113 = vdwg.mxu0
      %v1114 = vadd.f32 %v442, %v1084
      %v1115 = vadd.f32 %v443, %v1087
      %v1116 = vadd.f32 %v444, %v1092
      %v1117 = vadd.f32 %v445, %v1095
      %v1118 = vadd.f32 %v446, %v1100
      %v1119 = vadd.f32 %v447, %v1103
      %v1120 = vadd.f32 %v448, %v1108
      %v1121 = vadd.f32 %v449, %v1111
      %v1122 = vpack.c.bf16 %v1115, %v1114
      %v1123 = vpack.c.bf16 %v1117, %v1116
      %v1124 = vpack.c.bf16 %v1119, %v1118
      %v1125 = vpack.c.bf16 %v1121, %v1120
      %v1126 = vld [vmem:[%s9] sm:$0xf]
      %v1127 = vld [vmem:[%s9 + $0x4] sm:$0xf]
      %v1128 = vld [vmem:[%s9 + $0x8] sm:$0xf]
      %v1129 = vld [vmem:[%s9 + $0xc] sm:$0xf]
      %v1130 = vld [vmem:[%s10] sm:$0x1]
      %v1132 = vlaneseq
      %v1133 = vshrl.u32 %v1132, 7
      %v1134 = vsub.s32 0, %v1133
      %v1135 = vrot.slane %v1130, %v1134
      %v1141 = vunpack.c.l.b16 %v1126
      %v1142 = vunpack.c.l.b16 %v1127
      %v1143 = vunpack.c.l.b16 %v1128
      %v1144 = vunpack.c.l.b16 %v1129
      %v1145 = vpack.c.b16 %v1142, %v1141
      %v1146 = vpack.c.b16 %v1144, %v1143
      %v1150 = vsel %vm477, %v1122, 0
      %v1153 = vsel %vm477, %v1123, 0
      %v1156 = vsel %vm477, %v1124, 0
      %v1159 = vsel %vm477, %v1125, 0
      %1161 = vmatprep.subr.bf16.mxu0 0
      %1162 = vmatpush1.bf16.msra.mxu0 0
      %1163 = vmatprep.subr.bf16.mxu0 0
      %1164 = vmatpush1.bf16.msra.mxu0 0
      %1165 = vmatprep.subr.bf16.mxu0 0
      %1166 = vmatpush1.bf16.msra.mxu0 0
      %1167 = vmatprep.subr.bf16.mxu0 0
      %1168 = vmatpush1.bf16.msra.mxu0 0
      %1169 = vmatprep.subr.bf16.mxu0 0
      %1170 = vmatpush1.bf16.msra.mxu0 0
      %1171 = vmatprep.subr.bf16.mxu0 0
      %1172 = vmatpush1.bf16.msra.mxu0 0
      %1173 = vmatprep.subr.bf16.mxu0 0
      %1174 = vmatpush1.bf16.msra.mxu0 %v1146
      %1175 = vmatprep.subr.bf16.mxu0 0
      %1176 = vmatpush1.bf16.msra.mxu0 %v1145
      %1177 = vmatprep.subr.bf16.mxu0 0
      %1178 = vmatpush2.bf16.msra.mxu0 0
      %1179 = vmatprep.subr.bf16.mxu0 0
      %1180 = vmatpush2.bf16.msra.mxu0 0
      %1181 = vmatprep.subr.bf16.mxu0 0
      %1182 = vmatpush2.bf16.msra.mxu0 0
      %1183 = vmatprep.subr.bf16.mxu0 0
      %1184 = vmatpush2.bf16.msra.mxu0 0
      %1185 = vmatprep.subr.bf16.mxu0 0
      %1186 = vmatpush2.bf16.msra.mxu0 0
      %1187 = vmatprep.subr.bf16.mxu0 0
      %1188 = vmatpush2.bf16.msra.mxu0 0
      %1189 = vmatprep.subr.bf16.mxu0 0
      %1190 = vmatpush2.bf16.msra.mxu0 0
      %1191 = vmatprep.subr.bf16.mxu0 0
      %1192 = vmatpush2.bf16.msra.mxu0 0
      %1193 = vmatprep.mubr.bf16.mxu0 0
      %1194 = vmatmul.mubr.bf16.gmra.mxu0 %v1150
      %v1195 = vpop.f32.mrf.mxu0
      %v1196 = vadd.f32 %v1135, %v1195
      %v1197 = vpop.f32.mrf.mxu0
      %v1198 = vpop.f32.mrf.mxu0
      %v1199 = vadd.f32 %v1135, %v1198
      %v1200 = vpop.f32.mrf.mxu0
      %1201 = vmatprep.mubr.bf16.mxu0 0
      %1202 = vmatmul.mubr.bf16.gmra.mxu0 %v1153
      %v1203 = vpop.f32.mrf.mxu0
      %v1204 = vadd.f32 %v1135, %v1203
      %v1205 = vpop.f32.mrf.mxu0
      %v1206 = vpop.f32.mrf.mxu0
      %v1207 = vadd.f32 %v1135, %v1206
      %v1208 = vpop.f32.mrf.mxu0
      %1209 = vmatprep.mubr.bf16.mxu0 0
      %1210 = vmatmul.mubr.bf16.gmra.mxu0 %v1156
      %v1211 = vpop.f32.mrf.mxu0
      %v1212 = vadd.f32 %v1135, %v1211
      %v1213 = vpop.f32.mrf.mxu0
      %v1214 = vpop.f32.mrf.mxu0
      %v1215 = vadd.f32 %v1135, %v1214
      %v1216 = vpop.f32.mrf.mxu0
      %1217 = vmatprep.mubr.bf16.mxu0 0
      %1218 = vmatmul.mubr.bf16.gmra.mxu0 %v1159
      %v1219 = vpop.f32.mrf.mxu0
      %v1220 = vadd.f32 %v1135, %v1219
      %v1221 = vpop.f32.mrf.mxu0
      %v1222 = vpop.f32.mrf.mxu0
      %v1223 = vadd.f32 %v1135, %v1222
      %v1224 = vpop.f32.mrf.mxu0
      %1225 = vdwg.mxu0
      %v1226 = vmul.f32 %v1196, %v1196
      %v1227 = vmul.f32 %v1199, %v1199
      %v1228 = vmul.f32 %v1204, %v1204
      %v1229 = vmul.f32 %v1207, %v1207
      %v1230 = vmul.f32 %v1212, %v1212
      %v1231 = vmul.f32 %v1215, %v1215
      %v1232 = vmul.f32 %v1220, %v1220
      %v1233 = vmul.f32 %v1223, %v1223
      %v1234 = vmul.f32 %v1196, %v1226
      %v1235 = vmul.f32 %v1199, %v1227
      %v1236 = vmul.f32 %v1204, %v1228
      %v1237 = vmul.f32 %v1207, %v1229
      %v1238 = vmul.f32 %v1212, %v1230
      %v1239 = vmul.f32 %v1215, %v1231
      %v1240 = vmul.f32 %v1220, %v1232
      %v1241 = vmul.f32 %v1223, %v1233
      %v1242 = vmul.f32 %v1234, 0.044715
      %v1243 = vmul.f32 %v1235, 0.044715
      %v1244 = vmul.f32 %v1236, 0.044715
      %v1245 = vmul.f32 %v1237, 0.044715
      %v1246 = vmul.f32 %v1238, 0.044715
      %v1247 = vmul.f32 %v1239, 0.044715
      %v1248 = vmul.f32 %v1240, 0.044715
      %v1249 = vmul.f32 %v1241, 0.044715
      %v1250 = vadd.f32 %v1196, %v1242
      %v1251 = vadd.f32 %v1199, %v1243
      %v1252 = vadd.f32 %v1204, %v1244
      %v1253 = vadd.f32 %v1207, %v1245
      %v1254 = vadd.f32 %v1212, %v1246
      %v1255 = vadd.f32 %v1215, %v1247
      %v1256 = vadd.f32 %v1220, %v1248
      %v1257 = vadd.f32 %v1223, %v1249
      %v1258 = vmul.f32 %v1250, 0.7978846
      %v1259 = vmul.f32 %v1251, 0.7978846
      %v1260 = vmul.f32 %v1252, 0.7978846
      %v1261 = vmul.f32 %v1253, 0.7978846
      %v1262 = vmul.f32 %v1254, 0.7978846
      %v1263 = vmul.f32 %v1255, 0.7978846
      %v1264 = vmul.f32 %v1256, 0.7978846
      %v1265 = vmul.f32 %v1257, 0.7978846
      %v1266 = vtanh.pop %v1258
      %v1267 = vtanh.pop %v1259
      %v1268 = vtanh.pop %v1260
      %v1269 = vtanh.pop %v1261
      %v1270 = vtanh.pop %v1262
      %v1271 = vtanh.pop %v1263
      %v1272 = vtanh.pop %v1264
      %v1273 = vtanh.pop %v1265
      %v1274 = vadd.f32 %v1266, 1.0
      %v1275 = vadd.f32 %v1267, 1.0
      %v1276 = vadd.f32 %v1268, 1.0
      %v1277 = vadd.f32 %v1269, 1.0
      %v1278 = vadd.f32 %v1270, 1.0
      %v1279 = vadd.f32 %v1271, 1.0
      %v1280 = vadd.f32 %v1272, 1.0
      %v1281 = vadd.f32 %v1273, 1.0
      %v1282 = vmul.f32 %v1274, 0.5
      %v1283 = vmul.f32 %v1275, 0.5
      %v1284 = vmul.f32 %v1276, 0.5
      %v1285 = vmul.f32 %v1277, 0.5
      %v1286 = vmul.f32 %v1278, 0.5
      %v1287 = vmul.f32 %v1279, 0.5
      %v1288 = vmul.f32 %v1280, 0.5
      %v1289 = vmul.f32 %v1281, 0.5
      %v1290 = vmul.f32 %v1196, %v1282
      %v1291 = vmul.f32 %v1199, %v1283
      %v1292 = vmul.f32 %v1204, %v1284
      %v1293 = vmul.f32 %v1207, %v1285
      %v1294 = vmul.f32 %v1212, %v1286
      %v1295 = vmul.f32 %v1215, %v1287
      %v1296 = vmul.f32 %v1220, %v1288
      %v1297 = vmul.f32 %v1223, %v1289
      %v1298 = vpack.c.bf16 %v1291, %v1290
      %v1299 = vpack.c.bf16 %v1293, %v1292
      %v1300 = vpack.c.bf16 %v1295, %v1294
      %v1301 = vpack.c.bf16 %v1297, %v1296
      %v1302 = vld [vmem:[%s11] sm:$0xf]
      %v1303 = vld [vmem:[%s11 + $0x4] sm:$0xf]
      %v1304 = vld [vmem:[%s11 + $0x8] sm:$0xf]
      %v1305 = vld [vmem:[%s11 + $0xc] sm:$0xf]
      %v1306 = vld [vmem:[%s11 + $0x10] sm:$0xf]
      %v1307 = vld [vmem:[%s11 + $0x14] sm:$0xf]
      %v1308 = vld [vmem:[%s11 + $0x18] sm:$0xf]
      %v1309 = vld [vmem:[%s11 + $0x1c] sm:$0xf]
      %v1310 = vld [vmem:[%s12] sm:$0x1]
      %v1312 = vlaneseq
      %v1313 = vshrl.u32 %v1312, 7
      %v1314 = vsub.s32 0, %v1313
      %v1315 = vrot.slane %v1310, %v1314
      %v1325 = vunpack.c.l.b16 %v1302
      %v1326 = vunpack.c.l.b16 %v1303
      %v1327 = vunpack.c.l.b16 %v1304
      %v1328 = vunpack.c.l.b16 %v1305
      %v1329 = vunpack.c.l.b16 %v1306
      %v1330 = vunpack.c.l.b16 %v1307
      %v1331 = vunpack.c.l.b16 %v1308
      %v1332 = vunpack.c.l.b16 %v1309
      %v1333 = vpack.c.b16 %v1326, %v1325
      %v1334 = vpack.c.b16 %v1328, %v1327
      %v1335 = vpack.c.b16 %v1330, %v1329
      %v1336 = vpack.c.b16 %v1332, %v1331
      %v1342 = vsel %vm836, %v1298, 0
      %v1345 = vsel %vm836, %v1299, 0
      %v1348 = vsel %vm836, %v1300, 0
      %v1351 = vsel %vm836, %v1301, 0
      %1353 = vmatprep.subr.bf16.mxu0 0
      %1354 = vmatpush1.bf16.msra.mxu0 0
      %1355 = vmatprep.subr.bf16.mxu0 0
      %1356 = vmatpush1.bf16.msra.mxu0 0
      %1357 = vmatprep.subr.bf16.mxu0 0
      %1358 = vmatpush1.bf16.msra.mxu0 0
      %1359 = vmatprep.subr.bf16.mxu0 0
      %1360 = vmatpush1.bf16.msra.mxu0 0
      %1361 = vmatprep.subr.bf16.mxu0 0
      %1362 = vmatpush1.bf16.msra.mxu0 %v1336
      %1363 = vmatprep.subr.bf16.mxu0 0
      %1364 = vmatpush1.bf16.msra.mxu0 %v1335
      %1365 = vmatprep.subr.bf16.mxu0 0
      %1366 = vmatpush1.bf16.msra.mxu0 %v1334
      %1367 = vmatprep.subr.bf16.mxu0 0
      %1368 = vmatpush1.bf16.msra.mxu0 %v1333
      %1369 = vmatprep.subr.bf16.mxu0 0
      %1370 = vmatpush2.bf16.msra.mxu0 0
      %1371 = vmatprep.subr.bf16.mxu0 0
      %1372 = vmatpush2.bf16.msra.mxu0 0
      %1373 = vmatprep.subr.bf16.mxu0 0
      %1374 = vmatpush2.bf16.msra.mxu0 0
      %1375 = vmatprep.subr.bf16.mxu0 0
      %1376 = vmatpush2.bf16.msra.mxu0 0
      %1377 = vmatprep.subr.bf16.mxu0 0
      %1378 = vmatpush2.bf16.msra.mxu0 0
      %1379 = vmatprep.subr.bf16.mxu0 0
      %1380 = vmatpush2.bf16.msra.mxu0 0
      %1381 = vmatprep.subr.bf16.mxu0 0
      %1382 = vmatpush2.bf16.msra.mxu0 0
      %1383 = vmatprep.subr.bf16.mxu0 0
      %1384 = vmatpush2.bf16.msra.mxu0 0
      %1385 = vmatprep.mubr.bf16.mxu0 0
      %1386 = vmatmul.mubr.bf16.gmra.mxu0 %v1342
      %v1387 = vpop.f32.mrf.mxu0
      %v1388 = vadd.f32 %v1315, %v1387
      %v1389 = vpop.f32.mrf.mxu0
      %v1390 = vpop.f32.mrf.mxu0
      %v1391 = vadd.f32 %v1315, %v1390
      %v1392 = vpop.f32.mrf.mxu0
      %1393 = vmatprep.mubr.bf16.mxu0 0
      %1394 = vmatmul.mubr.bf16.gmra.mxu0 %v1345
      %v1395 = vpop.f32.mrf.mxu0
      %v1396 = vadd.f32 %v1315, %v1395
      %v1397 = vpop.f32.mrf.mxu0
      %v1398 = vpop.f32.mrf.mxu0
      %v1399 = vadd.f32 %v1315, %v1398
      %v1400 = vpop.f32.mrf.mxu0
      %1401 = vmatprep.mubr.bf16.mxu0 0
      %1402 = vmatmul.mubr.bf16.gmra.mxu0 %v1348
      %v1403 = vpop.f32.mrf.mxu0
      %v1404 = vadd.f32 %v1315, %v1403
      %v1405 = vpop.f32.mrf.mxu0
      %v1406 = vpop.f32.mrf.mxu0
      %v1407 = vadd.f32 %v1315, %v1406
      %v1408 = vpop.f32.mrf.mxu0
      %1409 = vmatprep.mubr.bf16.mxu0 0
      %1410 = vmatmul.mubr.bf16.gmra.mxu0 %v1351
      %v1411 = vpop.f32.mrf.mxu0
      %v1412 = vadd.f32 %v1315, %v1411
      %v1413 = vpop.f32.mrf.mxu0
      %v1414 = vpop.f32.mrf.mxu0
      %v1415 = vadd.f32 %v1315, %v1414
      %v1416 = vpop.f32.mrf.mxu0
      %1417 = vdwg.mxu0
      %v1418 = vadd.f32 %v1114, %v1388
      %v1419 = vadd.f32 %v1115, %v1391
      %v1420 = vadd.f32 %v1116, %v1396
      %v1421 = vadd.f32 %v1117, %v1399
      %v1422 = vadd.f32 %v1118, %v1404
      %v1423 = vadd.f32 %v1119, %v1407
      %v1424 = vadd.f32 %v1120, %v1412
      %v1425 = vadd.f32 %v1121, %v1415
      %1426 = vst.msk [vmem:[%s440] sm:$0xff] %vm477, %v1418
      %1427 = vst.msk [vmem:[%s440 + $0x8] sm:$0xff] %vm477, %v1419
      %1428 = vst.msk [vmem:[%s440 + $0x10] sm:$0xff] %vm477, %v1420
      %1429 = vst.msk [vmem:[%s440 + $0x18] sm:$0xff] %vm477, %v1421
      %1430 = vst.msk [vmem:[%s440 + $0x20] sm:$0xff] %vm477, %v1422
      %1431 = vst.msk [vmem:[%s440 + $0x28] sm:$0xff] %vm477, %v1423
      %1432 = vst.msk [vmem:[%s440 + $0x30] sm:$0xff] %vm477, %v1424
      %1433 = vst.msk [vmem:[%s440 + $0x38] sm:$0xff] %vm477, %v1425
      %p1434 = scmp.lt.s32.totalorder %s24, 3
      %s1435 = scalar_select %p1434, %s24, 3
      %s1436 = smul.addr %s1435, 8
      %s1437 = smul.addr %s1436, 8
      %s1438 = scalar_lea.vmem %s13, %s1437
      // Predicated region
      $region73: #{run.12} parent=71 // pred_check
        %p1439 = pneg %p320
      $region74: #{run.12} parent=71 // pred_check_branch
        %1441 = sbr.rel (%p1439) target = $region76
      $region75: #{run.12} parent=71 // pred_region
        _
      $region76: #{run.12} parent=71 // pred_fallthru
        _
    $region72: #{run.12} parent=5 // pred_fallthru
      _
    %p1442 = scmp.le.s32.totalorder 2, %s19
    // Predicated region
    $region77: #{run.12} parent=5 // pred_check
      %p1443 = pneg %p1442
    $region78: #{run.12} parent=5 // pred_check_branch
      %1445 = sbr.rel (%p1443) target = $region80
    $region79: #{run.12} parent=5 // pred_region
      %s1446 = ssub.s32 %s19, 2
      // Predicated region
      $region81: #{run.12} parent=79 // pred_check
        %p1447 = pneg %p326
      $region82: #{run.12} parent=79 // pred_check_branch
        %1449 = sbr.rel (%p1447) target = $region84
      $region83: #{run.12} parent=79 // pred_region
        %p1450 = scmp.lt.s32.totalorder %s25, 3
        %s1451 = scalar_select %p1450, %s25, 3
        %s1452 = smul.addr %s1451, 8
        %s1453 = smul.addr %s1452, 8
        %s1454 = scalar_lea.vmem %s13, %s1453
      $region84: #{run.12} parent=79 // pred_fallthru
        _
    $region80: #{run.12} parent=5 // pred_fallthru
      _
  $region6: #{run.12} parent=0 // loop_footer
    %s23 = sadd.s32 1, %s19
  $region7: #{run.12} parent=0 // loop_footer_branch
    %18 = sbr.rel target = $region3
  $region8: #{run.12} parent=0 // loop_exit
    _

// kernel: run.15
$region0: #{run.15}
  #allocation0 [shape = 'u32[]', space=smem, size = 0x4, offset = 0x4, fixed_abs, tag = 'smem constant byte address 0x4 - core index']
  #allocation1 [shape = 'u32[144,128]{1,0:T(1,128)}', space=vmem, size = 0x12000, scoped, tag = 'internal scratch']
  #allocation2 [shape = 'f32[1,1]{1,0:T(1,128)S(1)}', space=vmem, size = 0x200, scoped, tag = 'scoped memory for run.15']
  %s0 = inlined_call_operand.vmem [shape: f32[4,1,64], index: 0, kind: input, shape index: {}]
  %s1 = inlined_call_operand.vmem [shape: f32[4,1,64], index: 1, kind: input, shape index: {}]
  %s2 = inlined_call_operand.vmem [shape: f32[4,8,64], index: 2, kind: input, shape index: {}]
  %s3 = inlined_call_operand.vmem [shape: f32[1,64], index: 3, kind: input, shape index: {}]
  %s4 = inlined_call_operand.<no memory space> [shape: f32[1,1], index: 4, kind: input, shape index: {}]
  %s5 = inlined_call_operand.vmem [shape: f32[4,8,1], index: 5, kind: output, shape index: {}]
  %s6 = sld [smem:[#allocation0]]
  $region53: #{run.15} parent=0
    _
  %s8 = ssub.s32 1, %s6
  %s9 = scalar_select 0, %s8, %s6
  %v10 = vstv %s4
  %11 = vst [vmem:[#allocation2] sm:$0x1] %v10
  loop: start=0, step=1, limit=6
  $region2: #{run.15} parent=0 // loop_pre_header
    _
  $region3: #{run.15} parent=0 // loop_header
    %s13 = sphi 0, %s17
    %p14 = scmp.ge.s32.totalorder %s13, 6
    %s23 = sphi 0, %s25
    %s26 = sphi 0, %s23
    %s27 = sphi 0, %s26
    %s43 = sphi 0, %s27
    %s49 = sphi 0, %s51
    %s52 = sphi 0, %s49
    %s53 = sphi 0, %s52
    %s69 = sphi 0, %s53
    %s75 = sphi 0, %s77
    %s78 = sphi 0, %s75
    %s79 = sphi 0, %s78
    %s95 = sphi 0, %s79
    %s99 = sphi 0, %s99
    %s101 = sphi 0, %s99
    %s102 = sphi 0, %s101
    %s116 = sphi 0, %s102
    %s120 = sphi 0, %s120
    %s122 = sphi 0, %s120
    %s123 = sphi 0, %s122
    %s137 = sphi 0, %s123
    %s143 = sphi 0, %s145
    %s146 = sphi 0, %s143
    %s147 = sphi 0, %s146
    %s163 = sphi 0, %s147
  $region4: #{run.15} parent=0 // loop_header_branch
    %16 = sbr.rel (%p14) target = $region8
  $region5: #{run.15} parent=0 // loop_body
    %s18 = ssub.s32 %s13, 1
    %s19 = ssub.s32 %s13, 2
    %s20 = sadd.s32 %s13, 1
    %s21 = ssub.s32 %s13, %s20
    %p22 = scmp.eq.s32.totalorder %s21, 0
    %s24 = sadd.s32 %s23, 1
    %s25 = scalar_select %p22, %s23, %s24
    %p28 = pneg %p22
    %p29 = scmp.eq.s32.totalorder %s13, 3
    %p30 = por %p28, %p29
    %p31 = scmp.ne.s32.totalorder %s23, %s26
    %p32 = scmp.eq.s32.totalorder %s13, 0
    %p33 = por %p31, %p32
    %p34 = scmp.ne.s32.totalorder %s23, %s26
    %p35 = scmp.eq.s32.totalorder %s18, 3
    %p36 = por %p34, %p35
    %p37 = scmp.ne.s32.totalorder %s26, %s27
    %p38 = scmp.eq.s32.totalorder %s18, 0
    %p39 = por %p37, %p38
    %p40 = scmp.ne.s32.totalorder %s26, %s27
    %p41 = scmp.eq.s32.totalorder %s19, 3
    %p42 = por %p40, %p41
    %p44 = scmp.ne.s32.totalorder %s27, %s43
    %p45 = scmp.eq.s32.totalorder %s19, 0
    %p46 = por %p44, %p45
    %s47 = ssub.s32 %s13, %s20
    %p48 = scmp.eq.s32.totalorder %s47, 0
    %s50 = sadd.s32 %s49, 1
    %s51 = scalar_select %p48, %s49, %s50
    %p54 = pneg %p48
    %p55 = scmp.eq.s32.totalorder %s13, 3
    %p56 = por %p54, %p55
    %p57 = scmp.ne.s32.totalorder %s49, %s52
    %p58 = scmp.eq.s32.totalorder %s13, 0
    %p59 = por %p57, %p58
    %p60 = scmp.ne.s32.totalorder %s49, %s52
    %p61 = scmp.eq.s32.totalorder %s18, 3
    %p62 = por %p60, %p61
    %p63 = scmp.ne.s32.totalorder %s52, %s53
    %p64 = scmp.eq.s32.totalorder %s18, 0
    %p65 = por %p63, %p64
    %p66 = scmp.ne.s32.totalorder %s52, %s53
    %p67 = scmp.eq.s32.totalorder %s19, 3
    %p68 = por %p66, %p67
    %p70 = scmp.ne.s32.totalorder %s53, %s69
    %p71 = scmp.eq.s32.totalorder %s19, 0
    %p72 = por %p70, %p71
    %s73 = ssub.s32 %s13, %s20
    %p74 = scmp.eq.s32.totalorder %s73, 0
    %s76 = sadd.s32 %s75, 1
    %s77 = scalar_select %p74, %s75, %s76
    %p80 = pneg %p74
    %p81 = scmp.eq.s32.totalorder %s13, 3
    %p82 = por %p80, %p81
    %p83 = scmp.ne.s32.totalorder %s75, %s78
    %p84 = scmp.eq.s32.totalorder %s13, 0
    %p85 = por %p83, %p84
    %p86 = scmp.ne.s32.totalorder %s75, %s78
    %p87 = scmp.eq.s32.totalorder %s18, 3
    %p88 = por %p86, %p87
    %p89 = scmp.ne.s32.totalorder %s78, %s79
    %p90 = scmp.eq.s32.totalorder %s18, 0
    %p91 = por %p89, %p90
    %p92 = scmp.ne.s32.totalorder %s78, %s79
    %p93 = scmp.eq.s32.totalorder %s19, 3
    %p94 = por %p92, %p93
    %p96 = scmp.ne.s32.totalorder %s79, %s95
    %p97 = scmp.eq.s32.totalorder %s19, 0
    %p98 = por %p96, %p97
    %s100 = sadd.s32 %s99, 1
    %p103 = scmp.eq.s32.totalorder %s13, 3
    %p104 = scmp.ne.s32.totalorder %s99, %s101
    %p105 = scmp.eq.s32.totalorder %s13, 0
    %p106 = por %p104, %p105
    %p107 = scmp.ne.s32.totalorder %s99, %s101
    %p108 = scmp.eq.s32.totalorder %s18, 3
    %p109 = por %p107, %p108
    %p110 = scmp.ne.s32.totalorder %s101, %s102
    %p111 = scmp.eq.s32.totalorder %s18, 0
    %p112 = por %p110, %p111
    %p113 = scmp.ne.s32.totalorder %s101, %s102
    %p114 = scmp.eq.s32.totalorder %s19, 3
    %p115 = por %p113, %p114
    %p117 = scmp.ne.s32.totalorder %s102, %s116
    %p118 = scmp.eq.s32.totalorder %s19, 0
    %p119 = por %p117, %p118
    %s121 = sadd.s32 %s120, 1
    %p124 = scmp.eq.s32.totalorder %s13, 3
    %p125 = scmp.ne.s32.totalorder %s120, %s122
    %p126 = scmp.eq.s32.totalorder %s13, 0
    %p127 = por %p125, %p126
    %p128 = scmp.ne.s32.totalorder %s120, %s122
    %p129 = scmp.eq.s32.totalorder %s18, 3
    %p130 = por %p128, %p129
    %p131 = scmp.ne.s32.totalorder %s122, %s123
    %p132 = scmp.eq.s32.totalorder %s18, 0
    %p133 = por %p131, %p132
    %p134 = scmp.ne.s32.totalorder %s122, %s123
    %p135 = scmp.eq.s32.totalorder %s19, 3
    %p136 = por %p134, %p135
    %p138 = scmp.ne.s32.totalorder %s123, %s137
    %p139 = scmp.eq.s32.totalorder %s19, 0
    %p140 = por %p138, %p139
    %s141 = ssub.s32 %s13, %s20
    %p142 = scmp.eq.s32.totalorder %s141, 0
    %s144 = sadd.s32 %s143, 1
    %s145 = scalar_select %p142, %s143, %s144
    %p148 = pneg %p142
    %p149 = scmp.eq.s32.totalorder %s13, 3
    %p150 = por %p148, %p149
    %p151 = scmp.ne.s32.totalorder %s143, %s146
    %p152 = scmp.eq.s32.totalorder %s13, 0
    %p153 = por %p151, %p152
    %p154 = scmp.ne.s32.totalorder %s143, %s146
    %p155 = scmp.eq.s32.totalorder %s18, 3
    %p156 = por %p154, %p155
    %p157 = scmp.ne.s32.totalorder %s146, %s147
    %p158 = scmp.eq.s32.totalorder %s18, 0
    %p159 = por %p157, %p158
    %p160 = scmp.ne.s32.totalorder %s146, %s147
    %p161 = scmp.eq.s32.totalorder %s19, 3
    %p162 = por %p160, %p161
    %p164 = scmp.ne.s32.totalorder %s147, %s163
    %p165 = scmp.eq.s32.totalorder %s19, 0
    %p166 = por %p164, %p165
    %p167 = scmp.le.s32.totalorder 1, %s13
    %p168 = scmp.lt.s32.totalorder %s13, 5
    %p169 = pnand %p167, %p168
    %p170 = pneg %p169
    // Predicated region
    $region9: #{run.15} parent=5 // pred_check
      _
    $region10: #{run.15} parent=5 // pred_check_branch
      %172 = sbr.rel (%p169) target = $region12
    $region11: #{run.15} parent=5 // pred_region
      %s173 = ssub.s32 %s13, 1
      // Predicated region
      $region13: #{run.15} parent=11 // pred_check
        %p174 = pneg %p112
      $region14: #{run.15} parent=11 // pred_check_branch
        %176 = sbr.rel (%p174) target = $region16
      $region15: #{run.15} parent=11 // pred_region
        _
      $region16: #{run.15} parent=11 // pred_fallthru
        _
      // Predicated region
      $region17: #{run.15} parent=11 // pred_check
        %p177 = pneg %p133
      $region18: #{run.15} parent=11 // pred_check_branch
        %179 = sbr.rel (%p177) target = $region20
      $region19: #{run.15} parent=11 // pred_region
        _
      $region20: #{run.15} parent=11 // pred_fallthru
        _
    $region12: #{run.15} parent=5 // pred_fallthru
      _
    %p180 = scmp.lt.s32.totalorder %s13, 4
    // Predicated region
    $region21: #{run.15} parent=5 // pred_check
      %p181 = pneg %p180
    $region22: #{run.15} parent=5 // pred_check_branch
      %183 = sbr.rel (%p181) target = $region24
    $region23: #{run.15} parent=5 // pred_region
      // Predicated region
      $region25: #{run.15} parent=23 // pred_check
        %p184 = pneg %p33
      $region26: #{run.15} parent=23 // pred_check_branch
        %186 = sbr.rel (%p184) target = $region28
      $region27: #{run.15} parent=23 // pred_region
        %p187 = scmp.lt.s32.totalorder %s13, 3
        %s188 = scalar_select %p187, %s13, 3
        %s189 = scalar_lea.vmem %s0, %s188
      $region28: #{run.15} parent=23 // pred_fallthru
        _
      // Predicated region
      $region29: #{run.15} parent=23 // pred_check
        %p190 = pneg %p59
      $region30: #{run.15} parent=23 // pred_check_branch
        %192 = sbr.rel (%p190) target = $region32
      $region31: #{run.15} parent=23 // pred_region
        %p193 = scmp.lt.s32.totalorder %s13, 3
        %s194 = scalar_select %p193, %s13, 3
        %s195 = scalar_lea.vmem %s1, %s194
      $region32: #{run.15} parent=23 // pred_fallthru
        _
      // Predicated region
      $region33: #{run.15} parent=23 // pred_check
        %p196 = pneg %p85
      $region34: #{run.15} parent=23 // pred_check_branch
        %198 = sbr.rel (%p196) target = $region36
      $region35: #{run.15} parent=23 // pred_region
        %p199 = scmp.lt.s32.totalorder %s13, 3
        %s200 = scalar_select %p199, %s13, 3
        %s201 = smul.addr %s200, 8
        %s202 = scalar_lea.vmem %s2, %s201
      $region36: #{run.15} parent=23 // pred_fallthru
        _
    $region24: #{run.15} parent=5 // pred_fallthru
      _
    %p203 = scmp.le.s32.totalorder 1, %s13
    %p204 = scmp.lt.s32.totalorder %s13, 5
    %p205 = pnand %p203, %p204
    %p206 = pneg %p205
    // Predicated region
    $region37: #{run.15} parent=5 // pred_check
      _
    $region38: #{run.15} parent=5 // pred_check_branch
      %208 = sbr.rel (%p205) target = $region40
    $region39: #{run.15} parent=5 // pred_region
      %s209 = ssub.s32 %s13, 1
      %p210 = scmp.lt.s32.totalorder %s18, 3
      %s211 = scalar_select %p210, %s18, 3
      %s212 = scalar_lea.vmem %s0, %s211
      %p213 = pneg %p39
      %p214 = pneg %p36
      %p215 = scmp.lt.s32.totalorder %s18, 3
      %s216 = scalar_select %p215, %s18, 3
      %s217 = scalar_lea.vmem %s1, %s216
      %p218 = pneg %p65
      %p219 = pneg %p62
      %p220 = scmp.lt.s32.totalorder %s18, 3
      %s221 = scalar_select %p220, %s18, 3
      %s222 = smul.addr %s221, 8
      %s223 = scalar_lea.vmem %s2, %s222
      %p224 = pneg %p91
      %p225 = pneg %p88
      %p226 = pneg %p112
      %p227 = pneg %p109
      %p228 = pneg %p133
      %p229 = pneg %p130
      %p230 = pneg %p159
      %p231 = pneg %p156
      %p232 = scmp.lt.s32.totalorder %s18, 3
      %s233 = scalar_select %p232, %s18, 3
      %s234 = smul.addr %s233, 8
      %s235 = scalar_lea.vmem %s5, %s234
      %p236 = scmp.lt.s32.totalorder %s18, 3
      %s237 = scalar_select %p236, %s18, 3
      %s238 = scalar_lea.vmem %s0, %s237
      %p239 = scmp.lt.s32.totalorder %s18, 3
      %s240 = scalar_select %p239, %s18, 3
      %s241 = scalar_lea.vmem %s1, %s240
      %p242 = scmp.lt.s32.totalorder %s18, 3
      %s243 = scalar_select %p242, %s18, 3
      %s244 = smul.addr %s243, 8
      %s245 = scalar_lea.vmem %s2, %s244
      %p246 = scmp.lt.s32.totalorder %s18, 3
      %s247 = scalar_select %p246, %s18, 3
      %s248 = smul.addr %s247, 8
      %s249 = scalar_lea.vmem %s5, %s248
      %v250 = vld [vmem:[%s238] sm:$0x1]
      %v251 = vld [vmem:[%s241] sm:$0x1]
      %v252 = vld [vmem:[%s245] sm:$0xff]
      %v254 = vlaneseq
      %v255 = vshrl.u32 %v254, 7
      %v256 = vsub.s32 0, %v255
      %v257 = vrot.slane %v251, %v256
      %v259 = vadd.f32 %v257, %v252
      %v261 = vlaneseq
      %v262 = vshrl.u32 %v261, 7
      %v263 = vsub.s32 0, %v262
      %v264 = vrot.slane %v250, %v263
      %v266 = vmul.f32 %v264, %v259
      %v267 = vmax.f32 %v266, 0.0
      %v268 = vld [vmem:[%s3] sm:$0x1]
      %v270 = vlaneseq
      %v271 = vshrl.u32 %v270, 7
      %v272 = vsub.s32 0, %v271
      %v273 = vrot.slane %v268, %v272
      %v275 = vmul.f32 %v267, %v273
      %vm276 = vcmask 523264
      %v277 = vsel %vm276, %v275, 0.0
      %278 = vadd.xlane.f32.xlu0 %v277
      %v279 = vpop.xlane.xlu0 %278
      %v280 = vld [vmem:[#allocation2] sm:$0x1]
      %s281 = vtos %v280
      %v282 = vstv %s281
      %v283 = vadd.f32 %v279, %v282
      %vm284 = vcmask 7168
      %285 = vst.msk [vmem:[%s249] sm:$0xff] %vm284, %v283
      %p286 = scmp.lt.s32.totalorder %s18, 3
      %s287 = scalar_select %p286, %s18, 3
      %s288 = smul.addr %s287, 8
      %s289 = scalar_lea.vmem %s5, %s288
      // Predicated region
      $region41: #{run.15} parent=39 // pred_check
        %p290 = pneg %p156
      $region42: #{run.15} parent=39 // pred_check_branch
        %292 = sbr.rel (%p290) target = $region44
      $region43: #{run.15} parent=39 // pred_region
        _
      $region44: #{run.15} parent=39 // pred_fallthru
        _
    $region40: #{run.15} parent=5 // pred_fallthru
      _
    %p293 = scmp.le.s32.totalorder 2, %s13
    // Predicated region
    $region45: #{run.15} parent=5 // pred_check
      %p294 = pneg %p293
    $region46: #{run.15} parent=5 // pred_check_branch
      %296 = sbr.rel (%p294) target = $region48
    $region47: #{run.15} parent=5 // pred_region
      %s297 = ssub.s32 %s13, 2
      // Predicated region
      $region49: #{run.15} parent=47 // pred_check
        %p298 = pneg %p162
      $region50: #{run.15} parent=47 // pred_check_branch
        %300 = sbr.rel (%p298) target = $region52
      $region51: #{run.15} parent=47 // pred_region
        %p301 = scmp.lt.s32.totalorder %s19, 3
        %s302 = scalar_select %p301, %s19, 3
        %s303 = smul.addr %s302, 8
        %s304 = scalar_lea.vmem %s5, %s303
      $region52: #{run.15} parent=47 // pred_fallthru
        _
    $region48: #{run.15} parent=5 // pred_fallthru
      _
  $region6: #{run.15} parent=0 // loop_footer
    %s17 = sadd.s32 1, %s13
  $region7: #{run.15} parent=0 // loop_footer_branch
    %12 = sbr.rel target = $region3
  $region8: #{run.15} parent=0 // loop_exit
    _

</llo_original>
